<compile_context>
chip_gen: v5e
topology: v5e:2x2
jax: 0.10.0
libtpu: 0.0.40
codegen_flags: <defaults>
</compile_context>

<pallas_src>
import functools

import jax
import jax.numpy as jnp
import numpy as np
from jax import lax
from jax.experimental import pallas as pl
from jax.experimental.pallas import tpu as pltpu

LN_EPS = 1e-5


def _layernorm(v, g, b):
    mu = jnp.mean(v, axis=-1, keepdims=True)
    var = jnp.mean((v - mu) ** 2, axis=-1, keepdims=True)
    return (v - mu) * jax.lax.rsqrt(var + LN_EPS) * g + b


def _layernorm_masked(v, g, b, mask, n_real):
    # Padded lanes of v are exactly 0 by construction, so the mean needs no
    # mask; the mask is only applied to (v - mu) so padded lanes don't pollute
    # the variance.  Padded lanes of g/b are 0, so the output stays 0 there.
    inv_n = 1.0 / float(n_real)
    mu = jnp.sum(v, axis=-1, keepdims=True) * inv_n
    d = (v - mu) * mask
    var = jnp.sum(d * d, axis=-1, keepdims=True) * inv_n
    return d * jax.lax.rsqrt(var + LN_EPS) * g + b


def gn_layer_kernel(x_in_ref, e_in_ref, gi_ref, gj_ref, st_ref,
                    wij_ref, wee_ref, be_ref, wnax_ref, bn_ref,
                    gng_ref, gnb_ref, geg_ref, geb_ref,
                    x_out_ref, e_out_ref, *, D, De, DeP):
    """One GN layer per grid step; x/e carried in the resident output buffers."""
    f32 = jnp.float32
    bf16 = jnp.bfloat16
    m = pl.program_id(0)

    @pl.when(m == 0)
    def _():
        x_out_ref[...] = x_in_ref[...]
        e_out_ref[...] = e_in_ref[...]

    x = x_out_ref[...]                       # [NP, DP]  f32 (lane/row padded)
    e = e_out_ref[...]                       # [EP, DeP] f32 (lane/row padded)
    gi = gi_ref[...]                         # [EP, NP] bf16 one-hot(dst)  -> x_i gather
    gj = gj_ref[...]                         # [EP, NP] bf16 one-hot(src)  -> x_j gather
    st = st_ref[...]                         # [NP, EP] bf16 (norm * one_hot(dst)).T -> scatter-add

    DP = x.shape[-1]
    mask_x = (lax.broadcasted_iota(jnp.int32, (1, DP), 1) < D).astype(f32)
    mask_e = (lax.broadcasted_iota(jnp.int32, (1, DeP), 1) < De).astype(f32)

    x_res = x
    e_res = e
    for idx in range(2):                     # the two message/update passes
        # Fused projection: one matmul for both x_i and x_j terms; split at the
        # 128-aligned DeP boundary (free static slice).
        p_ij = jnp.dot(x, wij_ref[0, idx], preferred_element_type=f32)     # [NP, 2*DeP]
        p_i = p_ij[:, :DeP].astype(bf16)
        p_j = p_ij[:, DeP:].astype(bf16)
        # bf16 one-hot gathers run at native MXU cadence; exact row selection.
        e_new = (jnp.dot(gi, p_i, preferred_element_type=f32)
                 + jnp.dot(gj, p_j, preferred_element_type=f32)
                 + jnp.dot(e, wee_ref[0, idx], preferred_element_type=f32)
                 + be_ref[0, idx])                                         # [EP, DeP]
        # GCN norm is folded into the pre-transposed scatter incidence, so the
        # scatter-add is a single bf16 matmul (no per-edge multiply, no vxpose).
        agg = jnp.dot(st, e_new.astype(bf16), preferred_element_type=f32)  # [NP, DeP]
        # Fused node update: K = DeP + DP contraction fills a 256-wide MXU pass.
        x_new = (jnp.dot(jnp.concatenate([agg, x], axis=-1), wnax_ref[0, idx],
                         preferred_element_type=f32)
                 + bn_ref[0, idx])                                         # [NP, DP]
        x = jnp.maximum(x_new, 0.0)          # relu(x)
        e = jnp.maximum(e_new, 0.0)          # relu(edge_attr)

    x = _layernorm_masked(x, gng_ref[0], gnb_ref[0], mask_x, D) + x_res
    e = _layernorm_masked(e, geg_ref[0], geb_ref[0], mask_e, De) + e_res

    x_out_ref[...] = x
    e_out_ref[...] = e


def _round_up(n, mult=128):
    return ((n + mult - 1) // mult) * mult


def _pad_to(a, shape):
    return jnp.pad(a, [(0, t - s) for s, t in zip(a.shape, shape)])


def _vmem_limit_bytes():
    # Generation-aware VMEM budget: leave headroom for Mosaic scratch.
    # v5e/v6e: 128 MiB physical -> ~108 MiB; v7x: 64 MiB physical -> ~54 MiB.
    try:
        cap = int(pltpu.get_tpu_info().vmem_capacity_bytes)
    except Exception:
        cap = 64 * 1024 * 1024
    return int(min(0.85 * cap, 112 * 1024 * 1024))


def processor_forward(x, edge_index, edge_attr, params):
    N, D = x.shape
    E, De = edge_attr.shape
    M = params["we_i"].shape[0]
    DP, DeP = _round_up(D), _round_up(De)
    NP, EP = _round_up(N), _round_up(E)       # row padding -> fully tile-aligned MXU ops

    src, dst = edge_index[0], edge_index[1]
    # TODO(synk): for realistic graph sizes (N~1e4, E~1e5) the dense one-hot
    # incidence cannot fit VMEM; replace with an index-based DMA gather
    # (PrefetchScalarGridSpec + pl.Element) plus a segmented scatter-add.
    gather_i = _pad_to(jax.nn.one_hot(dst, N, dtype=jnp.bfloat16), (EP, NP))   # x_i = x[dst]
    gather_j = _pad_to(jax.nn.one_hot(src, N, dtype=jnp.bfloat16), (EP, NP))   # x_j = x[src]

    # GCN symmetric norm (constant across layers/passes), folded into the
    # pre-transposed scatter incidence. Pad rows/cols stay exactly 0.
    deg = jnp.zeros((N,), jnp.float32).at[dst].add(1.0)
    dis = jnp.where(deg > 0, jax.lax.rsqrt(deg), 0.0)
    norm = dis[src] * dis[dst]                                                 # [E]
    scatter_t = _pad_to((jax.nn.one_hot(dst, N, dtype=jnp.float32)
                         * norm[:, None]).T, (NP, EP)).astype(jnp.bfloat16)    # [NP, EP]

    # Lane-dense (multiple-of-128) feature layout; padded lanes stay exactly 0.
    x_p = _pad_to(x, (NP, DP))
    e_p = _pad_to(edge_attr, (EP, DeP))
    # edge_fn: fuse the two x-projections (shared LHS) along the output axis.
    w_ij = jnp.concatenate([_pad_to(params["we_i"], (M, 2, DP, DeP)),
                            _pad_to(params["we_j"], (M, 2, DP, DeP))], axis=-1)
    w_ee = _pad_to(params["we_e"], (M, 2, DeP, DeP))
    b_e = _pad_to(params["b_e"], (M, 2, DeP))[:, :, None, :]     # [M,2,1,DeP]
    # node_fn: fuse [aggregated | x] into a single K = DeP + DP contraction.
    w_nax = jnp.concatenate([_pad_to(params["wn_a"], (M, 2, DeP, DP)),
                             _pad_to(params["wn_x"], (M, 2, DP, DP))], axis=2)
    b_n = _pad_to(params["b_n"], (M, 2, DP))[:, :, None, :]      # [M,2,1,DP]
    ln_n_g = _pad_to(params["ln_n_g"], (M, 1, DP))
    ln_n_b = _pad_to(params["ln_n_b"], (M, 1, DP))
    ln_e_g = _pad_to(params["ln_e_g"], (M, 1, DeP))
    ln_e_b = _pad_to(params["ln_e_b"], (M, 1, DeP))

    # BlockSpec helpers: "resident" arrays keep a constant block index (DMA'd
    # once, stay in VMEM); "per_layer" arrays are streamed one layer at a time.
    def resident(shape):
        return pl.BlockSpec(shape, lambda m, _n=len(shape): (0,) * _n)

    def per_layer(shape):
        return pl.BlockSpec((1,) + shape, lambda m, _n=len(shape): (m,) + (0,) * _n)

    operands = (x_p, e_p, gather_i, gather_j, scatter_t,
                w_ij, w_ee, b_e, w_nax, b_n, ln_n_g, ln_n_b, ln_e_g, ln_e_b)
    bytes_accessed = sum(int(np.prod(a.shape)) * a.dtype.itemsize for a in operands)
    bytes_accessed += 4 * (NP * DP + EP * DeP)                   # outputs
    flops_pass = (2 * NP * DP * (2 * DeP)        # fused x @ [Wi|Wj]
                  + 2 * 2 * EP * NP * DeP        # two one-hot gathers
                  + 2 * EP * DeP * DeP           # e @ We
                  + 2 * NP * EP * DeP            # normalized scatter-add
                  + 2 * NP * (DeP + DP) * DP)    # fused node update
    cost = pl.CostEstimate(flops=2 * M * flops_pass,
                           transcendentals=M * (NP + EP),
                           bytes_accessed=int(bytes_accessed))

    kernel = functools.partial(gn_layer_kernel, D=D, De=De, DeP=DeP)
    x_out, e_out = pl.pallas_call(
        kernel,
        out_shape=(jax.ShapeDtypeStruct((NP, DP), jnp.float32),
                   jax.ShapeDtypeStruct((EP, DeP), jnp.float32)),
        grid_spec=pltpu.PrefetchScalarGridSpec(
            num_scalar_prefetch=0,
            grid=(M,),
            in_specs=[
                resident((NP, DP)),            # x (initial)
                resident((EP, DeP)),           # edge_attr (initial)
                resident((EP, NP)),            # gather incidence (dst)
                resident((EP, NP)),            # gather incidence (src)
                resident((NP, EP)),            # norm-folded scatter incidence^T
                per_layer((2, DP, 2 * DeP)),   # fused we_i|we_j
                per_layer((2, DeP, DeP)),      # we_e
                per_layer((2, 1, DeP)),        # b_e
                per_layer((2, DeP + DP, DP)),  # fused wn_a;wn_x
                per_layer((2, 1, DP)),         # b_n
                per_layer((1, DP)),            # ln_n gamma
                per_layer((1, DP)),            # ln_n beta
                per_layer((1, DeP)),           # ln_e gamma
                per_layer((1, DeP)),           # ln_e beta
            ],
            out_specs=(resident((NP, DP)), resident((EP, DeP))),
        ),
        compiler_params=pltpu.CompilerParams(
            dimension_semantics=("arbitrary",),
            vmem_limit_bytes=_vmem_limit_bytes()),
        cost_estimate=cost,
    )(*operands)
    return x_out[:N, :D], e_out[:E, :De]


def init_params(key, M, D, De):
    ks = jax.random.split(key, 7)
    s = 0.1
    return {
        # edge_fn W^T split along the concat axis: [x_i | x_j | edge_attr]
        "we_i": s * jax.random.normal(ks[0], (M, 2, D, De), jnp.float32),
        "we_j": s * jax.random.normal(ks[1], (M, 2, D, De), jnp.float32),
        "we_e": s * jax.random.normal(ks[2], (M, 2, De, De), jnp.float32),
        "b_e":  s * jax.random.normal(ks[3], (M, 2, De), jnp.float32),
        # node_fn W^T split along the concat axis: [aggregated | x]
        "wn_a": s * jax.random.normal(ks[4], (M, 2, De, D), jnp.float32),
        "wn_x": s * jax.random.normal(ks[5], (M, 2, D, D), jnp.float32),
        "b_n":  s * jax.random.normal(ks[6], (M, 2, D), jnp.float32),
        # LayerNorm affine params (PyTorch default init)
        "ln_n_g": jnp.ones((M, 1, D), jnp.float32),
        "ln_n_b": jnp.zeros((M, 1, D), jnp.float32),
        "ln_e_g": jnp.ones((M, 1, De), jnp.float32),
        "ln_e_b": jnp.zeros((M, 1, De), jnp.float32),
    }


def reference_forward(x, edge_index, edge_attr, params):
    """Pure-JAX reference of Processor.forward (PyG MessagePassing semantics)."""
    hi = jax.lax.Precision.HIGHEST
    src, dst = edge_index[0], edge_index[1]
    N = x.shape[0]
    De = edge_attr.shape[1]
    M = params["we_i"].shape[0]
    e = edge_attr
    for m in range(M):
        deg = jnp.zeros((N,), jnp.float32).at[dst].add(1.0)
        dis = jnp.where(deg > 0, deg ** -0.5, 0.0)
        norm = dis[src] * dis[dst]
        x_res, e_res = x, e
        for idx in range(2):
            x_i = x[dst]
            x_j = x[src]
            e_new = (jnp.dot(x_i, params["we_i"][m, idx], precision=hi)
                     + jnp.dot(x_j, params["we_j"][m, idx], precision=hi)
                     + jnp.dot(e, params["we_e"][m, idx], precision=hi)
                     + params["b_e"][m, idx])
            msg = e_new * norm[:, None]
            agg = jnp.zeros((N, De), jnp.float32).at[dst].add(msg)
            x_new = (jnp.dot(agg, params["wn_a"][m, idx], precision=hi)
                     + jnp.dot(x, params["wn_x"][m, idx], precision=hi)
                     + params["b_n"][m, idx])
            x = jax.nn.relu(x_new)
            e = jax.nn.relu(e_new)
        x = _layernorm(x, params["ln_n_g"][m, 0], params["ln_n_b"][m, 0]) + x_res
        e = _layernorm(e, params["ln_e_g"][m, 0], params["ln_e_b"][m, 0]) + e_res
    return x, e


if __name__ == "__main__":
    # Small graph: node_in = node_out = 32, edge_in = edge_out = 32
    # (residuals in GN.forward require in == out), N=8 nodes, E=16 edges, M=2.
    N, E, D, De, M = 8, 16, 32, 32, 2
    key = jax.random.PRNGKey(0)
    k_x, k_e, k_src, k_dst, k_p = jax.random.split(key, 5)

    x = jax.random.normal(k_x, (N, D), jnp.float32)
    edge_attr = jax.random.normal(k_e, (E, De), jnp.float32)
    edge_index = jnp.stack([
        jax.random.randint(k_src, (E,), 0, N, dtype=jnp.int32),
        jax.random.randint(k_dst, (E,), 0, N, dtype=jnp.int32),
    ], axis=0)                                                   # [2, E]

    params = init_params(k_p, M, D, De)

    x_out, e_out = jax.jit(processor_forward)(x, edge_index, edge_attr, params)
    jax.block_until_ready((x_out, e_out))

    x_ref, e_ref = reference_forward(x, edge_index, edge_attr, params)

    assert np.allclose(np.asarray(x_out), np.asarray(x_ref), atol=5e-2, rtol=5e-2), \
        "node feature mismatch"
    assert np.allclose(np.asarray(e_out), np.asarray(e_ref), atol=5e-2, rtol=5e-2), \
        "edge feature mismatch"

    print("KERNEL_OK")
</pallas_src>

<mosaic_0001>
module attributes {stable_mosaic.version = 11 : i64} {
  func.func @gn_layer_kernel(%arg0: i32, %arg1: memref<128x128xf32, #tpu.memory_space<vmem>>, %arg2: memref<128x128xf32, #tpu.memory_space<vmem>>, %arg3: memref<128x128xbf16, #tpu.memory_space<vmem>>, %arg4: memref<128x128xbf16, #tpu.memory_space<vmem>>, %arg5: memref<128x128xbf16, #tpu.memory_space<vmem>>, %arg6: memref<1x2x128x256xf32, #tpu.memory_space<vmem>>, %arg7: memref<1x2x128x128xf32, #tpu.memory_space<vmem>>, %arg8: memref<1x2x1x128xf32, #tpu.memory_space<vmem>>, %arg9: memref<1x2x256x128xf32, #tpu.memory_space<vmem>>, %arg10: memref<1x2x1x128xf32, #tpu.memory_space<vmem>>, %arg11: memref<1x1x128xf32, #tpu.memory_space<vmem>>, %arg12: memref<1x1x128xf32, #tpu.memory_space<vmem>>, %arg13: memref<1x1x128xf32, #tpu.memory_space<vmem>>, %arg14: memref<1x1x128xf32, #tpu.memory_space<vmem>>, %arg15: memref<128x128xf32, #tpu.memory_space<vmem>>, %arg16: memref<128x128xf32, #tpu.memory_space<vmem>>) attributes {dimension_semantics = [#tpu.dimension_semantics<arbitrary>], iteration_bounds = array<i64: 2>, scalar_prefetch = 0 : i64, scratch_operands = 0 : i64, tpu.core_type = #tpu.core_type<tc>, window_params = [{pipeline_mode = #tpu.pipeline_mode<synchronous>, transform_indices = @transform_0, window_bounds = array<i64: 128, 128>}, {pipeline_mode = #tpu.pipeline_mode<synchronous>, transform_indices = @transform_1, window_bounds = array<i64: 128, 128>}, {pipeline_mode = #tpu.pipeline_mode<synchronous>, transform_indices = @transform_2, window_bounds = array<i64: 128, 128>}, {pipeline_mode = #tpu.pipeline_mode<synchronous>, transform_indices = @transform_3, window_bounds = array<i64: 128, 128>}, {pipeline_mode = #tpu.pipeline_mode<synchronous>, transform_indices = @transform_4, window_bounds = array<i64: 128, 128>}, {transform_indices = @transform_5, window_bounds = array<i64: 1, 2, 128, 256>}, {transform_indices = @transform_6, window_bounds = array<i64: 1, 2, 128, 128>}, {transform_indices = @transform_7, window_bounds = array<i64: 1, 2, 1, 128>}, {transform_indices = @transform_8, window_bounds = array<i64: 1, 2, 256, 128>}, {transform_indices = @transform_9, window_bounds = array<i64: 1, 2, 1, 128>}, {transform_indices = @transform_10, window_bounds = array<i64: 1, 1, 128>}, {transform_indices = @transform_11, window_bounds = array<i64: 1, 1, 128>}, {transform_indices = @transform_12, window_bounds = array<i64: 1, 1, 128>}, {transform_indices = @transform_13, window_bounds = array<i64: 1, 1, 128>}, {pipeline_mode = #tpu.pipeline_mode<synchronous>, transform_indices = @transform_14, window_bounds = array<i64: 128, 128>}, {pipeline_mode = #tpu.pipeline_mode<synchronous>, transform_indices = @transform_15, window_bounds = array<i64: 128, 128>}]} {
    %c0_i32 = arith.constant 0 : i32
    %0 = arith.cmpi eq, %arg0, %c0_i32 : i32
    %1 = arith.extui %0 : i1 to i32
    %c0_i32_0 = arith.constant 0 : i32
    %2 = arith.cmpi ne, %1, %c0_i32_0 : i32
    scf.if %2 {
      %c0_91 = arith.constant 0 : index
      %c0_92 = arith.constant 0 : index
      %138 = vector.load %arg1[%c0_91, %c0_92] : memref<128x128xf32, #tpu.memory_space<vmem>>, vector<128x128xf32>
      %c0_93 = arith.constant 0 : index
      %c0_94 = arith.constant 0 : index
      %139 = vector.load %arg15[%c0_93, %c0_94] : memref<128x128xf32, #tpu.memory_space<vmem>>, vector<128x128xf32>
      tpu.vector_store %arg15[%c0_93, %c0_94], %138 {strides = array<i32>} : memref<128x128xf32, #tpu.memory_space<vmem>>, vector<128x128xf32>,
      %c0_95 = arith.constant 0 : index
      %c0_96 = arith.constant 0 : index
      %140 = vector.load %arg2[%c0_95, %c0_96] : memref<128x128xf32, #tpu.memory_space<vmem>>, vector<128x128xf32>
      %c0_97 = arith.constant 0 : index
      %c0_98 = arith.constant 0 : index
      %141 = vector.load %arg16[%c0_97, %c0_98] : memref<128x128xf32, #tpu.memory_space<vmem>>, vector<128x128xf32>
      tpu.vector_store %arg16[%c0_97, %c0_98], %140 {strides = array<i32>} : memref<128x128xf32, #tpu.memory_space<vmem>>, vector<128x128xf32>,
    } else {
    }
    %c0 = arith.constant 0 : index
    %c0_1 = arith.constant 0 : index
    %3 = vector.load %arg15[%c0, %c0_1] : memref<128x128xf32, #tpu.memory_space<vmem>>, vector<128x128xf32>
    %c0_2 = arith.constant 0 : index
    %c0_3 = arith.constant 0 : index
    %4 = vector.load %arg16[%c0_2, %c0_3] : memref<128x128xf32, #tpu.memory_space<vmem>>, vector<128x128xf32>
    %c0_4 = arith.constant 0 : index
    %c0_5 = arith.constant 0 : index
    %5 = vector.load %arg3[%c0_4, %c0_5] : memref<128x128xbf16, #tpu.memory_space<vmem>>, vector<128x128xbf16>
    %c0_6 = arith.constant 0 : index
    %c0_7 = arith.constant 0 : index
    %6 = vector.load %arg4[%c0_6, %c0_7] : memref<128x128xbf16, #tpu.memory_space<vmem>>, vector<128x128xbf16>
    %c0_8 = arith.constant 0 : index
    %c0_9 = arith.constant 0 : index
    %7 = vector.load %arg5[%c0_8, %c0_9] : memref<128x128xbf16, #tpu.memory_space<vmem>>, vector<128x128xbf16>
    %8 = tpu.iota {dimensions = array<i32: 1>} : vector<1x128xi32>
    %c32_i32 = arith.constant 32 : i32
    %9 = vector.broadcast %c32_i32 : i32 to vector<1x128xi32>
    %10 = arith.cmpi slt, %8, %9 : vector<1x128xi32>
    %11 = arith.extui %10 : vector<1x128xi1> to vector<1x128xi32>
    %12 = arith.sitofp %11 : vector<1x128xi32> to vector<1x128xf32>
    %13 = tpu.iota {dimensions = array<i32: 1>} : vector<1x128xi32>
    %c32_i32_10 = arith.constant 32 : i32
    %14 = vector.broadcast %c32_i32_10 : i32 to vector<1x128xi32>
    %15 = arith.cmpi slt, %13, %14 : vector<1x128xi32>
    %16 = arith.extui %15 : vector<1x128xi1> to vector<1x128xi32>
    %17 = arith.sitofp %16 : vector<1x128xi32> to vector<1x128xf32>
    %c0_11 = arith.constant 0 : index
    %c0_12 = arith.constant 0 : index
    %c0_13 = arith.constant 0 : index
    %c0_14 = arith.constant 0 : index
    %18 = vector.load %arg6[%c0_11, %c0_12, %c0_13, %c0_14] : memref<1x2x128x256xf32, #tpu.memory_space<vmem>>, vector<1x1x128x256xf32>
    %19 = vector.shape_cast %18 : vector<1x1x128x256xf32> to vector<128x256xf32>
    %cst = arith.constant dense<0.000000e+00> : vector<128x256xf32>
    %20 = tpu.matmul %3, %19, %cst {dimension_numbers = #tpu.dot_dimension_numbers<[1], [0], [0], [1], [0, 0, 1, 1], [], []>} : vector<128x128xf32>, vector<128x256xf32>, vector<128x256xf32> -> vector<128x256xf32>
    %21 = vector.extract_strided_slice %20 {offsets = [0, 0], sizes = [128, 128], strides = [1, 1]} : vector<128x256xf32> to vector<128x128xf32>
    %22 = arith.truncf %21 : vector<128x128xf32> to vector<128x128xbf16>
    %23 = vector.extract_strided_slice %20 {offsets = [0, 128], sizes = [128, 128], strides = [1, 1]} : vector<128x256xf32> to vector<128x128xf32>
    %24 = arith.truncf %23 : vector<128x128xf32> to vector<128x128xbf16>
    %cst_15 = arith.constant dense<0.000000e+00> : vector<128x128xf32>
    %25 = tpu.matmul %5, %22, %cst_15 {dimension_numbers = #tpu.dot_dimension_numbers<[1], [0], [0], [1], [0, 0, 1, 1], [], []>} : vector<128x128xbf16>, vector<128x128xbf16>, vector<128x128xf32> -> vector<128x128xf32>
    %cst_16 = arith.constant dense<0.000000e+00> : vector<128x128xf32>
    %26 = tpu.matmul %6, %24, %cst_16 {dimension_numbers = #tpu.dot_dimension_numbers<[1], [0], [0], [1], [0, 0, 1, 1], [], []>} : vector<128x128xbf16>, vector<128x128xbf16>, vector<128x128xf32> -> vector<128x128xf32>
    %27 = arith.addf %25, %26 : vector<128x128xf32>
    %c0_17 = arith.constant 0 : index
    %c0_18 = arith.constant 0 : index
    %c0_19 = arith.constant 0 : index
    %c0_20 = arith.constant 0 : index
    %28 = vector.load %arg7[%c0_17, %c0_18, %c0_19, %c0_20] : memref<1x2x128x128xf32, #tpu.memory_space<vmem>>, vector<1x1x128x128xf32>
    %29 = vector.shape_cast %28 : vector<1x1x128x128xf32> to vector<128x128xf32>
    %cst_21 = arith.constant dense<0.000000e+00> : vector<128x128xf32>
    %30 = tpu.matmul %4, %29, %cst_21 {dimension_numbers = #tpu.dot_dimension_numbers<[1], [0], [0], [1], [0, 0, 1, 1], [], []>} : vector<128x128xf32>, vector<128x128xf32>, vector<128x128xf32> -> vector<128x128xf32>
    %31 = arith.addf %27, %30 : vector<128x128xf32>
    %c0_22 = arith.constant 0 : index
    %c0_23 = arith.constant 0 : index
    %c0_24 = arith.constant 0 : index
    %c0_25 = arith.constant 0 : index
    %32 = vector.load %arg8[%c0_22, %c0_23, %c0_24, %c0_25] : memref<1x2x1x128xf32, #tpu.memory_space<vmem>>, vector<1x1x1x128xf32>
    %33 = vector.shape_cast %32 : vector<1x1x1x128xf32> to vector<1x128xf32>
    %34 = vector.broadcast %33 : vector<1x128xf32> to vector<128x128xf32>
    %35 = arith.addf %31, %34 : vector<128x128xf32>
    %36 = arith.truncf %35 : vector<128x128xf32> to vector<128x128xbf16>
    %cst_26 = arith.constant dense<0.000000e+00> : vector<128x128xf32>
    %37 = tpu.matmul %7, %36, %cst_26 {dimension_numbers = #tpu.dot_dimension_numbers<[1], [0], [0], [1], [0, 0, 1, 1], [], []>} : vector<128x128xbf16>, vector<128x128xbf16>, vector<128x128xf32> -> vector<128x128xf32>
    %38 = tpu.concatenate %37, %3 in 1 : vector<128x128xf32>, vector<128x128xf32> -> vector<128x256xf32>
    %c0_27 = arith.constant 0 : index
    %c0_28 = arith.constant 0 : index
    %c0_29 = arith.constant 0 : index
    %c0_30 = arith.constant 0 : index
    %39 = vector.load %arg9[%c0_27, %c0_28, %c0_29, %c0_30] : memref<1x2x256x128xf32, #tpu.memory_space<vmem>>, vector<1x1x256x128xf32>
    %40 = vector.shape_cast %39 : vector<1x1x256x128xf32> to vector<256x128xf32>
    %cst_31 = arith.constant dense<0.000000e+00> : vector<128x128xf32>
    %41 = tpu.matmul %38, %40, %cst_31 {dimension_numbers = #tpu.dot_dimension_numbers<[1], [0], [0], [1], [0, 0, 1, 1], [], []>} : vector<128x256xf32>, vector<256x128xf32>, vector<128x128xf32> -> vector<128x128xf32>
    %c0_32 = arith.constant 0 : index
    %c0_33 = arith.constant 0 : index
    %c0_34 = arith.constant 0 : index
    %c0_35 = arith.constant 0 : index
    %42 = vector.load %arg10[%c0_32, %c0_33, %c0_34, %c0_35] : memref<1x2x1x128xf32, #tpu.memory_space<vmem>>, vector<1x1x1x128xf32>
    %43 = vector.shape_cast %42 : vector<1x1x1x128xf32> to vector<1x128xf32>
    %44 = vector.broadcast %43 : vector<1x128xf32> to vector<128x128xf32>
    %45 = arith.addf %41, %44 : vector<128x128xf32>
    %cst_36 = arith.constant 0.000000e+00 : f32
    %46 = vector.broadcast %cst_36 : f32 to vector<128x128xf32>
    %47 = arith.maximumf %45, %46 : vector<128x128xf32>
    %cst_37 = arith.constant 0.000000e+00 : f32
    %48 = vector.broadcast %cst_37 : f32 to vector<128x128xf32>
    %49 = arith.maximumf %35, %48 : vector<128x128xf32>
    %c0_38 = arith.constant 0 : index
    %c1 = arith.constant 1 : index
    %c0_39 = arith.constant 0 : index
    %c0_40 = arith.constant 0 : index
    %50 = vector.load %arg6[%c0_38, %c1, %c0_39, %c0_40] : memref<1x2x128x256xf32, #tpu.memory_space<vmem>>, vector<1x1x128x256xf32>
    %51 = vector.shape_cast %50 : vector<1x1x128x256xf32> to vector<128x256xf32>
    %cst_41 = arith.constant dense<0.000000e+00> : vector<128x256xf32>
    %52 = tpu.matmul %47, %51, %cst_41 {dimension_numbers = #tpu.dot_dimension_numbers<[1], [0], [0], [1], [0, 0, 1, 1], [], []>} : vector<128x128xf32>, vector<128x256xf32>, vector<128x256xf32> -> vector<128x256xf32>
    %53 = vector.extract_strided_slice %52 {offsets = [0, 0], sizes = [128, 128], strides = [1, 1]} : vector<128x256xf32> to vector<128x128xf32>
    %54 = arith.truncf %53 : vector<128x128xf32> to vector<128x128xbf16>
    %55 = vector.extract_strided_slice %52 {offsets = [0, 128], sizes = [128, 128], strides = [1, 1]} : vector<128x256xf32> to vector<128x128xf32>
    %56 = arith.truncf %55 : vector<128x128xf32> to vector<128x128xbf16>
    %cst_42 = arith.constant dense<0.000000e+00> : vector<128x128xf32>
    %57 = tpu.matmul %5, %54, %cst_42 {dimension_numbers = #tpu.dot_dimension_numbers<[1], [0], [0], [1], [0, 0, 1, 1], [], []>} : vector<128x128xbf16>, vector<128x128xbf16>, vector<128x128xf32> -> vector<128x128xf32>
    %cst_43 = arith.constant dense<0.000000e+00> : vector<128x128xf32>
    %58 = tpu.matmul %6, %56, %cst_43 {dimension_numbers = #tpu.dot_dimension_numbers<[1], [0], [0], [1], [0, 0, 1, 1], [], []>} : vector<128x128xbf16>, vector<128x128xbf16>, vector<128x128xf32> -> vector<128x128xf32>
    %59 = arith.addf %57, %58 : vector<128x128xf32>
    %c0_44 = arith.constant 0 : index
    %c1_45 = arith.constant 1 : index
    %c0_46 = arith.constant 0 : index
    %c0_47 = arith.constant 0 : index
    %60 = vector.load %arg7[%c0_44, %c1_45, %c0_46, %c0_47] : memref<1x2x128x128xf32, #tpu.memory_space<vmem>>, vector<1x1x128x128xf32>
    %61 = vector.shape_cast %60 : vector<1x1x128x128xf32> to vector<128x128xf32>
    %cst_48 = arith.constant dense<0.000000e+00> : vector<128x128xf32>
    %62 = tpu.matmul %49, %61, %cst_48 {dimension_numbers = #tpu.dot_dimension_numbers<[1], [0], [0], [1], [0, 0, 1, 1], [], []>} : vector<128x128xf32>, vector<128x128xf32>, vector<128x128xf32> -> vector<128x128xf32>
    %63 = arith.addf %59, %62 : vector<128x128xf32>
    %c0_49 = arith.constant 0 : index
    %c1_50 = arith.constant 1 : index
    %c0_51 = arith.constant 0 : index
    %c0_52 = arith.constant 0 : index
    %64 = vector.load %arg8[%c0_49, %c1_50, %c0_51, %c0_52] : memref<1x2x1x128xf32, #tpu.memory_space<vmem>>, vector<1x1x1x128xf32>
    %65 = vector.shape_cast %64 : vector<1x1x1x128xf32> to vector<1x128xf32>
    %66 = vector.broadcast %65 : vector<1x128xf32> to vector<128x128xf32>
    %67 = arith.addf %63, %66 : vector<128x128xf32>
    %68 = arith.truncf %67 : vector<128x128xf32> to vector<128x128xbf16>
    %cst_53 = arith.constant dense<0.000000e+00> : vector<128x128xf32>
    %69 = tpu.matmul %7, %68, %cst_53 {dimension_numbers = #tpu.dot_dimension_numbers<[1], [0], [0], [1], [0, 0, 1, 1], [], []>} : vector<128x128xbf16>, vector<128x128xbf16>, vector<128x128xf32> -> vector<128x128xf32>
    %70 = tpu.concatenate %69, %47 in 1 : vector<128x128xf32>, vector<128x128xf32> -> vector<128x256xf32>
    %c0_54 = arith.constant 0 : index
    %c1_55 = arith.constant 1 : index
    %c0_56 = arith.constant 0 : index
    %c0_57 = arith.constant 0 : index
    %71 = vector.load %arg9[%c0_54, %c1_55, %c0_56, %c0_57] : memref<1x2x256x128xf32, #tpu.memory_space<vmem>>, vector<1x1x256x128xf32>
    %72 = vector.shape_cast %71 : vector<1x1x256x128xf32> to vector<256x128xf32>
    %cst_58 = arith.constant dense<0.000000e+00> : vector<128x128xf32>
    %73 = tpu.matmul %70, %72, %cst_58 {dimension_numbers = #tpu.dot_dimension_numbers<[1], [0], [0], [1], [0, 0, 1, 1], [], []>} : vector<128x256xf32>, vector<256x128xf32>, vector<128x128xf32> -> vector<128x128xf32>
    %c0_59 = arith.constant 0 : index
    %c1_60 = arith.constant 1 : index
    %c0_61 = arith.constant 0 : index
    %c0_62 = arith.constant 0 : index
    %74 = vector.load %arg10[%c0_59, %c1_60, %c0_61, %c0_62] : memref<1x2x1x128xf32, #tpu.memory_space<vmem>>, vector<1x1x1x128xf32>
    %75 = vector.shape_cast %74 : vector<1x1x1x128xf32> to vector<1x128xf32>
    %76 = vector.broadcast %75 : vector<1x128xf32> to vector<128x128xf32>
    %77 = arith.addf %73, %76 : vector<128x128xf32>
    %cst_63 = arith.constant 0.000000e+00 : f32
    %78 = vector.broadcast %cst_63 : f32 to vector<128x128xf32>
    %79 = arith.maximumf %77, %78 : vector<128x128xf32>
    %cst_64 = arith.constant 0.000000e+00 : f32
    %80 = vector.broadcast %cst_64 : f32 to vector<128x128xf32>
    %81 = arith.maximumf %67, %80 : vector<128x128xf32>
    %c0_65 = arith.constant 0 : index
    %c0_66 = arith.constant 0 : index
    %c0_67 = arith.constant 0 : index
    %82 = vector.load %arg11[%c0_65, %c0_66, %c0_67] : memref<1x1x128xf32, #tpu.memory_space<vmem>>, vector<1x1x128xf32>
    %83 = vector.shape_cast %82 : vector<1x1x128xf32> to vector<1x128xf32>
    %c0_68 = arith.constant 0 : index
    %c0_69 = arith.constant 0 : index
    %c0_70 = arith.constant 0 : index
    %84 = vector.load %arg12[%c0_68, %c0_69, %c0_70] : memref<1x1x128xf32, #tpu.memory_space<vmem>>, vector<1x1x128xf32>
    %85 = vector.shape_cast %84 : vector<1x1x128xf32> to vector<1x128xf32>
    %cst_71 = arith.constant dense<0.000000e+00> : vector<128xf32>
    %86 = vector.multi_reduction <add>, %79, %cst_71 [1] : vector<128x128xf32> to vector<128xf32>
    %87 = vector.shape_cast %86 : vector<128xf32> to vector<128x1xf32>
    %cst_72 = arith.constant 3.125000e-02 : f32
    %88 = vector.broadcast %cst_72 : f32 to vector<128x1xf32>
    %89 = arith.mulf %87, %88 : vector<128x1xf32>
    %90 = vector.broadcast %89 : vector<128x1xf32> to vector<128x128xf32>
    %91 = arith.subf %79, %90 : vector<128x128xf32>
    %92 = vector.broadcast %12 : vector<1x128xf32> to vector<128x128xf32>
    %93 = arith.mulf %91, %92 : vector<128x128xf32>
    %94 = arith.mulf %93, %93 : vector<128x128xf32>
    %cst_73 = arith.constant dense<0.000000e+00> : vector<128xf32>
    %95 = vector.multi_reduction <add>, %94, %cst_73 [1] : vector<128x128xf32> to vector<128xf32>
    %96 = vector.shape_cast %95 : vector<128xf32> to vector<128x1xf32>
    %cst_74 = arith.constant 3.125000e-02 : f32
    %97 = vector.broadcast %cst_74 : f32 to vector<128x1xf32>
    %98 = arith.mulf %96, %97 : vector<128x1xf32>
    %cst_75 = arith.constant 9.99999974E-6 : f32
    %99 = vector.broadcast %cst_75 : f32 to vector<128x1xf32>
    %100 = arith.addf %98, %99 : vector<128x1xf32>
    %101 = math.rsqrt %100 : vector<128x1xf32>
    %102 = vector.broadcast %101 : vector<128x1xf32> to vector<128x128xf32>
    %103 = arith.mulf %93, %102 : vector<128x128xf32>
    %104 = vector.broadcast %83 : vector<1x128xf32> to vector<128x128xf32>
    %105 = arith.mulf %103, %104 : vector<128x128xf32>
    %106 = vector.broadcast %85 : vector<1x128xf32> to vector<128x128xf32>
    %107 = arith.addf %105, %106 : vector<128x128xf32>
    %108 = arith.addf %107, %3 : vector<128x128xf32>
    %c0_76 = arith.constant 0 : index
    %c0_77 = arith.constant 0 : index
    %c0_78 = arith.constant 0 : index
    %109 = vector.load %arg13[%c0_76, %c0_77, %c0_78] : memref<1x1x128xf32, #tpu.memory_space<vmem>>, vector<1x1x128xf32>
    %110 = vector.shape_cast %109 : vector<1x1x128xf32> to vector<1x128xf32>
    %c0_79 = arith.constant 0 : index
    %c0_80 = arith.constant 0 : index
    %c0_81 = arith.constant 0 : index
    %111 = vector.load %arg14[%c0_79, %c0_80, %c0_81] : memref<1x1x128xf32, #tpu.memory_space<vmem>>, vector<1x1x128xf32>
    %112 = vector.shape_cast %111 : vector<1x1x128xf32> to vector<1x128xf32>
    %cst_82 = arith.constant dense<0.000000e+00> : vector<128xf32>
    %113 = vector.multi_reduction <add>, %81, %cst_82 [1] : vector<128x128xf32> to vector<128xf32>
    %114 = vector.shape_cast %113 : vector<128xf32> to vector<128x1xf32>
    %cst_83 = arith.constant 3.125000e-02 : f32
    %115 = vector.broadcast %cst_83 : f32 to vector<128x1xf32>
    %116 = arith.mulf %114, %115 : vector<128x1xf32>
    %117 = vector.broadcast %116 : vector<128x1xf32> to vector<128x128xf32>
    %118 = arith.subf %81, %117 : vector<128x128xf32>
    %119 = vector.broadcast %17 : vector<1x128xf32> to vector<128x128xf32>
    %120 = arith.mulf %118, %119 : vector<128x128xf32>
    %121 = arith.mulf %120, %120 : vector<128x128xf32>
    %cst_84 = arith.constant dense<0.000000e+00> : vector<128xf32>
    %122 = vector.multi_reduction <add>, %121, %cst_84 [1] : vector<128x128xf32> to vector<128xf32>
    %123 = vector.shape_cast %122 : vector<128xf32> to vector<128x1xf32>
    %cst_85 = arith.constant 3.125000e-02 : f32
    %124 = vector.broadcast %cst_85 : f32 to vector<128x1xf32>
    %125 = arith.mulf %123, %124 : vector<128x1xf32>
    %cst_86 = arith.constant 9.99999974E-6 : f32
    %126 = vector.broadcast %cst_86 : f32 to vector<128x1xf32>
    %127 = arith.addf %125, %126 : vector<128x1xf32>
    %128 = math.rsqrt %127 : vector<128x1xf32>
    %129 = vector.broadcast %128 : vector<128x1xf32> to vector<128x128xf32>
    %130 = arith.mulf %120, %129 : vector<128x128xf32>
    %131 = vector.broadcast %110 : vector<1x128xf32> to vector<128x128xf32>
    %132 = arith.mulf %130, %131 : vector<128x128xf32>
    %133 = vector.broadcast %112 : vector<1x128xf32> to vector<128x128xf32>
    %134 = arith.addf %132, %133 : vector<128x128xf32>
    %135 = arith.addf %134, %4 : vector<128x128xf32>
    %c0_87 = arith.constant 0 : index
    %c0_88 = arith.constant 0 : index
    %136 = vector.load %arg15[%c0_87, %c0_88] : memref<128x128xf32, #tpu.memory_space<vmem>>, vector<128x128xf32>
    tpu.vector_store %arg15[%c0_87, %c0_88], %108 {strides = array<i32>} : memref<128x128xf32, #tpu.memory_space<vmem>>, vector<128x128xf32>,
    %c0_89 = arith.constant 0 : index
    %c0_90 = arith.constant 0 : index
    %137 = vector.load %arg16[%c0_89, %c0_90] : memref<128x128xf32, #tpu.memory_space<vmem>>, vector<128x128xf32>
    tpu.vector_store %arg16[%c0_89, %c0_90], %135 {strides = array<i32>} : memref<128x128xf32, #tpu.memory_space<vmem>>, vector<128x128xf32>,
    return
  }
  func.func @transform_0(%arg0: i32) -> (i32, i32) {
    %c0_i32 = arith.constant 0 : i32
    %c0_i32_0 = arith.constant 0 : i32
    %c0_i32_1 = arith.constant 0 : i32
    return %c0_i32, %c0_i32_0 : i32, i32
  }
  func.func @transform_1(%arg0: i32) -> (i32, i32) {
    %c0_i32 = arith.constant 0 : i32
    %c0_i32_0 = arith.constant 0 : i32
    %c0_i32_1 = arith.constant 0 : i32
    return %c0_i32, %c0_i32_0 : i32, i32
  }
  func.func @transform_2(%arg0: i32) -> (i32, i32) {
    %c0_i32 = arith.constant 0 : i32
    %c0_i32_0 = arith.constant 0 : i32
    %c0_i32_1 = arith.constant 0 : i32
    return %c0_i32, %c0_i32_0 : i32, i32
  }
  func.func @transform_3(%arg0: i32) -> (i32, i32) {
    %c0_i32 = arith.constant 0 : i32
    %c0_i32_0 = arith.constant 0 : i32
    %c0_i32_1 = arith.constant 0 : i32
    return %c0_i32, %c0_i32_0 : i32, i32
  }
  func.func @transform_4(%arg0: i32) -> (i32, i32) {
    %c0_i32 = arith.constant 0 : i32
    %c0_i32_0 = arith.constant 0 : i32
    %c0_i32_1 = arith.constant 0 : i32
    return %c0_i32, %c0_i32_0 : i32, i32
  }
  func.func @transform_5(%arg0: i32) -> (i32, i32, i32, i32) {
    %c0_i32 = arith.constant 0 : i32
    %c0_i32_0 = arith.constant 0 : i32
    %c0_i32_1 = arith.constant 0 : i32
    %c0_i32_2 = arith.constant 0 : i32
    return %arg0, %c0_i32, %c0_i32_0, %c0_i32_1 : i32, i32, i32, i32
  }
  func.func @transform_6(%arg0: i32) -> (i32, i32, i32, i32) {
    %c0_i32 = arith.constant 0 : i32
    %c0_i32_0 = arith.constant 0 : i32
    %c0_i32_1 = arith.constant 0 : i32
    %c0_i32_2 = arith.constant 0 : i32
    return %arg0, %c0_i32, %c0_i32_0, %c0_i32_1 : i32, i32, i32, i32
  }
  func.func @transform_7(%arg0: i32) -> (i32, i32, i32, i32) {
    %c0_i32 = arith.constant 0 : i32
    %c0_i32_0 = arith.constant 0 : i32
    %c0_i32_1 = arith.constant 0 : i32
    %c0_i32_2 = arith.constant 0 : i32
    return %arg0, %c0_i32, %c0_i32_0, %c0_i32_1 : i32, i32, i32, i32
  }
  func.func @transform_8(%arg0: i32) -> (i32, i32, i32, i32) {
    %c0_i32 = arith.constant 0 : i32
    %c0_i32_0 = arith.constant 0 : i32
    %c0_i32_1 = arith.constant 0 : i32
    %c0_i32_2 = arith.constant 0 : i32
    return %arg0, %c0_i32, %c0_i32_0, %c0_i32_1 : i32, i32, i32, i32
  }
  func.func @transform_9(%arg0: i32) -> (i32, i32, i32, i32) {
    %c0_i32 = arith.constant 0 : i32
    %c0_i32_0 = arith.constant 0 : i32
    %c0_i32_1 = arith.constant 0 : i32
    %c0_i32_2 = arith.constant 0 : i32
    return %arg0, %c0_i32, %c0_i32_0, %c0_i32_1 : i32, i32, i32, i32
  }
  func.func @transform_10(%arg0: i32) -> (i32, i32, i32) {
    %c0_i32 = arith.constant 0 : i32
    %c0_i32_0 = arith.constant 0 : i32
    %c0_i32_1 = arith.constant 0 : i32
    return %arg0, %c0_i32, %c0_i32_0 : i32, i32, i32
  }
  func.func @transform_11(%arg0: i32) -> (i32, i32, i32) {
    %c0_i32 = arith.constant 0 : i32
    %c0_i32_0 = arith.constant 0 : i32
    %c0_i32_1 = arith.constant 0 : i32
    return %arg0, %c0_i32, %c0_i32_0 : i32, i32, i32
  }
  func.func @transform_12(%arg0: i32) -> (i32, i32, i32) {
    %c0_i32 = arith.constant 0 : i32
    %c0_i32_0 = arith.constant 0 : i32
    %c0_i32_1 = arith.constant 0 : i32
    return %arg0, %c0_i32, %c0_i32_0 : i32, i32, i32
  }
  func.func @transform_13(%arg0: i32) -> (i32, i32, i32) {
    %c0_i32 = arith.constant 0 : i32
    %c0_i32_0 = arith.constant 0 : i32
    %c0_i32_1 = arith.constant 0 : i32
    return %arg0, %c0_i32, %c0_i32_0 : i32, i32, i32
  }
  func.func @transform_14(%arg0: i32) -> (i32, i32) {
    %c0_i32 = arith.constant 0 : i32
    %c0_i32_0 = arith.constant 0 : i32
    %c0_i32_1 = arith.constant 0 : i32
    return %c0_i32, %c0_i32_0 : i32, i32
  }
  func.func @transform_15(%arg0: i32) -> (i32, i32) {
    %c0_i32 = arith.constant 0 : i32
    %c0_i32_0 = arith.constant 0 : i32
    %c0_i32_1 = arith.constant 0 : i32
    return %c0_i32, %c0_i32_0 : i32, i32
  }
}

</mosaic_0001>

<llo_original>
// kernel: mul.1
$region0: #{mul.1}
  #allocation0 [shape = 's32[1]{0}', space=sflag, size = 0x4, scoped, tag = 'scoped memory for mul.1']
  %s0 = inlined_call_operand.vmem [shape: f32[16], index: 0, kind: input, shape index: {}]
  %s1 = inlined_call_operand.vmem [shape: f32[16], index: 1, kind: input, shape index: {}]
  %s2 = inlined_call_operand.vmem [shape: bf16[16], index: 2, kind: output, shape index: {}]
  %v3 = vld [vmem:[%s0] sm:$0x1]
  %v4 = vld [vmem:[%s1] sm:$0x1]
  %5 = xla_tuple %v3, %v4
  %6 = xla_tuple %5
  %v7 = vmul.f32 %v3, %v4
  %8 = xla_tuple %v7
  %v9 = vpack.c.bf16 0.0, %v7
  %10 = vst [vmem:[%s2] sm:$0x1] %v9

// kernel: processor_forward.1
$region0: #{processor_forward.1}
  #allocation0 [shape = 'u32[]', space=smem, size = 0x4, offset = 0x4, fixed_abs, tag = 'smem constant byte address 0x4 - core index']
  #allocation1 [shape = 'u32[72,128]{1,0:T(1,128)}', space=vmem, size = 0x9000, scoped, tag = 'internal scratch']
  %s0 = inlined_call_operand.vmem [shape: f32[128,128], index: 0, kind: input, shape index: {}]
  %s1 = inlined_call_operand.vmem [shape: f32[128,128], index: 1, kind: input, shape index: {}]
  %s2 = inlined_call_operand.vmem [shape: bf16[128,128], index: 2, kind: input, shape index: {}]
  %s3 = inlined_call_operand.vmem [shape: bf16[128,128], index: 3, kind: input, shape index: {}]
  %s4 = inlined_call_operand.vmem [shape: bf16[128,128], index: 4, kind: input, shape index: {}]
  %s5 = inlined_call_operand.vmem [shape: f32[2,2,128,256], index: 5, kind: input, shape index: {}]
  %s6 = inlined_call_operand.vmem [shape: f32[2,2,128,128], index: 6, kind: input, shape index: {}]
  %s7 = inlined_call_operand.vmem [shape: f32[2,2,1,128], index: 7, kind: input, shape index: {}]
  %s8 = inlined_call_operand.vmem [shape: f32[2,2,256,128], index: 8, kind: input, shape index: {}]
  %s9 = inlined_call_operand.vmem [shape: f32[2,2,1,128], index: 9, kind: input, shape index: {}]
  %s10 = inlined_call_operand.vmem [shape: f32[2,1,128], index: 10, kind: input, shape index: {}]
  %s11 = inlined_call_operand.vmem [shape: f32[2,1,128], index: 11, kind: input, shape index: {}]
  %s12 = inlined_call_operand.vmem [shape: f32[2,1,128], index: 12, kind: input, shape index: {}]
  %s13 = inlined_call_operand.vmem [shape: f32[2,1,128], index: 13, kind: input, shape index: {}]
  %s14 = inlined_call_operand.vmem [shape: f32[128,128], index: 14, kind: output, shape index: {0}]
  %s15 = inlined_call_operand.vmem [shape: f32[128,128], index: 15, kind: output, shape index: {1}]
  %16 = xla_tuple %s14, %s15
  %s17 = sld [smem:[#allocation0]]
  $region101: #{processor_forward.1} parent=0
    _
  %s19 = ssub.s32 1, %s17
  %s20 = scalar_select 0, %s19, %s17
  loop: start=0, step=1, limit=4
  $region2: #{processor_forward.1} parent=0 // loop_pre_header
    _
  $region3: #{processor_forward.1} parent=0 // loop_header
    %s22 = sphi 0, %s26
    %p23 = scmp.ge.s32.totalorder %s22, 4
    %s30 = sphi 0, %s30
    %s32 = sphi 0, %s30
    %s33 = sphi 0, %s32
    %s47 = sphi 0, %s33
    %s51 = sphi 0, %s51
    %s53 = sphi 0, %s51
    %s54 = sphi 0, %s53
    %s68 = sphi 0, %s54
    %s72 = sphi 0, %s72
    %s74 = sphi 0, %s72
    %s75 = sphi 0, %s74
    %s89 = sphi 0, %s75
    %s93 = sphi 0, %s93
    %s95 = sphi 0, %s93
    %s96 = sphi 0, %s95
    %s110 = sphi 0, %s96
    %s114 = sphi 0, %s114
    %s116 = sphi 0, %s114
    %s117 = sphi 0, %s116
    %s131 = sphi 0, %s117
    %s137 = sphi 0, %s139
    %s140 = sphi 0, %s137
    %s141 = sphi 0, %s140
    %s157 = sphi 0, %s141
    %s163 = sphi 0, %s165
    %s166 = sphi 0, %s163
    %s167 = sphi 0, %s166
    %s183 = sphi 0, %s167
    %s189 = sphi 0, %s191
    %s192 = sphi 0, %s189
    %s193 = sphi 0, %s192
    %s209 = sphi 0, %s193
    %s215 = sphi 0, %s217
    %s218 = sphi 0, %s215
    %s219 = sphi 0, %s218
    %s235 = sphi 0, %s219
    %s241 = sphi 0, %s243
    %s244 = sphi 0, %s241
    %s245 = sphi 0, %s244
    %s261 = sphi 0, %s245
    %s267 = sphi 0, %s269
    %s270 = sphi 0, %s267
    %s271 = sphi 0, %s270
    %s287 = sphi 0, %s271
    %s293 = sphi 0, %s295
    %s296 = sphi 0, %s293
    %s297 = sphi 0, %s296
    %s313 = sphi 0, %s297
    %s319 = sphi 0, %s321
    %s322 = sphi 0, %s319
    %s323 = sphi 0, %s322
    %s339 = sphi 0, %s323
    %s345 = sphi 0, %s347
    %s348 = sphi 0, %s345
    %s349 = sphi 0, %s348
    %s365 = sphi 0, %s349
    %s369 = sphi 0, %s369
    %s371 = sphi 0, %s369
    %s372 = sphi 0, %s371
    %s386 = sphi 0, %s372
    %s390 = sphi 0, %s390
    %s392 = sphi 0, %s390
    %s393 = sphi 0, %s392
    %s407 = sphi 0, %s393
  $region4: #{processor_forward.1} parent=0 // loop_header_branch
    %25 = sbr.rel (%p23) target = $region8
  $region5: #{processor_forward.1} parent=0 // loop_body
    %s27 = ssub.s32 %s22, 1
    %s28 = ssub.s32 %s22, 2
    %s29 = sadd.s32 %s22, 1
    %s31 = sadd.s32 %s30, 1
    %p34 = scmp.eq.s32.totalorder %s22, 1
    %p35 = scmp.ne.s32.totalorder %s30, %s32
    %p36 = scmp.eq.s32.totalorder %s22, 0
    %p37 = por %p35, %p36
    %p38 = scmp.ne.s32.totalorder %s30, %s32
    %p39 = scmp.eq.s32.totalorder %s27, 1
    %p40 = por %p38, %p39
    %p41 = scmp.ne.s32.totalorder %s32, %s33
    %p42 = scmp.eq.s32.totalorder %s27, 0
    %p43 = por %p41, %p42
    %p44 = scmp.ne.s32.totalorder %s32, %s33
    %p45 = scmp.eq.s32.totalorder %s28, 1
    %p46 = por %p44, %p45
    %p48 = scmp.ne.s32.totalorder %s33, %s47
    %p49 = scmp.eq.s32.totalorder %s28, 0
    %p50 = por %p48, %p49
    %s52 = sadd.s32 %s51, 1
    %p55 = scmp.eq.s32.totalorder %s22, 1
    %p56 = scmp.ne.s32.totalorder %s51, %s53
    %p57 = scmp.eq.s32.totalorder %s22, 0
    %p58 = por %p56, %p57
    %p59 = scmp.ne.s32.totalorder %s51, %s53
    %p60 = scmp.eq.s32.totalorder %s27, 1
    %p61 = por %p59, %p60
    %p62 = scmp.ne.s32.totalorder %s53, %s54
    %p63 = scmp.eq.s32.totalorder %s27, 0
    %p64 = por %p62, %p63
    %p65 = scmp.ne.s32.totalorder %s53, %s54
    %p66 = scmp.eq.s32.totalorder %s28, 1
    %p67 = por %p65, %p66
    %p69 = scmp.ne.s32.totalorder %s54, %s68
    %p70 = scmp.eq.s32.totalorder %s28, 0
    %p71 = por %p69, %p70
    %s73 = sadd.s32 %s72, 1
    %p76 = scmp.eq.s32.totalorder %s22, 1
    %p77 = scmp.ne.s32.totalorder %s72, %s74
    %p78 = scmp.eq.s32.totalorder %s22, 0
    %p79 = por %p77, %p78
    %p80 = scmp.ne.s32.totalorder %s72, %s74
    %p81 = scmp.eq.s32.totalorder %s27, 1
    %p82 = por %p80, %p81
    %p83 = scmp.ne.s32.totalorder %s74, %s75
    %p84 = scmp.eq.s32.totalorder %s27, 0
    %p85 = por %p83, %p84
    %p86 = scmp.ne.s32.totalorder %s74, %s75
    %p87 = scmp.eq.s32.totalorder %s28, 1
    %p88 = por %p86, %p87
    %p90 = scmp.ne.s32.totalorder %s75, %s89
    %p91 = scmp.eq.s32.totalorder %s28, 0
    %p92 = por %p90, %p91
    %s94 = sadd.s32 %s93, 1
    %p97 = scmp.eq.s32.totalorder %s22, 1
    %p98 = scmp.ne.s32.totalorder %s93, %s95
    %p99 = scmp.eq.s32.totalorder %s22, 0
    %p100 = por %p98, %p99
    %p101 = scmp.ne.s32.totalorder %s93, %s95
    %p102 = scmp.eq.s32.totalorder %s27, 1
    %p103 = por %p101, %p102
    %p104 = scmp.ne.s32.totalorder %s95, %s96
    %p105 = scmp.eq.s32.totalorder %s27, 0
    %p106 = por %p104, %p105
    %p107 = scmp.ne.s32.totalorder %s95, %s96
    %p108 = scmp.eq.s32.totalorder %s28, 1
    %p109 = por %p107, %p108
    %p111 = scmp.ne.s32.totalorder %s96, %s110
    %p112 = scmp.eq.s32.totalorder %s28, 0
    %p113 = por %p111, %p112
    %s115 = sadd.s32 %s114, 1
    %p118 = scmp.eq.s32.totalorder %s22, 1
    %p119 = scmp.ne.s32.totalorder %s114, %s116
    %p120 = scmp.eq.s32.totalorder %s22, 0
    %p121 = por %p119, %p120
    %p122 = scmp.ne.s32.totalorder %s114, %s116
    %p123 = scmp.eq.s32.totalorder %s27, 1
    %p124 = por %p122, %p123
    %p125 = scmp.ne.s32.totalorder %s116, %s117
    %p126 = scmp.eq.s32.totalorder %s27, 0
    %p127 = por %p125, %p126
    %p128 = scmp.ne.s32.totalorder %s116, %s117
    %p129 = scmp.eq.s32.totalorder %s28, 1
    %p130 = por %p128, %p129
    %p132 = scmp.ne.s32.totalorder %s117, %s131
    %p133 = scmp.eq.s32.totalorder %s28, 0
    %p134 = por %p132, %p133
    %s135 = ssub.s32 %s22, %s29
    %p136 = scmp.eq.s32.totalorder %s135, 0
    %s138 = sadd.s32 %s137, 1
    %s139 = scalar_select %p136, %s137, %s138
    %p142 = pneg %p136
    %p143 = scmp.eq.s32.totalorder %s22, 1
    %p144 = por %p142, %p143
    %p145 = scmp.ne.s32.totalorder %s137, %s140
    %p146 = scmp.eq.s32.totalorder %s22, 0
    %p147 = por %p145, %p146
    %p148 = scmp.ne.s32.totalorder %s137, %s140
    %p149 = scmp.eq.s32.totalorder %s27, 1
    %p150 = por %p148, %p149
    %p151 = scmp.ne.s32.totalorder %s140, %s141
    %p152 = scmp.eq.s32.totalorder %s27, 0
    %p153 = por %p151, %p152
    %p154 = scmp.ne.s32.totalorder %s140, %s141
    %p155 = scmp.eq.s32.totalorder %s28, 1
    %p156 = por %p154, %p155
    %p158 = scmp.ne.s32.totalorder %s141, %s157
    %p159 = scmp.eq.s32.totalorder %s28, 0
    %p160 = por %p158, %p159
    %s161 = ssub.s32 %s22, %s29
    %p162 = scmp.eq.s32.totalorder %s161, 0
    %s164 = sadd.s32 %s163, 1
    %s165 = scalar_select %p162, %s163, %s164
    %p168 = pneg %p162
    %p169 = scmp.eq.s32.totalorder %s22, 1
    %p170 = por %p168, %p169
    %p171 = scmp.ne.s32.totalorder %s163, %s166
    %p172 = scmp.eq.s32.totalorder %s22, 0
    %p173 = por %p171, %p172
    %p174 = scmp.ne.s32.totalorder %s163, %s166
    %p175 = scmp.eq.s32.totalorder %s27, 1
    %p176 = por %p174, %p175
    %p177 = scmp.ne.s32.totalorder %s166, %s167
    %p178 = scmp.eq.s32.totalorder %s27, 0
    %p179 = por %p177, %p178
    %p180 = scmp.ne.s32.totalorder %s166, %s167
    %p181 = scmp.eq.s32.totalorder %s28, 1
    %p182 = por %p180, %p181
    %p184 = scmp.ne.s32.totalorder %s167, %s183
    %p185 = scmp.eq.s32.totalorder %s28, 0
    %p186 = por %p184, %p185
    %s187 = ssub.s32 %s22, %s29
    %p188 = scmp.eq.s32.totalorder %s187, 0
    %s190 = sadd.s32 %s189, 1
    %s191 = scalar_select %p188, %s189, %s190
    %p194 = pneg %p188
    %p195 = scmp.eq.s32.totalorder %s22, 1
    %p196 = por %p194, %p195
    %p197 = scmp.ne.s32.totalorder %s189, %s192
    %p198 = scmp.eq.s32.totalorder %s22, 0
    %p199 = por %p197, %p198
    %p200 = scmp.ne.s32.totalorder %s189, %s192
    %p201 = scmp.eq.s32.totalorder %s27, 1
    %p202 = por %p200, %p201
    %p203 = scmp.ne.s32.totalorder %s192, %s193
    %p204 = scmp.eq.s32.totalorder %s27, 0
    %p205 = por %p203, %p204
    %p206 = scmp.ne.s32.totalorder %s192, %s193
    %p207 = scmp.eq.s32.totalorder %s28, 1
    %p208 = por %p206, %p207
    %p210 = scmp.ne.s32.totalorder %s193, %s209
    %p211 = scmp.eq.s32.totalorder %s28, 0
    %p212 = por %p210, %p211
    %s213 = ssub.s32 %s22, %s29
    %p214 = scmp.eq.s32.totalorder %s213, 0
    %s216 = sadd.s32 %s215, 1
    %s217 = scalar_select %p214, %s215, %s216
    %p220 = pneg %p214
    %p221 = scmp.eq.s32.totalorder %s22, 1
    %p222 = por %p220, %p221
    %p223 = scmp.ne.s32.totalorder %s215, %s218
    %p224 = scmp.eq.s32.totalorder %s22, 0
    %p225 = por %p223, %p224
    %p226 = scmp.ne.s32.totalorder %s215, %s218
    %p227 = scmp.eq.s32.totalorder %s27, 1
    %p228 = por %p226, %p227
    %p229 = scmp.ne.s32.totalorder %s218, %s219
    %p230 = scmp.eq.s32.totalorder %s27, 0
    %p231 = por %p229, %p230
    %p232 = scmp.ne.s32.totalorder %s218, %s219
    %p233 = scmp.eq.s32.totalorder %s28, 1
    %p234 = por %p232, %p233
    %p236 = scmp.ne.s32.totalorder %s219, %s235
    %p237 = scmp.eq.s32.totalorder %s28, 0
    %p238 = por %p236, %p237
    %s239 = ssub.s32 %s22, %s29
    %p240 = scmp.eq.s32.totalorder %s239, 0
    %s242 = sadd.s32 %s241, 1
    %s243 = scalar_select %p240, %s241, %s242
    %p246 = pneg %p240
    %p247 = scmp.eq.s32.totalorder %s22, 1
    %p248 = por %p246, %p247
    %p249 = scmp.ne.s32.totalorder %s241, %s244
    %p250 = scmp.eq.s32.totalorder %s22, 0
    %p251 = por %p249, %p250
    %p252 = scmp.ne.s32.totalorder %s241, %s244
    %p253 = scmp.eq.s32.totalorder %s27, 1
    %p254 = por %p252, %p253
    %p255 = scmp.ne.s32.totalorder %s244, %s245
    %p256 = scmp.eq.s32.totalorder %s27, 0
    %p257 = por %p255, %p256
    %p258 = scmp.ne.s32.totalorder %s244, %s245
    %p259 = scmp.eq.s32.totalorder %s28, 1
    %p260 = por %p258, %p259
    %p262 = scmp.ne.s32.totalorder %s245, %s261
    %p263 = scmp.eq.s32.totalorder %s28, 0
    %p264 = por %p262, %p263
    %s265 = ssub.s32 %s22, %s29
    %p266 = scmp.eq.s32.totalorder %s265, 0
    %s268 = sadd.s32 %s267, 1
    %s269 = scalar_select %p266, %s267, %s268
    %p272 = pneg %p266
    %p273 = scmp.eq.s32.totalorder %s22, 1
    %p274 = por %p272, %p273
    %p275 = scmp.ne.s32.totalorder %s267, %s270
    %p276 = scmp.eq.s32.totalorder %s22, 0
    %p277 = por %p275, %p276
    %p278 = scmp.ne.s32.totalorder %s267, %s270
    %p279 = scmp.eq.s32.totalorder %s27, 1
    %p280 = por %p278, %p279
    %p281 = scmp.ne.s32.totalorder %s270, %s271
    %p282 = scmp.eq.s32.totalorder %s27, 0
    %p283 = por %p281, %p282
    %p284 = scmp.ne.s32.totalorder %s270, %s271
    %p285 = scmp.eq.s32.totalorder %s28, 1
    %p286 = por %p284, %p285
    %p288 = scmp.ne.s32.totalorder %s271, %s287
    %p289 = scmp.eq.s32.totalorder %s28, 0
    %p290 = por %p288, %p289
    %s291 = ssub.s32 %s22, %s29
    %p292 = scmp.eq.s32.totalorder %s291, 0
    %s294 = sadd.s32 %s293, 1
    %s295 = scalar_select %p292, %s293, %s294
    %p298 = pneg %p292
    %p299 = scmp.eq.s32.totalorder %s22, 1
    %p300 = por %p298, %p299
    %p301 = scmp.ne.s32.totalorder %s293, %s296
    %p302 = scmp.eq.s32.totalorder %s22, 0
    %p303 = por %p301, %p302
    %p304 = scmp.ne.s32.totalorder %s293, %s296
    %p305 = scmp.eq.s32.totalorder %s27, 1
    %p306 = por %p304, %p305
    %p307 = scmp.ne.s32.totalorder %s296, %s297
    %p308 = scmp.eq.s32.totalorder %s27, 0
    %p309 = por %p307, %p308
    %p310 = scmp.ne.s32.totalorder %s296, %s297
    %p311 = scmp.eq.s32.totalorder %s28, 1
    %p312 = por %p310, %p311
    %p314 = scmp.ne.s32.totalorder %s297, %s313
    %p315 = scmp.eq.s32.totalorder %s28, 0
    %p316 = por %p314, %p315
    %s317 = ssub.s32 %s22, %s29
    %p318 = scmp.eq.s32.totalorder %s317, 0
    %s320 = sadd.s32 %s319, 1
    %s321 = scalar_select %p318, %s319, %s320
    %p324 = pneg %p318
    %p325 = scmp.eq.s32.totalorder %s22, 1
    %p326 = por %p324, %p325
    %p327 = scmp.ne.s32.totalorder %s319, %s322
    %p328 = scmp.eq.s32.totalorder %s22, 0
    %p329 = por %p327, %p328
    %p330 = scmp.ne.s32.totalorder %s319, %s322
    %p331 = scmp.eq.s32.totalorder %s27, 1
    %p332 = por %p330, %p331
    %p333 = scmp.ne.s32.totalorder %s322, %s323
    %p334 = scmp.eq.s32.totalorder %s27, 0
    %p335 = por %p333, %p334
    %p336 = scmp.ne.s32.totalorder %s322, %s323
    %p337 = scmp.eq.s32.totalorder %s28, 1
    %p338 = por %p336, %p337
    %p340 = scmp.ne.s32.totalorder %s323, %s339
    %p341 = scmp.eq.s32.totalorder %s28, 0
    %p342 = por %p340, %p341
    %s343 = ssub.s32 %s22, %s29
    %p344 = scmp.eq.s32.totalorder %s343, 0
    %s346 = sadd.s32 %s345, 1
    %s347 = scalar_select %p344, %s345, %s346
    %p350 = pneg %p344
    %p351 = scmp.eq.s32.totalorder %s22, 1
    %p352 = por %p350, %p351
    %p353 = scmp.ne.s32.totalorder %s345, %s348
    %p354 = scmp.eq.s32.totalorder %s22, 0
    %p355 = por %p353, %p354
    %p356 = scmp.ne.s32.totalorder %s345, %s348
    %p357 = scmp.eq.s32.totalorder %s27, 1
    %p358 = por %p356, %p357
    %p359 = scmp.ne.s32.totalorder %s348, %s349
    %p360 = scmp.eq.s32.totalorder %s27, 0
    %p361 = por %p359, %p360
    %p362 = scmp.ne.s32.totalorder %s348, %s349
    %p363 = scmp.eq.s32.totalorder %s28, 1
    %p364 = por %p362, %p363
    %p366 = scmp.ne.s32.totalorder %s349, %s365
    %p367 = scmp.eq.s32.totalorder %s28, 0
    %p368 = por %p366, %p367
    %s370 = sadd.s32 %s369, 1
    %p373 = scmp.eq.s32.totalorder %s22, 1
    %p374 = scmp.ne.s32.totalorder %s369, %s371
    %p375 = scmp.eq.s32.totalorder %s22, 0
    %p376 = por %p374, %p375
    %p377 = scmp.ne.s32.totalorder %s369, %s371
    %p378 = scmp.eq.s32.totalorder %s27, 1
    %p379 = por %p377, %p378
    %p380 = scmp.ne.s32.totalorder %s371, %s372
    %p381 = scmp.eq.s32.totalorder %s27, 0
    %p382 = por %p380, %p381
    %p383 = scmp.ne.s32.totalorder %s371, %s372
    %p384 = scmp.eq.s32.totalorder %s28, 1
    %p385 = por %p383, %p384
    %p387 = scmp.ne.s32.totalorder %s372, %s386
    %p388 = scmp.eq.s32.totalorder %s28, 0
    %p389 = por %p387, %p388
    %s391 = sadd.s32 %s390, 1
    %p394 = scmp.eq.s32.totalorder %s22, 1
    %p395 = scmp.ne.s32.totalorder %s390, %s392
    %p396 = scmp.eq.s32.totalorder %s22, 0
    %p397 = por %p395, %p396
    %p398 = scmp.ne.s32.totalorder %s390, %s392
    %p399 = scmp.eq.s32.totalorder %s27, 1
    %p400 = por %p398, %p399
    %p401 = scmp.ne.s32.totalorder %s392, %s393
    %p402 = scmp.eq.s32.totalorder %s27, 0
    %p403 = por %p401, %p402
    %p404 = scmp.ne.s32.totalorder %s392, %s393
    %p405 = scmp.eq.s32.totalorder %s28, 1
    %p406 = por %p404, %p405
    %p408 = scmp.ne.s32.totalorder %s393, %s407
    %p409 = scmp.eq.s32.totalorder %s28, 0
    %p410 = por %p408, %p409
    %p411 = scmp.le.s32.totalorder 1, %s22
    %p412 = scmp.lt.s32.totalorder %s22, 3
    %p413 = pnand %p411, %p412
    %p414 = pneg %p413
    // Predicated region
    $region9: #{processor_forward.1} parent=5 // pred_check
      _
    $region10: #{processor_forward.1} parent=5 // pred_check_branch
      %416 = sbr.rel (%p413) target = $region12
    $region11: #{processor_forward.1} parent=5 // pred_region
      %s417 = ssub.s32 %s22, 1
      // Predicated region
      $region13: #{processor_forward.1} parent=11 // pred_check
        %p418 = pneg %p43
      $region14: #{processor_forward.1} parent=11 // pred_check_branch
        %420 = sbr.rel (%p418) target = $region16
      $region15: #{processor_forward.1} parent=11 // pred_region
        _
      $region16: #{processor_forward.1} parent=11 // pred_fallthru
        _
      // Predicated region
      $region17: #{processor_forward.1} parent=11 // pred_check
        %p421 = pneg %p64
      $region18: #{processor_forward.1} parent=11 // pred_check_branch
        %423 = sbr.rel (%p421) target = $region20
      $region19: #{processor_forward.1} parent=11 // pred_region
        _
      $region20: #{processor_forward.1} parent=11 // pred_fallthru
        _
      // Predicated region
      $region21: #{processor_forward.1} parent=11 // pred_check
        %p424 = pneg %p85
      $region22: #{processor_forward.1} parent=11 // pred_check_branch
        %426 = sbr.rel (%p424) target = $region24
      $region23: #{processor_forward.1} parent=11 // pred_region
        _
      $region24: #{processor_forward.1} parent=11 // pred_fallthru
        _
      // Predicated region
      $region25: #{processor_forward.1} parent=11 // pred_check
        %p427 = pneg %p106
      $region26: #{processor_forward.1} parent=11 // pred_check_branch
        %429 = sbr.rel (%p427) target = $region28
      $region27: #{processor_forward.1} parent=11 // pred_region
        _
      $region28: #{processor_forward.1} parent=11 // pred_fallthru
        _
      // Predicated region
      $region29: #{processor_forward.1} parent=11 // pred_check
        %p430 = pneg %p127
      $region30: #{processor_forward.1} parent=11 // pred_check_branch
        %432 = sbr.rel (%p430) target = $region32
      $region31: #{processor_forward.1} parent=11 // pred_region
        _
      $region32: #{processor_forward.1} parent=11 // pred_fallthru
        _
    $region12: #{processor_forward.1} parent=5 // pred_fallthru
      _
    %p433 = scmp.lt.s32.totalorder %s22, 2
    // Predicated region
    $region33: #{processor_forward.1} parent=5 // pred_check
      %p434 = pneg %p433
    $region34: #{processor_forward.1} parent=5 // pred_check_branch
      %436 = sbr.rel (%p434) target = $region36
    $region35: #{processor_forward.1} parent=5 // pred_region
      // Predicated region
      $region37: #{processor_forward.1} parent=35 // pred_check
        %p437 = pneg %p147
      $region38: #{processor_forward.1} parent=35 // pred_check_branch
        %439 = sbr.rel (%p437) target = $region40
      $region39: #{processor_forward.1} parent=35 // pred_region
        %p440 = scmp.lt.s32.totalorder %s22, 1
        %s441 = scalar_select %p440, %s22, 1
        %s442 = smul.addr %s441, 64
        %s443 = smul.addr %s442, 8
        %s444 = scalar_lea.vmem %s5, %s443
      $region40: #{processor_forward.1} parent=35 // pred_fallthru
        _
      // Predicated region
      $region41: #{processor_forward.1} parent=35 // pred_check
        %p445 = pneg %p173
      $region42: #{processor_forward.1} parent=35 // pred_check_branch
        %447 = sbr.rel (%p445) target = $region44
      $region43: #{processor_forward.1} parent=35 // pred_region
        %p448 = scmp.lt.s32.totalorder %s22, 1
        %s449 = scalar_select %p448, %s22, 1
        %s450 = smul.addr %s449, 32
        %s451 = smul.addr %s450, 8
        %s452 = scalar_lea.vmem %s6, %s451
      $region44: #{processor_forward.1} parent=35 // pred_fallthru
        _
      // Predicated region
      $region45: #{processor_forward.1} parent=35 // pred_check
        %p453 = pneg %p199
      $region46: #{processor_forward.1} parent=35 // pred_check_branch
        %455 = sbr.rel (%p453) target = $region48
      $region47: #{processor_forward.1} parent=35 // pred_region
        %p456 = scmp.lt.s32.totalorder %s22, 1
        %s457 = scalar_select %p456, %s22, 1
        %s458 = smul.addr %s457, 2
        %s459 = scalar_lea.vmem %s7, %s458
      $region48: #{processor_forward.1} parent=35 // pred_fallthru
        _
      // Predicated region
      $region49: #{processor_forward.1} parent=35 // pred_check
        %p460 = pneg %p225
      $region50: #{processor_forward.1} parent=35 // pred_check_branch
        %462 = sbr.rel (%p460) target = $region52
      $region51: #{processor_forward.1} parent=35 // pred_region
        %p463 = scmp.lt.s32.totalorder %s22, 1
        %s464 = scalar_select %p463, %s22, 1
        %s465 = smul.addr %s464, 64
        %s466 = smul.addr %s465, 8
        %s467 = scalar_lea.vmem %s8, %s466
      $region52: #{processor_forward.1} parent=35 // pred_fallthru
        _
      // Predicated region
      $region53: #{processor_forward.1} parent=35 // pred_check
        %p468 = pneg %p251
      $region54: #{processor_forward.1} parent=35 // pred_check_branch
        %470 = sbr.rel (%p468) target = $region56
      $region55: #{processor_forward.1} parent=35 // pred_region
        %p471 = scmp.lt.s32.totalorder %s22, 1
        %s472 = scalar_select %p471, %s22, 1
        %s473 = smul.addr %s472, 2
        %s474 = scalar_lea.vmem %s9, %s473
      $region56: #{processor_forward.1} parent=35 // pred_fallthru
        _
      // Predicated region
      $region57: #{processor_forward.1} parent=35 // pred_check
        %p475 = pneg %p277
      $region58: #{processor_forward.1} parent=35 // pred_check_branch
        %477 = sbr.rel (%p475) target = $region60
      $region59: #{processor_forward.1} parent=35 // pred_region
        %p478 = scmp.lt.s32.totalorder %s22, 1
        %s479 = scalar_select %p478, %s22, 1
        %s480 = scalar_lea.vmem %s10, %s479
      $region60: #{processor_forward.1} parent=35 // pred_fallthru
        _
      // Predicated region
      $region61: #{processor_forward.1} parent=35 // pred_check
        %p481 = pneg %p303
      $region62: #{processor_forward.1} parent=35 // pred_check_branch
        %483 = sbr.rel (%p481) target = $region64
      $region63: #{processor_forward.1} parent=35 // pred_region
        %p484 = scmp.lt.s32.totalorder %s22, 1
        %s485 = scalar_select %p484, %s22, 1
        %s486 = scalar_lea.vmem %s11, %s485
      $region64: #{processor_forward.1} parent=35 // pred_fallthru
        _
      // Predicated region
      $region65: #{processor_forward.1} parent=35 // pred_check
        %p487 = pneg %p329
      $region66: #{processor_forward.1} parent=35 // pred_check_branch
        %489 = sbr.rel (%p487) target = $region68
      $region67: #{processor_forward.1} parent=35 // pred_region
        %p490 = scmp.lt.s32.totalorder %s22, 1
        %s491 = scalar_select %p490, %s22, 1
        %s492 = scalar_lea.vmem %s12, %s491
      $region68: #{processor_forward.1} parent=35 // pred_fallthru
        _
      // Predicated region
      $region69: #{processor_forward.1} parent=35 // pred_check
        %p493 = pneg %p355
      $region70: #{processor_forward.1} parent=35 // pred_check_branch
        %495 = sbr.rel (%p493) target = $region72
      $region71: #{processor_forward.1} parent=35 // pred_region
        %p496 = scmp.lt.s32.totalorder %s22, 1
        %s497 = scalar_select %p496, %s22, 1
        %s498 = scalar_lea.vmem %s13, %s497
      $region72: #{processor_forward.1} parent=35 // pred_fallthru
        _
    $region36: #{processor_forward.1} parent=5 // pred_fallthru
      _
    %p499 = scmp.le.s32.totalorder 1, %s22
    %p500 = scmp.lt.s32.totalorder %s22, 3
    %p501 = pnand %p499, %p500
    %p502 = pneg %p501
    // Predicated region
    $region73: #{processor_forward.1} parent=5 // pred_check
      _
    $region74: #{processor_forward.1} parent=5 // pred_check_branch
      %504 = sbr.rel (%p501) target = $region76
    $region75: #{processor_forward.1} parent=5 // pred_region
      %s505 = ssub.s32 %s22, 1
      %p506 = pneg %p43
      %p507 = pneg %p40
      %p508 = pneg %p64
      %p509 = pneg %p61
      %p510 = pneg %p85
      %p511 = pneg %p82
      %p512 = pneg %p106
      %p513 = pneg %p103
      %p514 = pneg %p127
      %p515 = pneg %p124
      %p516 = scmp.lt.s32.totalorder %s27, 1
      %s517 = scalar_select %p516, %s27, 1
      %s518 = smul.addr %s517, 64
      %s519 = smul.addr %s518, 8
      %s520 = scalar_lea.vmem %s5, %s519
      %p521 = pneg %p153
      %p522 = pneg %p150
      %p523 = scmp.lt.s32.totalorder %s27, 1
      %s524 = scalar_select %p523, %s27, 1
      %s525 = smul.addr %s524, 32
      %s526 = smul.addr %s525, 8
      %s527 = scalar_lea.vmem %s6, %s526
      %p528 = pneg %p179
      %p529 = pneg %p176
      %p530 = scmp.lt.s32.totalorder %s27, 1
      %s531 = scalar_select %p530, %s27, 1
      %s532 = smul.addr %s531, 2
      %s533 = scalar_lea.vmem %s7, %s532
      %p534 = pneg %p205
      %p535 = pneg %p202
      %p536 = scmp.lt.s32.totalorder %s27, 1
      %s537 = scalar_select %p536, %s27, 1
      %s538 = smul.addr %s537, 64
      %s539 = smul.addr %s538, 8
      %s540 = scalar_lea.vmem %s8, %s539
      %p541 = pneg %p231
      %p542 = pneg %p228
      %p543 = scmp.lt.s32.totalorder %s27, 1
      %s544 = scalar_select %p543, %s27, 1
      %s545 = smul.addr %s544, 2
      %s546 = scalar_lea.vmem %s9, %s545
      %p547 = pneg %p257
      %p548 = pneg %p254
      %p549 = scmp.lt.s32.totalorder %s27, 1
      %s550 = scalar_select %p549, %s27, 1
      %s551 = scalar_lea.vmem %s10, %s550
      %p552 = pneg %p283
      %p553 = pneg %p280
      %p554 = scmp.lt.s32.totalorder %s27, 1
      %s555 = scalar_select %p554, %s27, 1
      %s556 = scalar_lea.vmem %s11, %s555
      %p557 = pneg %p309
      %p558 = pneg %p306
      %p559 = scmp.lt.s32.totalorder %s27, 1
      %s560 = scalar_select %p559, %s27, 1
      %s561 = scalar_lea.vmem %s12, %s560
      %p562 = pneg %p335
      %p563 = pneg %p332
      %p564 = scmp.lt.s32.totalorder %s27, 1
      %s565 = scalar_select %p564, %s27, 1
      %s566 = scalar_lea.vmem %s13, %s565
      %p567 = pneg %p361
      %p568 = pneg %p358
      %p569 = pneg %p382
      %p570 = pneg %p379
      %p571 = pneg %p403
      %p572 = pneg %p400
      %p573 = scmp.lt.s32.totalorder %s27, 1
      %s574 = scalar_select %p573, %s27, 1
      %s575 = smul.addr %s574, 64
      %s576 = smul.addr %s575, 8
      %s577 = scalar_lea.vmem %s5, %s576
      %p578 = scmp.lt.s32.totalorder %s27, 1
      %s579 = scalar_select %p578, %s27, 1
      %s580 = smul.addr %s579, 32
      %s581 = smul.addr %s580, 8
      %s582 = scalar_lea.vmem %s6, %s581
      %p583 = scmp.lt.s32.totalorder %s27, 1
      %s584 = scalar_select %p583, %s27, 1
      %s585 = smul.addr %s584, 2
      %s586 = scalar_lea.vmem %s7, %s585
      %p587 = scmp.lt.s32.totalorder %s27, 1
      %s588 = scalar_select %p587, %s27, 1
      %s589 = smul.addr %s588, 64
      %s590 = smul.addr %s589, 8
      %s591 = scalar_lea.vmem %s8, %s590
      %p592 = scmp.lt.s32.totalorder %s27, 1
      %s593 = scalar_select %p592, %s27, 1
      %s594 = smul.addr %s593, 2
      %s595 = scalar_lea.vmem %s9, %s594
      %p596 = scmp.lt.s32.totalorder %s27, 1
      %s597 = scalar_select %p596, %s27, 1
      %s598 = scalar_lea.vmem %s10, %s597
      %p599 = scmp.lt.s32.totalorder %s27, 1
      %s600 = scalar_select %p599, %s27, 1
      %s601 = scalar_lea.vmem %s11, %s600
      %p602 = scmp.lt.s32.totalorder %s27, 1
      %s603 = scalar_select %p602, %s27, 1
      %s604 = scalar_lea.vmem %s12, %s603
      %p605 = scmp.lt.s32.totalorder %s27, 1
      %s606 = scalar_select %p605, %s27, 1
      %s607 = scalar_lea.vmem %s13, %s606
      %p608 = scmp.eq.s32.totalorder %s27, 0
      // Predicated region
      $region77: #{processor_forward.1} parent=75 // pred_check
        %p609 = pneg %p608
      $region78: #{processor_forward.1} parent=75 // pred_check_branch
        %611 = sbr.rel (%p609) target = $region80
      $region79: #{processor_forward.1} parent=75 // pred_region
        %v612 = vld [vmem:[%s0] sm:$0xff]
        %v613 = vld [vmem:[%s0 + $0x8] sm:$0xff]
        %v614 = vld [vmem:[%s0 + $0x10] sm:$0xff]
        %v615 = vld [vmem:[%s0 + $0x18] sm:$0xff]
        %v616 = vld [vmem:[%s0 + $0x20] sm:$0xff]
        %v617 = vld [vmem:[%s0 + $0x28] sm:$0xff]
        %v618 = vld [vmem:[%s0 + $0x30] sm:$0xff]
        %v619 = vld [vmem:[%s0 + $0x38] sm:$0xff]
        %v620 = vld [vmem:[%s0 + $0x40] sm:$0xff]
        %v621 = vld [vmem:[%s0 + $0x48] sm:$0xff]
        %v622 = vld [vmem:[%s0 + $0x50] sm:$0xff]
        %v623 = vld [vmem:[%s0 + $0x58] sm:$0xff]
        %v624 = vld [vmem:[%s0 + $0x60] sm:$0xff]
        %v625 = vld [vmem:[%s0 + $0x68] sm:$0xff]
        %v626 = vld [vmem:[%s0 + $0x70] sm:$0xff]
        %v627 = vld [vmem:[%s0 + $0x78] sm:$0xff]
        %628 = vst [vmem:[%s14] sm:$0xff] %v612
        %629 = vst [vmem:[%s14 + $0x8] sm:$0xff] %v613
        %630 = vst [vmem:[%s14 + $0x10] sm:$0xff] %v614
        %631 = vst [vmem:[%s14 + $0x18] sm:$0xff] %v615
        %632 = vst [vmem:[%s14 + $0x20] sm:$0xff] %v616
        %633 = vst [vmem:[%s14 + $0x28] sm:$0xff] %v617
        %634 = vst [vmem:[%s14 + $0x30] sm:$0xff] %v618
        %635 = vst [vmem:[%s14 + $0x38] sm:$0xff] %v619
        %636 = vst [vmem:[%s14 + $0x40] sm:$0xff] %v620
        %637 = vst [vmem:[%s14 + $0x48] sm:$0xff] %v621
        %638 = vst [vmem:[%s14 + $0x50] sm:$0xff] %v622
        %639 = vst [vmem:[%s14 + $0x58] sm:$0xff] %v623
        %640 = vst [vmem:[%s14 + $0x60] sm:$0xff] %v624
        %641 = vst [vmem:[%s14 + $0x68] sm:$0xff] %v625
        %642 = vst [vmem:[%s14 + $0x70] sm:$0xff] %v626
        %643 = vst [vmem:[%s14 + $0x78] sm:$0xff] %v627
        %v644 = vld [vmem:[%s1] sm:$0xff]
        %v645 = vld [vmem:[%s1 + $0x8] sm:$0xff]
        %v646 = vld [vmem:[%s1 + $0x10] sm:$0xff]
        %v647 = vld [vmem:[%s1 + $0x18] sm:$0xff]
        %v648 = vld [vmem:[%s1 + $0x20] sm:$0xff]
        %v649 = vld [vmem:[%s1 + $0x28] sm:$0xff]
        %v650 = vld [vmem:[%s1 + $0x30] sm:$0xff]
        %v651 = vld [vmem:[%s1 + $0x38] sm:$0xff]
        %v652 = vld [vmem:[%s1 + $0x40] sm:$0xff]
        %v653 = vld [vmem:[%s1 + $0x48] sm:$0xff]
        %v654 = vld [vmem:[%s1 + $0x50] sm:$0xff]
        %v655 = vld [vmem:[%s1 + $0x58] sm:$0xff]
        %v656 = vld [vmem:[%s1 + $0x60] sm:$0xff]
        %v657 = vld [vmem:[%s1 + $0x68] sm:$0xff]
        %v658 = vld [vmem:[%s1 + $0x70] sm:$0xff]
        %v659 = vld [vmem:[%s1 + $0x78] sm:$0xff]
        %660 = vst [vmem:[%s15] sm:$0xff] %v644
        %661 = vst [vmem:[%s15 + $0x8] sm:$0xff] %v645
        %662 = vst [vmem:[%s15 + $0x10] sm:$0xff] %v646
        %663 = vst [vmem:[%s15 + $0x18] sm:$0xff] %v647
        %664 = vst [vmem:[%s15 + $0x20] sm:$0xff] %v648
        %665 = vst [vmem:[%s15 + $0x28] sm:$0xff] %v649
        %666 = vst [vmem:[%s15 + $0x30] sm:$0xff] %v650
        %667 = vst [vmem:[%s15 + $0x38] sm:$0xff] %v651
        %668 = vst [vmem:[%s15 + $0x40] sm:$0xff] %v652
        %669 = vst [vmem:[%s15 + $0x48] sm:$0xff] %v653
        %670 = vst [vmem:[%s15 + $0x50] sm:$0xff] %v654
        %671 = vst [vmem:[%s15 + $0x58] sm:$0xff] %v655
        %672 = vst [vmem:[%s15 + $0x60] sm:$0xff] %v656
        %673 = vst [vmem:[%s15 + $0x68] sm:$0xff] %v657
        %674 = vst [vmem:[%s15 + $0x70] sm:$0xff] %v658
        %675 = vst [vmem:[%s15 + $0x78] sm:$0xff] %v659
      $region80: #{processor_forward.1} parent=75 // pred_fallthru
        _
      %v676 = vld [vmem:[%s14] sm:$0xff]
      %v677 = vld [vmem:[%s14 + $0x8] sm:$0xff]
      %v678 = vld [vmem:[%s14 + $0x10] sm:$0xff]
      %v679 = vld [vmem:[%s14 + $0x18] sm:$0xff]
      %v680 = vld [vmem:[%s14 + $0x20] sm:$0xff]
      %v681 = vld [vmem:[%s14 + $0x28] sm:$0xff]
      %v682 = vld [vmem:[%s14 + $0x30] sm:$0xff]
      %v683 = vld [vmem:[%s14 + $0x38] sm:$0xff]
      %v684 = vld [vmem:[%s14 + $0x40] sm:$0xff]
      %v685 = vld [vmem:[%s14 + $0x48] sm:$0xff]
      %v686 = vld [vmem:[%s14 + $0x50] sm:$0xff]
      %v687 = vld [vmem:[%s14 + $0x58] sm:$0xff]
      %v688 = vld [vmem:[%s14 + $0x60] sm:$0xff]
      %v689 = vld [vmem:[%s14 + $0x68] sm:$0xff]
      %v690 = vld [vmem:[%s14 + $0x70] sm:$0xff]
      %v691 = vld [vmem:[%s14 + $0x78] sm:$0xff]
      %v692 = vld [vmem:[%s15] sm:$0xff]
      %v693 = vld [vmem:[%s15 + $0x8] sm:$0xff]
      %v694 = vld [vmem:[%s15 + $0x10] sm:$0xff]
      %v695 = vld [vmem:[%s15 + $0x18] sm:$0xff]
      %v696 = vld [vmem:[%s15 + $0x20] sm:$0xff]
      %v697 = vld [vmem:[%s15 + $0x28] sm:$0xff]
      %v698 = vld [vmem:[%s15 + $0x30] sm:$0xff]
      %v699 = vld [vmem:[%s15 + $0x38] sm:$0xff]
      %v700 = vld [vmem:[%s15 + $0x40] sm:$0xff]
      %v701 = vld [vmem:[%s15 + $0x48] sm:$0xff]
      %v702 = vld [vmem:[%s15 + $0x50] sm:$0xff]
      %v703 = vld [vmem:[%s15 + $0x58] sm:$0xff]
      %v704 = vld [vmem:[%s15 + $0x60] sm:$0xff]
      %v705 = vld [vmem:[%s15 + $0x68] sm:$0xff]
      %v706 = vld [vmem:[%s15 + $0x70] sm:$0xff]
      %v707 = vld [vmem:[%s15 + $0x78] sm:$0xff]
      %v708 = vld [vmem:[%s2] sm:$0xf]
      %v709 = vld [vmem:[%s2 + $0x4] sm:$0xf]
      %v710 = vld [vmem:[%s2 + $0x8] sm:$0xf]
      %v711 = vld [vmem:[%s2 + $0xc] sm:$0xf]
      %v712 = vld [vmem:[%s2 + $0x10] sm:$0xf]
      %v713 = vld [vmem:[%s2 + $0x14] sm:$0xf]
      %v714 = vld [vmem:[%s2 + $0x18] sm:$0xf]
      %v715 = vld [vmem:[%s2 + $0x1c] sm:$0xf]
      %v716 = vld [vmem:[%s2 + $0x20] sm:$0xf]
      %v717 = vld [vmem:[%s2 + $0x24] sm:$0xf]
      %v718 = vld [vmem:[%s2 + $0x28] sm:$0xf]
      %v719 = vld [vmem:[%s2 + $0x2c] sm:$0xf]
      %v720 = vld [vmem:[%s2 + $0x30] sm:$0xf]
      %v721 = vld [vmem:[%s2 + $0x34] sm:$0xf]
      %v722 = vld [vmem:[%s2 + $0x38] sm:$0xf]
      %v723 = vld [vmem:[%s2 + $0x3c] sm:$0xf]
      %v724 = vld [vmem:[%s3] sm:$0xf]
      %v725 = vld [vmem:[%s3 + $0x4] sm:$0xf]
      %v726 = vld [vmem:[%s3 + $0x8] sm:$0xf]
      %v727 = vld [vmem:[%s3 + $0xc] sm:$0xf]
      %v728 = vld [vmem:[%s3 + $0x10] sm:$0xf]
      %v729 = vld [vmem:[%s3 + $0x14] sm:$0xf]
      %v730 = vld [vmem:[%s3 + $0x18] sm:$0xf]
      %v731 = vld [vmem:[%s3 + $0x1c] sm:$0xf]
      %v732 = vld [vmem:[%s3 + $0x20] sm:$0xf]
      %v733 = vld [vmem:[%s3 + $0x24] sm:$0xf]
      %v734 = vld [vmem:[%s3 + $0x28] sm:$0xf]
      %v735 = vld [vmem:[%s3 + $0x2c] sm:$0xf]
      %v736 = vld [vmem:[%s3 + $0x30] sm:$0xf]
      %v737 = vld [vmem:[%s3 + $0x34] sm:$0xf]
      %v738 = vld [vmem:[%s3 + $0x38] sm:$0xf]
      %v739 = vld [vmem:[%s3 + $0x3c] sm:$0xf]
      %v740 = vld [vmem:[%s4] sm:$0xf]
      %v741 = vld [vmem:[%s4 + $0x4] sm:$0xf]
      %v742 = vld [vmem:[%s4 + $0x8] sm:$0xf]
      %v743 = vld [vmem:[%s4 + $0xc] sm:$0xf]
      %v744 = vld [vmem:[%s4 + $0x10] sm:$0xf]
      %v745 = vld [vmem:[%s4 + $0x14] sm:$0xf]
      %v746 = vld [vmem:[%s4 + $0x18] sm:$0xf]
      %v747 = vld [vmem:[%s4 + $0x1c] sm:$0xf]
      %v748 = vld [vmem:[%s4 + $0x20] sm:$0xf]
      %v749 = vld [vmem:[%s4 + $0x24] sm:$0xf]
      %v750 = vld [vmem:[%s4 + $0x28] sm:$0xf]
      %v751 = vld [vmem:[%s4 + $0x2c] sm:$0xf]
      %v752 = vld [vmem:[%s4 + $0x30] sm:$0xf]
      %v753 = vld [vmem:[%s4 + $0x34] sm:$0xf]
      %v754 = vld [vmem:[%s4 + $0x38] sm:$0xf]
      %v755 = vld [vmem:[%s4 + $0x3c] sm:$0xf]
      %v756 = vlaneseq
      %v757 = vand.u32 %v756, 127
      %vm758 = vcmp.lt.s32.totalorder %v757, 32
      %v759 = vsel %vm758, 1, 0
      %v760 = vcvt.s32.f32 %v759
      %v761 = vld [vmem:[%s577] sm:$0xff]
      %v762 = vld [vmem:[%s577 + $0x8] sm:$0xff]
      %v763 = vld [vmem:[%s577 + $0x10] sm:$0xff]
      %v764 = vld [vmem:[%s577 + $0x18] sm:$0xff]
      %v765 = vld [vmem:[%s577 + $0x20] sm:$0xff]
      %v766 = vld [vmem:[%s577 + $0x28] sm:$0xff]
      %v767 = vld [vmem:[%s577 + $0x30] sm:$0xff]
      %v768 = vld [vmem:[%s577 + $0x38] sm:$0xff]
      %v769 = vld [vmem:[%s577 + $0x40] sm:$0xff]
      %v770 = vld [vmem:[%s577 + $0x48] sm:$0xff]
      %v771 = vld [vmem:[%s577 + $0x50] sm:$0xff]
      %v772 = vld [vmem:[%s577 + $0x58] sm:$0xff]
      %v773 = vld [vmem:[%s577 + $0x60] sm:$0xff]
      %v774 = vld [vmem:[%s577 + $0x68] sm:$0xff]
      %v775 = vld [vmem:[%s577 + $0x70] sm:$0xff]
      %v776 = vld [vmem:[%s577 + $0x78] sm:$0xff]
      %v777 = vld [vmem:[%s577 + $0x80] sm:$0xff]
      %v778 = vld [vmem:[%s577 + $0x88] sm:$0xff]
      %v779 = vld [vmem:[%s577 + $0x90] sm:$0xff]
      %v780 = vld [vmem:[%s577 + $0x98] sm:$0xff]
      %v781 = vld [vmem:[%s577 + $0xa0] sm:$0xff]
      %v782 = vld [vmem:[%s577 + $0xa8] sm:$0xff]
      %v783 = vld [vmem:[%s577 + $0xb0] sm:$0xff]
      %v784 = vld [vmem:[%s577 + $0xb8] sm:$0xff]
      %v785 = vld [vmem:[%s577 + $0xc0] sm:$0xff]
      %v786 = vld [vmem:[%s577 + $0xc8] sm:$0xff]
      %v787 = vld [vmem:[%s577 + $0xd0] sm:$0xff]
      %v788 = vld [vmem:[%s577 + $0xd8] sm:$0xff]
      %v789 = vld [vmem:[%s577 + $0xe0] sm:$0xff]
      %v790 = vld [vmem:[%s577 + $0xe8] sm:$0xff]
      %v791 = vld [vmem:[%s577 + $0xf0] sm:$0xff]
      %v792 = vld [vmem:[%s577 + $0xf8] sm:$0xff]
      %793 = vmatpush.msra.mxu0 %v791
      %794 = vmatpush.msra.mxu0 %v789
      %795 = vmatpush.msra.mxu0 %v787
      %796 = vmatpush.msra.mxu0 %v785
      %797 = vmatpush.msra.mxu0 %v783
      %798 = vmatpush.msra.mxu0 %v781
      %799 = vmatpush.msra.mxu0 %v779
      %800 = vmatpush.msra.mxu0 %v777
      %801 = vmatpush.msra.mxu0 %v775
      %802 = vmatpush.msra.mxu0 %v773
      %803 = vmatpush.msra.mxu0 %v771
      %804 = vmatpush.msra.mxu0 %v769
      %805 = vmatpush.msra.mxu0 %v767
      %806 = vmatpush.msra.mxu0 %v765
      %807 = vmatpush.msra.mxu0 %v763
      %808 = vmatpush.msra.mxu0 %v761
      %809 = vmatmul.f32.gmra.mxu0 %v676
      %v810 = vpop.f32.mrf.mxu0
      %v811 = vadd.f32 0.0, %v810
      %812 = vmatmul.f32.gmra.mxu0 %v677
      %v813 = vpop.f32.mrf.mxu0
      %v814 = vadd.f32 0.0, %v813
      %815 = vmatmul.f32.gmra.mxu0 %v678
      %v816 = vpop.f32.mrf.mxu0
      %v817 = vadd.f32 0.0, %v816
      %818 = vmatmul.f32.gmra.mxu0 %v679
      %v819 = vpop.f32.mrf.mxu0
      %v820 = vadd.f32 0.0, %v819
      %821 = vmatmul.f32.gmra.mxu0 %v680
      %v822 = vpop.f32.mrf.mxu0
      %v823 = vadd.f32 0.0, %v822
      %824 = vmatmul.f32.gmra.mxu0 %v681
      %v825 = vpop.f32.mrf.mxu0
      %v826 = vadd.f32 0.0, %v825
      %827 = vmatmul.f32.gmra.mxu0 %v682
      %v828 = vpop.f32.mrf.mxu0
      %v829 = vadd.f32 0.0, %v828
      %830 = vmatmul.f32.gmra.mxu0 %v683
      %v831 = vpop.f32.mrf.mxu0
      %v832 = vadd.f32 0.0, %v831
      %833 = vmatmul.f32.gmra.mxu0 %v684
      %v834 = vpop.f32.mrf.mxu0
      %v835 = vadd.f32 0.0, %v834
      %836 = vmatmul.f32.gmra.mxu0 %v685
      %v837 = vpop.f32.mrf.mxu0
      %v838 = vadd.f32 0.0, %v837
      %839 = vmatmul.f32.gmra.mxu0 %v686
      %v840 = vpop.f32.mrf.mxu0
      %v841 = vadd.f32 0.0, %v840
      %842 = vmatmul.f32.gmra.mxu0 %v687
      %v843 = vpop.f32.mrf.mxu0
      %v844 = vadd.f32 0.0, %v843
      %845 = vmatmul.f32.gmra.mxu0 %v688
      %v846 = vpop.f32.mrf.mxu0
      %v847 = vadd.f32 0.0, %v846
      %848 = vmatmul.f32.gmra.mxu0 %v689
      %v849 = vpop.f32.mrf.mxu0
      %v850 = vadd.f32 0.0, %v849
      %851 = vmatmul.f32.gmra.mxu0 %v690
      %v852 = vpop.f32.mrf.mxu0
      %v853 = vadd.f32 0.0, %v852
      %854 = vmatmul.f32.gmra.mxu0 %v691
      %v855 = vpop.f32.mrf.mxu0
      %v856 = vadd.f32 0.0, %v855
      %857 = vdwg.mxu0
      %858 = vmatpush.msra.mxu0 %v792
      %859 = vmatpush.msra.mxu0 %v790
      %860 = vmatpush.msra.mxu0 %v788
      %861 = vmatpush.msra.mxu0 %v786
      %862 = vmatpush.msra.mxu0 %v784
      %863 = vmatpush.msra.mxu0 %v782
      %864 = vmatpush.msra.mxu0 %v780
      %865 = vmatpush.msra.mxu0 %v778
      %866 = vmatpush.msra.mxu0 %v776
      %867 = vmatpush.msra.mxu0 %v774
      %868 = vmatpush.msra.mxu0 %v772
      %869 = vmatpush.msra.mxu0 %v770
      %870 = vmatpush.msra.mxu0 %v768
      %871 = vmatpush.msra.mxu0 %v766
      %872 = vmatpush.msra.mxu0 %v764
      %873 = vmatpush.msra.mxu0 %v762
      %874 = vmatmul.f32.gmra.mxu0 %v676
      %v875 = vpop.f32.mrf.mxu0
      %v876 = vadd.f32 0.0, %v875
      %877 = vmatmul.f32.gmra.mxu0 %v677
      %v878 = vpop.f32.mrf.mxu0
      %v879 = vadd.f32 0.0, %v878
      %880 = vmatmul.f32.gmra.mxu0 %v678
      %v881 = vpop.f32.mrf.mxu0
      %v882 = vadd.f32 0.0, %v881
      %883 = vmatmul.f32.gmra.mxu0 %v679
      %v884 = vpop.f32.mrf.mxu0
      %v885 = vadd.f32 0.0, %v884
      %886 = vmatmul.f32.gmra.mxu0 %v680
      %v887 = vpop.f32.mrf.mxu0
      %v888 = vadd.f32 0.0, %v887
      %889 = vmatmul.f32.gmra.mxu0 %v681
      %v890 = vpop.f32.mrf.mxu0
      %v891 = vadd.f32 0.0, %v890
      %892 = vmatmul.f32.gmra.mxu0 %v682
      %v893 = vpop.f32.mrf.mxu0
      %v894 = vadd.f32 0.0, %v893
      %895 = vmatmul.f32.gmra.mxu0 %v683
      %v896 = vpop.f32.mrf.mxu0
      %v897 = vadd.f32 0.0, %v896
      %898 = vmatmul.f32.gmra.mxu0 %v684
      %v899 = vpop.f32.mrf.mxu0
      %v900 = vadd.f32 0.0, %v899
      %901 = vmatmul.f32.gmra.mxu0 %v685
      %v902 = vpop.f32.mrf.mxu0
      %v903 = vadd.f32 0.0, %v902
      %904 = vmatmul.f32.gmra.mxu0 %v686
      %v905 = vpop.f32.mrf.mxu0
      %v906 = vadd.f32 0.0, %v905
      %907 = vmatmul.f32.gmra.mxu0 %v687
      %v908 = vpop.f32.mrf.mxu0
      %v909 = vadd.f32 0.0, %v908
      %910 = vmatmul.f32.gmra.mxu0 %v688
      %v911 = vpop.f32.mrf.mxu0
      %v912 = vadd.f32 0.0, %v911
      %913 = vmatmul.f32.gmra.mxu0 %v689
      %v914 = vpop.f32.mrf.mxu0
      %v915 = vadd.f32 0.0, %v914
      %916 = vmatmul.f32.gmra.mxu0 %v690
      %v917 = vpop.f32.mrf.mxu0
      %v918 = vadd.f32 0.0, %v917
      %919 = vmatmul.f32.gmra.mxu0 %v691
      %v920 = vpop.f32.mrf.mxu0
      %v921 = vadd.f32 0.0, %v920
      %922 = vdwg.mxu0
      %v923 = vpack.c.bf16 %v814, %v811
      %v924 = vpack.c.bf16 %v820, %v817
      %v925 = vpack.c.bf16 %v826, %v823
      %v926 = vpack.c.bf16 %v832, %v829
      %v927 = vpack.c.bf16 %v838, %v835
      %v928 = vpack.c.bf16 %v844, %v841
      %v929 = vpack.c.bf16 %v850, %v847
      %v930 = vpack.c.bf16 %v856, %v853
      %v931 = vpack.c.bf16 %v879, %v876
      %v932 = vpack.c.bf16 %v885, %v882
      %v933 = vpack.c.bf16 %v891, %v888
      %v934 = vpack.c.bf16 %v897, %v894
      %v935 = vpack.c.bf16 %v903, %v900
      %v936 = vpack.c.bf16 %v909, %v906
      %v937 = vpack.c.bf16 %v915, %v912
      %v938 = vpack.c.bf16 %v921, %v918
      %v955 = vunpack.c.l.b16 %v724
      %v956 = vunpack.c.l.b16 %v725
      %v957 = vunpack.c.l.b16 %v726
      %v958 = vunpack.c.l.b16 %v727
      %v959 = vunpack.c.l.b16 %v728
      %v960 = vunpack.c.l.b16 %v729
      %v961 = vunpack.c.l.b16 %v730
      %v962 = vunpack.c.l.b16 %v731
      %v963 = vunpack.c.l.b16 %v732
      %v964 = vunpack.c.l.b16 %v733
      %v965 = vunpack.c.l.b16 %v734
      %v966 = vunpack.c.l.b16 %v735
      %v967 = vunpack.c.l.b16 %v736
      %v968 = vunpack.c.l.b16 %v737
      %v969 = vunpack.c.l.b16 %v738
      %v970 = vunpack.c.l.b16 %v739
      %v971 = vpack.c.b16 %v956, %v955
      %v972 = vpack.c.b16 %v958, %v957
      %v973 = vpack.c.b16 %v960, %v959
      %v974 = vpack.c.b16 %v962, %v961
      %v975 = vpack.c.b16 %v964, %v963
      %v976 = vpack.c.b16 %v966, %v965
      %v977 = vpack.c.b16 %v968, %v967
      %v978 = vpack.c.b16 %v970, %v969
      %987 = vmatpush.bf16.msra.mxu0 %v938
      %988 = vmatpush.bf16.msra.mxu0 %v937
      %989 = vmatpush.bf16.msra.mxu0 %v936
      %990 = vmatpush.bf16.msra.mxu0 %v935
      %991 = vmatpush.bf16.msra.mxu0 %v934
      %992 = vmatpush.bf16.msra.mxu0 %v933
      %993 = vmatpush.bf16.msra.mxu0 %v932
      %994 = vmatpush.bf16.msra.mxu0 %v931
      %995 = vmatmul.bf16.gmra.mxu0 %v971
      %v996 = vpop.f32.mrf.mxu0
      %v997 = vadd.f32 0.0, %v996
      %v998 = vpop.f32.mrf.mxu0
      %v999 = vadd.f32 0.0, %v998
      %1000 = vmatmul.bf16.gmra.mxu0 %v972
      %v1001 = vpop.f32.mrf.mxu0
      %v1002 = vadd.f32 0.0, %v1001
      %v1003 = vpop.f32.mrf.mxu0
      %v1004 = vadd.f32 0.0, %v1003
      %1005 = vmatmul.bf16.gmra.mxu0 %v973
      %v1006 = vpop.f32.mrf.mxu0
      %v1007 = vadd.f32 0.0, %v1006
      %v1008 = vpop.f32.mrf.mxu0
      %v1009 = vadd.f32 0.0, %v1008
      %1010 = vmatmul.bf16.gmra.mxu0 %v974
      %v1011 = vpop.f32.mrf.mxu0
      %v1012 = vadd.f32 0.0, %v1011
      %v1013 = vpop.f32.mrf.mxu0
      %v1014 = vadd.f32 0.0, %v1013
      %1015 = vmatmul.bf16.gmra.mxu0 %v975
      %v1016 = vpop.f32.mrf.mxu0
      %v1017 = vadd.f32 0.0, %v1016
      %v1018 = vpop.f32.mrf.mxu0
      %v1019 = vadd.f32 0.0, %v1018
      %1020 = vmatmul.bf16.gmra.mxu0 %v976
      %v1021 = vpop.f32.mrf.mxu0
      %v1022 = vadd.f32 0.0, %v1021
      %v1023 = vpop.f32.mrf.mxu0
      %v1024 = vadd.f32 0.0, %v1023
      %1025 = vmatmul.bf16.gmra.mxu0 %v977
      %v1026 = vpop.f32.mrf.mxu0
      %v1027 = vadd.f32 0.0, %v1026
      %v1028 = vpop.f32.mrf.mxu0
      %v1029 = vadd.f32 0.0, %v1028
      %1030 = vmatmul.bf16.gmra.mxu0 %v978
      %v1031 = vpop.f32.mrf.mxu0
      %v1032 = vadd.f32 0.0, %v1031
      %v1033 = vpop.f32.mrf.mxu0
      %v1034 = vadd.f32 0.0, %v1033
      %1035 = vdwg.mxu0
      %v1052 = vunpack.c.l.b16 %v708
      %v1053 = vunpack.c.l.b16 %v709
      %v1054 = vunpack.c.l.b16 %v710
      %v1055 = vunpack.c.l.b16 %v711
      %v1056 = vunpack.c.l.b16 %v712
      %v1057 = vunpack.c.l.b16 %v713
      %v1058 = vunpack.c.l.b16 %v714
      %v1059 = vunpack.c.l.b16 %v715
      %v1060 = vunpack.c.l.b16 %v716
      %v1061 = vunpack.c.l.b16 %v717
      %v1062 = vunpack.c.l.b16 %v718
      %v1063 = vunpack.c.l.b16 %v719
      %v1064 = vunpack.c.l.b16 %v720
      %v1065 = vunpack.c.l.b16 %v721
      %v1066 = vunpack.c.l.b16 %v722
      %v1067 = vunpack.c.l.b16 %v723
      %v1068 = vpack.c.b16 %v1053, %v1052
      %v1069 = vpack.c.b16 %v1055, %v1054
      %v1070 = vpack.c.b16 %v1057, %v1056
      %v1071 = vpack.c.b16 %v1059, %v1058
      %v1072 = vpack.c.b16 %v1061, %v1060
      %v1073 = vpack.c.b16 %v1063, %v1062
      %v1074 = vpack.c.b16 %v1065, %v1064
      %v1075 = vpack.c.b16 %v1067, %v1066
      %1084 = vmatpush.bf16.msra.mxu0 %v930
      %1085 = vmatpush.bf16.msra.mxu0 %v929
      %1086 = vmatpush.bf16.msra.mxu0 %v928
      %1087 = vmatpush.bf16.msra.mxu0 %v927
      %1088 = vmatpush.bf16.msra.mxu0 %v926
      %1089 = vmatpush.bf16.msra.mxu0 %v925
      %1090 = vmatpush.bf16.msra.mxu0 %v924
      %1091 = vmatpush.bf16.msra.mxu0 %v923
      %1092 = vmatmul.bf16.gmra.mxu0 %v1068
      %v1093 = vpop.f32.mrf.mxu0
      %v1094 = vadd.f32 %v997, %v1093
      %v1095 = vpop.f32.mrf.mxu0
      %v1096 = vadd.f32 %v999, %v1095
      %1097 = vmatmul.bf16.gmra.mxu0 %v1069
      %v1098 = vpop.f32.mrf.mxu0
      %v1099 = vadd.f32 %v1002, %v1098
      %v1100 = vpop.f32.mrf.mxu0
      %v1101 = vadd.f32 %v1004, %v1100
      %1102 = vmatmul.bf16.gmra.mxu0 %v1070
      %v1103 = vpop.f32.mrf.mxu0
      %v1104 = vadd.f32 %v1007, %v1103
      %v1105 = vpop.f32.mrf.mxu0
      %v1106 = vadd.f32 %v1009, %v1105
      %1107 = vmatmul.bf16.gmra.mxu0 %v1071
      %v1108 = vpop.f32.mrf.mxu0
      %v1109 = vadd.f32 %v1012, %v1108
      %v1110 = vpop.f32.mrf.mxu0
      %v1111 = vadd.f32 %v1014, %v1110
      %1112 = vmatmul.bf16.gmra.mxu0 %v1072
      %v1113 = vpop.f32.mrf.mxu0
      %v1114 = vadd.f32 %v1017, %v1113
      %v1115 = vpop.f32.mrf.mxu0
      %v1116 = vadd.f32 %v1019, %v1115
      %1117 = vmatmul.bf16.gmra.mxu0 %v1073
      %v1118 = vpop.f32.mrf.mxu0
      %v1119 = vadd.f32 %v1022, %v1118
      %v1120 = vpop.f32.mrf.mxu0
      %v1121 = vadd.f32 %v1024, %v1120
      %1122 = vmatmul.bf16.gmra.mxu0 %v1074
      %v1123 = vpop.f32.mrf.mxu0
      %v1124 = vadd.f32 %v1027, %v1123
      %v1125 = vpop.f32.mrf.mxu0
      %v1126 = vadd.f32 %v1029, %v1125
      %1127 = vmatmul.bf16.gmra.mxu0 %v1075
      %v1128 = vpop.f32.mrf.mxu0
      %v1129 = vadd.f32 %v1032, %v1128
      %v1130 = vpop.f32.mrf.mxu0
      %v1131 = vadd.f32 %v1034, %v1130
      %1132 = vdwg.mxu0
      %v1133 = vld [vmem:[%s582] sm:$0xff]
      %v1134 = vld [vmem:[%s582 + $0x8] sm:$0xff]
      %v1135 = vld [vmem:[%s582 + $0x10] sm:$0xff]
      %v1136 = vld [vmem:[%s582 + $0x18] sm:$0xff]
      %v1137 = vld [vmem:[%s582 + $0x20] sm:$0xff]
      %v1138 = vld [vmem:[%s582 + $0x28] sm:$0xff]
      %v1139 = vld [vmem:[%s582 + $0x30] sm:$0xff]
      %v1140 = vld [vmem:[%s582 + $0x38] sm:$0xff]
      %v1141 = vld [vmem:[%s582 + $0x40] sm:$0xff]
      %v1142 = vld [vmem:[%s582 + $0x48] sm:$0xff]
      %v1143 = vld [vmem:[%s582 + $0x50] sm:$0xff]
      %v1144 = vld [vmem:[%s582 + $0x58] sm:$0xff]
      %v1145 = vld [vmem:[%s582 + $0x60] sm:$0xff]
      %v1146 = vld [vmem:[%s582 + $0x68] sm:$0xff]
      %v1147 = vld [vmem:[%s582 + $0x70] sm:$0xff]
      %v1148 = vld [vmem:[%s582 + $0x78] sm:$0xff]
      %1149 = vmatpush.msra.mxu0 %v1148
      %1150 = vmatpush.msra.mxu0 %v1147
      %1151 = vmatpush.msra.mxu0 %v1146
      %1152 = vmatpush.msra.mxu0 %v1145
      %1153 = vmatpush.msra.mxu0 %v1144
      %1154 = vmatpush.msra.mxu0 %v1143
      %1155 = vmatpush.msra.mxu0 %v1142
      %1156 = vmatpush.msra.mxu0 %v1141
      %1157 = vmatpush.msra.mxu0 %v1140
      %1158 = vmatpush.msra.mxu0 %v1139
      %1159 = vmatpush.msra.mxu0 %v1138
      %1160 = vmatpush.msra.mxu0 %v1137
      %1161 = vmatpush.msra.mxu0 %v1136
      %1162 = vmatpush.msra.mxu0 %v1135
      %1163 = vmatpush.msra.mxu0 %v1134
      %1164 = vmatpush.msra.mxu0 %v1133
      %1165 = vmatmul.f32.gmra.mxu0 %v692
      %v1166 = vpop.f32.mrf.mxu0
      %v1167 = vadd.f32 0.0, %v1166
      %1168 = vmatmul.f32.gmra.mxu0 %v693
      %v1169 = vpop.f32.mrf.mxu0
      %v1170 = vadd.f32 0.0, %v1169
      %1171 = vmatmul.f32.gmra.mxu0 %v694
      %v1172 = vpop.f32.mrf.mxu0
      %v1173 = vadd.f32 0.0, %v1172
      %1174 = vmatmul.f32.gmra.mxu0 %v695
      %v1175 = vpop.f32.mrf.mxu0
      %v1176 = vadd.f32 0.0, %v1175
      %1177 = vmatmul.f32.gmra.mxu0 %v696
      %v1178 = vpop.f32.mrf.mxu0
      %v1179 = vadd.f32 0.0, %v1178
      %1180 = vmatmul.f32.gmra.mxu0 %v697
      %v1181 = vpop.f32.mrf.mxu0
      %v1182 = vadd.f32 0.0, %v1181
      %1183 = vmatmul.f32.gmra.mxu0 %v698
      %v1184 = vpop.f32.mrf.mxu0
      %v1185 = vadd.f32 0.0, %v1184
      %1186 = vmatmul.f32.gmra.mxu0 %v699
      %v1187 = vpop.f32.mrf.mxu0
      %v1188 = vadd.f32 0.0, %v1187
      %1189 = vmatmul.f32.gmra.mxu0 %v700
      %v1190 = vpop.f32.mrf.mxu0
      %v1191 = vadd.f32 0.0, %v1190
      %1192 = vmatmul.f32.gmra.mxu0 %v701
      %v1193 = vpop.f32.mrf.mxu0
      %v1194 = vadd.f32 0.0, %v1193
      %1195 = vmatmul.f32.gmra.mxu0 %v702
      %v1196 = vpop.f32.mrf.mxu0
      %v1197 = vadd.f32 0.0, %v1196
      %1198 = vmatmul.f32.gmra.mxu0 %v703
      %v1199 = vpop.f32.mrf.mxu0
      %v1200 = vadd.f32 0.0, %v1199
      %1201 = vmatmul.f32.gmra.mxu0 %v704
      %v1202 = vpop.f32.mrf.mxu0
      %v1203 = vadd.f32 0.0, %v1202
      %1204 = vmatmul.f32.gmra.mxu0 %v705
      %v1205 = vpop.f32.mrf.mxu0
      %v1206 = vadd.f32 0.0, %v1205
      %1207 = vmatmul.f32.gmra.mxu0 %v706
      %v1208 = vpop.f32.mrf.mxu0
      %v1209 = vadd.f32 0.0, %v1208
      %1210 = vmatmul.f32.gmra.mxu0 %v707
      %v1211 = vpop.f32.mrf.mxu0
      %v1212 = vadd.f32 0.0, %v1211
      %1213 = vdwg.mxu0
      %v1214 = vadd.f32 %v1094, %v1167
      %v1215 = vadd.f32 %v1096, %v1170
      %v1216 = vadd.f32 %v1099, %v1173
      %v1217 = vadd.f32 %v1101, %v1176
      %v1218 = vadd.f32 %v1104, %v1179
      %v1219 = vadd.f32 %v1106, %v1182
      %v1220 = vadd.f32 %v1109, %v1185
      %v1221 = vadd.f32 %v1111, %v1188
      %v1222 = vadd.f32 %v1114, %v1191
      %v1223 = vadd.f32 %v1116, %v1194
      %v1224 = vadd.f32 %v1119, %v1197
      %v1225 = vadd.f32 %v1121, %v1200
      %v1226 = vadd.f32 %v1124, %v1203
      %v1227 = vadd.f32 %v1126, %v1206
      %v1228 = vadd.f32 %v1129, %v1209
      %v1229 = vadd.f32 %v1131, %v1212
      %v1230 = vld [vmem:[%s586] sm:$0x1]
      %v1232 = vperm.slane %v1230, 0
      %v1234 = vadd.f32 %v1214, %v1232
      %v1235 = vadd.f32 %v1215, %v1232
      %v1236 = vadd.f32 %v1216, %v1232
      %v1237 = vadd.f32 %v1217, %v1232
      %v1238 = vadd.f32 %v1218, %v1232
      %v1239 = vadd.f32 %v1219, %v1232
      %v1240 = vadd.f32 %v1220, %v1232
      %v1241 = vadd.f32 %v1221, %v1232
      %v1242 = vadd.f32 %v1222, %v1232
      %v1243 = vadd.f32 %v1223, %v1232
      %v1244 = vadd.f32 %v1224, %v1232
      %v1245 = vadd.f32 %v1225, %v1232
      %v1246 = vadd.f32 %v1226, %v1232
      %v1247 = vadd.f32 %v1227, %v1232
      %v1248 = vadd.f32 %v1228, %v1232
      %v1249 = vadd.f32 %v1229, %v1232
      %v1250 = vpack.c.bf16 %v1235, %v1234
      %v1251 = vpack.c.bf16 %v1237, %v1236
      %v1252 = vpack.c.bf16 %v1239, %v1238
      %v1253 = vpack.c.bf16 %v1241, %v1240
      %v1254 = vpack.c.bf16 %v1243, %v1242
      %v1255 = vpack.c.bf16 %v1245, %v1244
      %v1256 = vpack.c.bf16 %v1247, %v1246
      %v1257 = vpack.c.bf16 %v1249, %v1248
      %v1274 = vunpack.c.l.b16 %v740
      %v1275 = vunpack.c.l.b16 %v741
      %v1276 = vunpack.c.l.b16 %v742
      %v1277 = vunpack.c.l.b16 %v743
      %v1278 = vunpack.c.l.b16 %v744
      %v1279 = vunpack.c.l.b16 %v745
      %v1280 = vunpack.c.l.b16 %v746
      %v1281 = vunpack.c.l.b16 %v747
      %v1282 = vunpack.c.l.b16 %v748
      %v1283 = vunpack.c.l.b16 %v749
      %v1284 = vunpack.c.l.b16 %v750
      %v1285 = vunpack.c.l.b16 %v751
      %v1286 = vunpack.c.l.b16 %v752
      %v1287 = vunpack.c.l.b16 %v753
      %v1288 = vunpack.c.l.b16 %v754
      %v1289 = vunpack.c.l.b16 %v755
      %v1290 = vpack.c.b16 %v1275, %v1274
      %v1291 = vpack.c.b16 %v1277, %v1276
      %v1292 = vpack.c.b16 %v1279, %v1278
      %v1293 = vpack.c.b16 %v1281, %v1280
      %v1294 = vpack.c.b16 %v1283, %v1282
      %v1295 = vpack.c.b16 %v1285, %v1284
      %v1296 = vpack.c.b16 %v1287, %v1286
      %v1297 = vpack.c.b16 %v1289, %v1288
      %1306 = vmatpush.bf16.msra.mxu0 %v1257
      %1307 = vmatpush.bf16.msra.mxu0 %v1256
      %1308 = vmatpush.bf16.msra.mxu0 %v1255
      %1309 = vmatpush.bf16.msra.mxu0 %v1254
      %1310 = vmatpush.bf16.msra.mxu0 %v1253
      %1311 = vmatpush.bf16.msra.mxu0 %v1252
      %1312 = vmatpush.bf16.msra.mxu0 %v1251
      %1313 = vmatpush.bf16.msra.mxu0 %v1250
      %1314 = vmatmul.bf16.gmra.mxu0 %v1290
      %v1315 = vpop.f32.mrf.mxu0
      %v1316 = vadd.f32 0.0, %v1315
      %v1317 = vpop.f32.mrf.mxu0
      %v1318 = vadd.f32 0.0, %v1317
      %1319 = vmatmul.bf16.gmra.mxu0 %v1291
      %v1320 = vpop.f32.mrf.mxu0
      %v1321 = vadd.f32 0.0, %v1320
      %v1322 = vpop.f32.mrf.mxu0
      %v1323 = vadd.f32 0.0, %v1322
      %1324 = vmatmul.bf16.gmra.mxu0 %v1292
      %v1325 = vpop.f32.mrf.mxu0
      %v1326 = vadd.f32 0.0, %v1325
      %v1327 = vpop.f32.mrf.mxu0
      %v1328 = vadd.f32 0.0, %v1327
      %1329 = vmatmul.bf16.gmra.mxu0 %v1293
      %v1330 = vpop.f32.mrf.mxu0
      %v1331 = vadd.f32 0.0, %v1330
      %v1332 = vpop.f32.mrf.mxu0
      %v1333 = vadd.f32 0.0, %v1332
      %1334 = vmatmul.bf16.gmra.mxu0 %v1294
      %v1335 = vpop.f32.mrf.mxu0
      %v1336 = vadd.f32 0.0, %v1335
      %v1337 = vpop.f32.mrf.mxu0
      %v1338 = vadd.f32 0.0, %v1337
      %1339 = vmatmul.bf16.gmra.mxu0 %v1295
      %v1340 = vpop.f32.mrf.mxu0
      %v1341 = vadd.f32 0.0, %v1340
      %v1342 = vpop.f32.mrf.mxu0
      %v1343 = vadd.f32 0.0, %v1342
      %1344 = vmatmul.bf16.gmra.mxu0 %v1296
      %v1345 = vpop.f32.mrf.mxu0
      %v1346 = vadd.f32 0.0, %v1345
      %v1347 = vpop.f32.mrf.mxu0
      %v1348 = vadd.f32 0.0, %v1347
      %1349 = vmatmul.bf16.gmra.mxu0 %v1297
      %v1350 = vpop.f32.mrf.mxu0
      %v1351 = vadd.f32 0.0, %v1350
      %v1352 = vpop.f32.mrf.mxu0
      %v1353 = vadd.f32 0.0, %v1352
      %1354 = vdwg.mxu0
      %v1355 = vld [vmem:[%s591] sm:$0xff]
      %v1356 = vld [vmem:[%s591 + $0x8] sm:$0xff]
      %v1357 = vld [vmem:[%s591 + $0x10] sm:$0xff]
      %v1358 = vld [vmem:[%s591 + $0x18] sm:$0xff]
      %v1359 = vld [vmem:[%s591 + $0x20] sm:$0xff]
      %v1360 = vld [vmem:[%s591 + $0x28] sm:$0xff]
      %v1361 = vld [vmem:[%s591 + $0x30] sm:$0xff]
      %v1362 = vld [vmem:[%s591 + $0x38] sm:$0xff]
      %v1363 = vld [vmem:[%s591 + $0x40] sm:$0xff]
      %v1364 = vld [vmem:[%s591 + $0x48] sm:$0xff]
      %v1365 = vld [vmem:[%s591 + $0x50] sm:$0xff]
      %v1366 = vld [vmem:[%s591 + $0x58] sm:$0xff]
      %v1367 = vld [vmem:[%s591 + $0x60] sm:$0xff]
      %v1368 = vld [vmem:[%s591 + $0x68] sm:$0xff]
      %v1369 = vld [vmem:[%s591 + $0x70] sm:$0xff]
      %v1370 = vld [vmem:[%s591 + $0x78] sm:$0xff]
      %v1371 = vld [vmem:[%s591 + $0x80] sm:$0xff]
      %v1372 = vld [vmem:[%s591 + $0x88] sm:$0xff]
      %v1373 = vld [vmem:[%s591 + $0x90] sm:$0xff]
      %v1374 = vld [vmem:[%s591 + $0x98] sm:$0xff]
      %v1375 = vld [vmem:[%s591 + $0xa0] sm:$0xff]
      %v1376 = vld [vmem:[%s591 + $0xa8] sm:$0xff]
      %v1377 = vld [vmem:[%s591 + $0xb0] sm:$0xff]
      %v1378 = vld [vmem:[%s591 + $0xb8] sm:$0xff]
      %v1379 = vld [vmem:[%s591 + $0xc0] sm:$0xff]
      %v1380 = vld [vmem:[%s591 + $0xc8] sm:$0xff]
      %v1381 = vld [vmem:[%s591 + $0xd0] sm:$0xff]
      %v1382 = vld [vmem:[%s591 + $0xd8] sm:$0xff]
      %v1383 = vld [vmem:[%s591 + $0xe0] sm:$0xff]
      %v1384 = vld [vmem:[%s591 + $0xe8] sm:$0xff]
      %v1385 = vld [vmem:[%s591 + $0xf0] sm:$0xff]
      %v1386 = vld [vmem:[%s591 + $0xf8] sm:$0xff]
      %v1387 = vld [vmem:[%s595] sm:$0x1]
      %v1389 = vperm.slane %v1387, 0
      %1391 = vmatpush.msra.mxu0 %v1370
      %1392 = vmatpush.msra.mxu0 %v1369
      %1393 = vmatpush.msra.mxu0 %v1368
      %1394 = vmatpush.msra.mxu0 %v1367
      %1395 = vmatpush.msra.mxu0 %v1366
      %1396 = vmatpush.msra.mxu0 %v1365
      %1397 = vmatpush.msra.mxu0 %v1364
      %1398 = vmatpush.msra.mxu0 %v1363
      %1399 = vmatpush.msra.mxu0 %v1362
      %1400 = vmatpush.msra.mxu0 %v1361
      %1401 = vmatpush.msra.mxu0 %v1360
      %1402 = vmatpush.msra.mxu0 %v1359
      %1403 = vmatpush.msra.mxu0 %v1358
      %1404 = vmatpush.msra.mxu0 %v1357
      %1405 = vmatpush.msra.mxu0 %v1356
      %1406 = vmatpush.msra.mxu0 %v1355
      %1407 = vmatmul.f32.gmra.mxu0 %v1316
      %v1408 = vpop.f32.mrf.mxu0
      %v1409 = vadd.f32 %v1389, %v1408
      %1410 = vmatmul.f32.gmra.mxu0 %v1318
      %v1411 = vpop.f32.mrf.mxu0
      %v1412 = vadd.f32 %v1389, %v1411
      %1413 = vmatmul.f32.gmra.mxu0 %v1321
      %v1414 = vpop.f32.mrf.mxu0
      %v1415 = vadd.f32 %v1389, %v1414
      %1416 = vmatmul.f32.gmra.mxu0 %v1323
      %v1417 = vpop.f32.mrf.mxu0
      %v1418 = vadd.f32 %v1389, %v1417
      %1419 = vmatmul.f32.gmra.mxu0 %v1326
      %v1420 = vpop.f32.mrf.mxu0
      %v1421 = vadd.f32 %v1389, %v1420
      %1422 = vmatmul.f32.gmra.mxu0 %v1328
      %v1423 = vpop.f32.mrf.mxu0
      %v1424 = vadd.f32 %v1389, %v1423
      %1425 = vmatmul.f32.gmra.mxu0 %v1331
      %v1426 = vpop.f32.mrf.mxu0
      %v1427 = vadd.f32 %v1389, %v1426
      %1428 = vmatmul.f32.gmra.mxu0 %v1333
      %v1429 = vpop.f32.mrf.mxu0
      %v1430 = vadd.f32 %v1389, %v1429
      %1431 = vmatmul.f32.gmra.mxu0 %v1336
      %v1432 = vpop.f32.mrf.mxu0
      %v1433 = vadd.f32 %v1389, %v1432
      %1434 = vmatmul.f32.gmra.mxu0 %v1338
      %v1435 = vpop.f32.mrf.mxu0
      %v1436 = vadd.f32 %v1389, %v1435
      %1437 = vmatmul.f32.gmra.mxu0 %v1341
      %v1438 = vpop.f32.mrf.mxu0
      %v1439 = vadd.f32 %v1389, %v1438
      %1440 = vmatmul.f32.gmra.mxu0 %v1343
      %v1441 = vpop.f32.mrf.mxu0
      %v1442 = vadd.f32 %v1389, %v1441
      %1443 = vmatmul.f32.gmra.mxu0 %v1346
      %v1444 = vpop.f32.mrf.mxu0
      %v1445 = vadd.f32 %v1389, %v1444
      %1446 = vmatmul.f32.gmra.mxu0 %v1348
      %v1447 = vpop.f32.mrf.mxu0
      %v1448 = vadd.f32 %v1389, %v1447
      %1449 = vmatmul.f32.gmra.mxu0 %v1351
      %v1450 = vpop.f32.mrf.mxu0
      %v1451 = vadd.f32 %v1389, %v1450
      %1452 = vmatmul.f32.gmra.mxu0 %v1353
      %v1453 = vpop.f32.mrf.mxu0
      %v1454 = vadd.f32 %v1389, %v1453
      %1455 = vdwg.mxu0
      %1456 = vmatpush.msra.mxu0 %v1386
      %1457 = vmatpush.msra.mxu0 %v1385
      %1458 = vmatpush.msra.mxu0 %v1384
      %1459 = vmatpush.msra.mxu0 %v1383
      %1460 = vmatpush.msra.mxu0 %v1382
      %1461 = vmatpush.msra.mxu0 %v1381
      %1462 = vmatpush.msra.mxu0 %v1380
      %1463 = vmatpush.msra.mxu0 %v1379
      %1464 = vmatpush.msra.mxu0 %v1378
      %1465 = vmatpush.msra.mxu0 %v1377
      %1466 = vmatpush.msra.mxu0 %v1376
      %1467 = vmatpush.msra.mxu0 %v1375
      %1468 = vmatpush.msra.mxu0 %v1374
      %1469 = vmatpush.msra.mxu0 %v1373
      %1470 = vmatpush.msra.mxu0 %v1372
      %1471 = vmatpush.msra.mxu0 %v1371
      %1472 = vmatmul.f32.gmra.mxu0 %v676
      %v1473 = vpop.f32.mrf.mxu0
      %v1474 = vadd.f32 %v1409, %v1473
      %1475 = vmatmul.f32.gmra.mxu0 %v677
      %v1476 = vpop.f32.mrf.mxu0
      %v1477 = vadd.f32 %v1412, %v1476
      %1478 = vmatmul.f32.gmra.mxu0 %v678
      %v1479 = vpop.f32.mrf.mxu0
      %v1480 = vadd.f32 %v1415, %v1479
      %1481 = vmatmul.f32.gmra.mxu0 %v679
      %v1482 = vpop.f32.mrf.mxu0
      %v1483 = vadd.f32 %v1418, %v1482
      %1484 = vmatmul.f32.gmra.mxu0 %v680
      %v1485 = vpop.f32.mrf.mxu0
      %v1486 = vadd.f32 %v1421, %v1485
      %1487 = vmatmul.f32.gmra.mxu0 %v681
      %v1488 = vpop.f32.mrf.mxu0
      %v1489 = vadd.f32 %v1424, %v1488
      %1490 = vmatmul.f32.gmra.mxu0 %v682
      %v1491 = vpop.f32.mrf.mxu0
      %v1492 = vadd.f32 %v1427, %v1491
      %1493 = vmatmul.f32.gmra.mxu0 %v683
      %v1494 = vpop.f32.mrf.mxu0
      %v1495 = vadd.f32 %v1430, %v1494
      %1496 = vmatmul.f32.gmra.mxu0 %v684
      %v1497 = vpop.f32.mrf.mxu0
      %v1498 = vadd.f32 %v1433, %v1497
      %1499 = vmatmul.f32.gmra.mxu0 %v685
      %v1500 = vpop.f32.mrf.mxu0
      %v1501 = vadd.f32 %v1436, %v1500
      %1502 = vmatmul.f32.gmra.mxu0 %v686
      %v1503 = vpop.f32.mrf.mxu0
      %v1504 = vadd.f32 %v1439, %v1503
      %1505 = vmatmul.f32.gmra.mxu0 %v687
      %v1506 = vpop.f32.mrf.mxu0
      %v1507 = vadd.f32 %v1442, %v1506
      %1508 = vmatmul.f32.gmra.mxu0 %v688
      %v1509 = vpop.f32.mrf.mxu0
      %v1510 = vadd.f32 %v1445, %v1509
      %1511 = vmatmul.f32.gmra.mxu0 %v689
      %v1512 = vpop.f32.mrf.mxu0
      %v1513 = vadd.f32 %v1448, %v1512
      %1514 = vmatmul.f32.gmra.mxu0 %v690
      %v1515 = vpop.f32.mrf.mxu0
      %v1516 = vadd.f32 %v1451, %v1515
      %1517 = vmatmul.f32.gmra.mxu0 %v691
      %v1518 = vpop.f32.mrf.mxu0
      %v1519 = vadd.f32 %v1454, %v1518
      %1520 = vdwg.mxu0
      %v1521 = vmax.f32 %v1474, 0.0
      %v1522 = vmax.f32 %v1477, 0.0
      %v1523 = vmax.f32 %v1480, 0.0
      %v1524 = vmax.f32 %v1483, 0.0
      %v1525 = vmax.f32 %v1486, 0.0
      %v1526 = vmax.f32 %v1489, 0.0
      %v1527 = vmax.f32 %v1492, 0.0
      %v1528 = vmax.f32 %v1495, 0.0
      %v1529 = vmax.f32 %v1498, 0.0
      %v1530 = vmax.f32 %v1501, 0.0
      %v1531 = vmax.f32 %v1504, 0.0
      %v1532 = vmax.f32 %v1507, 0.0
      %v1533 = vmax.f32 %v1510, 0.0
      %v1534 = vmax.f32 %v1513, 0.0
      %v1535 = vmax.f32 %v1516, 0.0
      %v1536 = vmax.f32 %v1519, 0.0
      %v1537 = vmax.f32 %v1234, 0.0
      %v1538 = vmax.f32 %v1235, 0.0
      %v1539 = vmax.f32 %v1236, 0.0
      %v1540 = vmax.f32 %v1237, 0.0
      %v1541 = vmax.f32 %v1238, 0.0
      %v1542 = vmax.f32 %v1239, 0.0
      %v1543 = vmax.f32 %v1240, 0.0
      %v1544 = vmax.f32 %v1241, 0.0
      %v1545 = vmax.f32 %v1242, 0.0
      %v1546 = vmax.f32 %v1243, 0.0
      %v1547 = vmax.f32 %v1244, 0.0
      %v1548 = vmax.f32 %v1245, 0.0
      %v1549 = vmax.f32 %v1246, 0.0
      %v1550 = vmax.f32 %v1247, 0.0
      %v1551 = vmax.f32 %v1248, 0.0
      %v1552 = vmax.f32 %v1249, 0.0
      %s1553 = scalar_lea.vmem %s577, 256
      %v1554 = vld [vmem:[%s1553] sm:$0xff]
      %v1555 = vld [vmem:[%s1553 + $0x8] sm:$0xff]
      %v1556 = vld [vmem:[%s1553 + $0x10] sm:$0xff]
      %v1557 = vld [vmem:[%s1553 + $0x18] sm:$0xff]
      %v1558 = vld [vmem:[%s1553 + $0x20] sm:$0xff]
      %v1559 = vld [vmem:[%s1553 + $0x28] sm:$0xff]
      %v1560 = vld [vmem:[%s1553 + $0x30] sm:$0xff]
      %v1561 = vld [vmem:[%s1553 + $0x38] sm:$0xff]
      %v1562 = vld [vmem:[%s1553 + $0x40] sm:$0xff]
      %v1563 = vld [vmem:[%s1553 + $0x48] sm:$0xff]
      %v1564 = vld [vmem:[%s1553 + $0x50] sm:$0xff]
      %v1565 = vld [vmem:[%s1553 + $0x58] sm:$0xff]
      %v1566 = vld [vmem:[%s1553 + $0x60] sm:$0xff]
      %v1567 = vld [vmem:[%s1553 + $0x68] sm:$0xff]
      %v1568 = vld [vmem:[%s1553 + $0x70] sm:$0xff]
      %v1569 = vld [vmem:[%s1553 + $0x78] sm:$0xff]
      %v1570 = vld [vmem:[%s1553 + $0x80] sm:$0xff]
      %v1571 = vld [vmem:[%s1553 + $0x88] sm:$0xff]
      %v1572 = vld [vmem:[%s1553 + $0x90] sm:$0xff]
      %v1573 = vld [vmem:[%s1553 + $0x98] sm:$0xff]
      %v1574 = vld [vmem:[%s1553 + $0xa0] sm:$0xff]
      %v1575 = vld [vmem:[%s1553 + $0xa8] sm:$0xff]
      %v1576 = vld [vmem:[%s1553 + $0xb0] sm:$0xff]
      %v1577 = vld [vmem:[%s1553 + $0xb8] sm:$0xff]
      %v1578 = vld [vmem:[%s1553 + $0xc0] sm:$0xff]
      %v1579 = vld [vmem:[%s1553 + $0xc8] sm:$0xff]
      %v1580 = vld [vmem:[%s1553 + $0xd0] sm:$0xff]
      %v1581 = vld [vmem:[%s1553 + $0xd8] sm:$0xff]
      %v1582 = vld [vmem:[%s1553 + $0xe0] sm:$0xff]
      %v1583 = vld [vmem:[%s1553 + $0xe8] sm:$0xff]
      %v1584 = vld [vmem:[%s1553 + $0xf0] sm:$0xff]
      %v1585 = vld [vmem:[%s1553 + $0xf8] sm:$0xff]
      %1586 = vmatpush.msra.mxu0 %v1584
      %1587 = vmatpush.msra.mxu0 %v1582
      %1588 = vmatpush.msra.mxu0 %v1580
      %1589 = vmatpush.msra.mxu0 %v1578
      %1590 = vmatpush.msra.mxu0 %v1576
      %1591 = vmatpush.msra.mxu0 %v1574
      %1592 = vmatpush.msra.mxu0 %v1572
      %1593 = vmatpush.msra.mxu0 %v1570
      %1594 = vmatpush.msra.mxu0 %v1568
      %1595 = vmatpush.msra.mxu0 %v1566
      %1596 = vmatpush.msra.mxu0 %v1564
      %1597 = vmatpush.msra.mxu0 %v1562
      %1598 = vmatpush.msra.mxu0 %v1560
      %1599 = vmatpush.msra.mxu0 %v1558
      %1600 = vmatpush.msra.mxu0 %v1556
      %1601 = vmatpush.msra.mxu0 %v1554
      %1602 = vmatmul.f32.gmra.mxu0 %v1521
      %v1603 = vpop.f32.mrf.mxu0
      %v1604 = vadd.f32 0.0, %v1603
      %1605 = vmatmul.f32.gmra.mxu0 %v1522
      %v1606 = vpop.f32.mrf.mxu0
      %v1607 = vadd.f32 0.0, %v1606
      %1608 = vmatmul.f32.gmra.mxu0 %v1523
      %v1609 = vpop.f32.mrf.mxu0
      %v1610 = vadd.f32 0.0, %v1609
      %1611 = vmatmul.f32.gmra.mxu0 %v1524
      %v1612 = vpop.f32.mrf.mxu0
      %v1613 = vadd.f32 0.0, %v1612
      %1614 = vmatmul.f32.gmra.mxu0 %v1525
      %v1615 = vpop.f32.mrf.mxu0
      %v1616 = vadd.f32 0.0, %v1615
      %1617 = vmatmul.f32.gmra.mxu0 %v1526
      %v1618 = vpop.f32.mrf.mxu0
      %v1619 = vadd.f32 0.0, %v1618
      %1620 = vmatmul.f32.gmra.mxu0 %v1527
      %v1621 = vpop.f32.mrf.mxu0
      %v1622 = vadd.f32 0.0, %v1621
      %1623 = vmatmul.f32.gmra.mxu0 %v1528
      %v1624 = vpop.f32.mrf.mxu0
      %v1625 = vadd.f32 0.0, %v1624
      %1626 = vmatmul.f32.gmra.mxu0 %v1529
      %v1627 = vpop.f32.mrf.mxu0
      %v1628 = vadd.f32 0.0, %v1627
      %1629 = vmatmul.f32.gmra.mxu0 %v1530
      %v1630 = vpop.f32.mrf.mxu0
      %v1631 = vadd.f32 0.0, %v1630
      %1632 = vmatmul.f32.gmra.mxu0 %v1531
      %v1633 = vpop.f32.mrf.mxu0
      %v1634 = vadd.f32 0.0, %v1633
      %1635 = vmatmul.f32.gmra.mxu0 %v1532
      %v1636 = vpop.f32.mrf.mxu0
      %v1637 = vadd.f32 0.0, %v1636
      %1638 = vmatmul.f32.gmra.mxu0 %v1533
      %v1639 = vpop.f32.mrf.mxu0
      %v1640 = vadd.f32 0.0, %v1639
      %1641 = vmatmul.f32.gmra.mxu0 %v1534
      %v1642 = vpop.f32.mrf.mxu0
      %v1643 = vadd.f32 0.0, %v1642
      %1644 = vmatmul.f32.gmra.mxu0 %v1535
      %v1645 = vpop.f32.mrf.mxu0
      %v1646 = vadd.f32 0.0, %v1645
      %1647 = vmatmul.f32.gmra.mxu0 %v1536
      %v1648 = vpop.f32.mrf.mxu0
      %v1649 = vadd.f32 0.0, %v1648
      %1650 = vdwg.mxu0
      %1651 = vmatpush.msra.mxu0 %v1585
      %1652 = vmatpush.msra.mxu0 %v1583
      %1653 = vmatpush.msra.mxu0 %v1581
      %1654 = vmatpush.msra.mxu0 %v1579
      %1655 = vmatpush.msra.mxu0 %v1577
      %1656 = vmatpush.msra.mxu0 %v1575
      %1657 = vmatpush.msra.mxu0 %v1573
      %1658 = vmatpush.msra.mxu0 %v1571
      %1659 = vmatpush.msra.mxu0 %v1569
      %1660 = vmatpush.msra.mxu0 %v1567
      %1661 = vmatpush.msra.mxu0 %v1565
      %1662 = vmatpush.msra.mxu0 %v1563
      %1663 = vmatpush.msra.mxu0 %v1561
      %1664 = vmatpush.msra.mxu0 %v1559
      %1665 = vmatpush.msra.mxu0 %v1557
      %1666 = vmatpush.msra.mxu0 %v1555
      %1667 = vmatmul.f32.gmra.mxu0 %v1521
      %v1668 = vpop.f32.mrf.mxu0
      %v1669 = vadd.f32 0.0, %v1668
      %1670 = vmatmul.f32.gmra.mxu0 %v1522
      %v1671 = vpop.f32.mrf.mxu0
      %v1672 = vadd.f32 0.0, %v1671
      %1673 = vmatmul.f32.gmra.mxu0 %v1523
      %v1674 = vpop.f32.mrf.mxu0
      %v1675 = vadd.f32 0.0, %v1674
      %1676 = vmatmul.f32.gmra.mxu0 %v1524
      %v1677 = vpop.f32.mrf.mxu0
      %v1678 = vadd.f32 0.0, %v1677
      %1679 = vmatmul.f32.gmra.mxu0 %v1525
      %v1680 = vpop.f32.mrf.mxu0
      %v1681 = vadd.f32 0.0, %v1680
      %1682 = vmatmul.f32.gmra.mxu0 %v1526
      %v1683 = vpop.f32.mrf.mxu0
      %v1684 = vadd.f32 0.0, %v1683
      %1685 = vmatmul.f32.gmra.mxu0 %v1527
      %v1686 = vpop.f32.mrf.mxu0
      %v1687 = vadd.f32 0.0, %v1686
      %1688 = vmatmul.f32.gmra.mxu0 %v1528
      %v1689 = vpop.f32.mrf.mxu0
      %v1690 = vadd.f32 0.0, %v1689
      %1691 = vmatmul.f32.gmra.mxu0 %v1529
      %v1692 = vpop.f32.mrf.mxu0
      %v1693 = vadd.f32 0.0, %v1692
      %1694 = vmatmul.f32.gmra.mxu0 %v1530
      %v1695 = vpop.f32.mrf.mxu0
      %v1696 = vadd.f32 0.0, %v1695
      %1697 = vmatmul.f32.gmra.mxu0 %v1531
      %v1698 = vpop.f32.mrf.mxu0
      %v1699 = vadd.f32 0.0, %v1698
      %1700 = vmatmul.f32.gmra.mxu0 %v1532
      %v1701 = vpop.f32.mrf.mxu0
      %v1702 = vadd.f32 0.0, %v1701
      %1703 = vmatmul.f32.gmra.mxu0 %v1533
      %v1704 = vpop.f32.mrf.mxu0
      %v1705 = vadd.f32 0.0, %v1704
      %1706 = vmatmul.f32.gmra.mxu0 %v1534
      %v1707 = vpop.f32.mrf.mxu0
      %v1708 = vadd.f32 0.0, %v1707
      %1709 = vmatmul.f32.gmra.mxu0 %v1535
      %v1710 = vpop.f32.mrf.mxu0
      %v1711 = vadd.f32 0.0, %v1710
      %1712 = vmatmul.f32.gmra.mxu0 %v1536
      %v1713 = vpop.f32.mrf.mxu0
      %v1714 = vadd.f32 0.0, %v1713
      %1715 = vdwg.mxu0
      %v1716 = vpack.c.bf16 %v1607, %v1604
      %v1717 = vpack.c.bf16 %v1613, %v1610
      %v1718 = vpack.c.bf16 %v1619, %v1616
      %v1719 = vpack.c.bf16 %v1625, %v1622
      %v1720 = vpack.c.bf16 %v1631, %v1628
      %v1721 = vpack.c.bf16 %v1637, %v1634
      %v1722 = vpack.c.bf16 %v1643, %v1640
      %v1723 = vpack.c.bf16 %v1649, %v1646
      %v1724 = vpack.c.bf16 %v1672, %v1669
      %v1725 = vpack.c.bf16 %v1678, %v1675
      %v1726 = vpack.c.bf16 %v1684, %v1681
      %v1727 = vpack.c.bf16 %v1690, %v1687
      %v1728 = vpack.c.bf16 %v1696, %v1693
      %v1729 = vpack.c.bf16 %v1702, %v1699
      %v1730 = vpack.c.bf16 %v1708, %v1705
      %v1731 = vpack.c.bf16 %v1714, %v1711
      %1732 = vmatpush.bf16.msra.mxu0 %v1731
      %1733 = vmatpush.bf16.msra.mxu0 %v1730
      %1734 = vmatpush.bf16.msra.mxu0 %v1729
      %1735 = vmatpush.bf16.msra.mxu0 %v1728
      %1736 = vmatpush.bf16.msra.mxu0 %v1727
      %1737 = vmatpush.bf16.msra.mxu0 %v1726
      %1738 = vmatpush.bf16.msra.mxu0 %v1725
      %1739 = vmatpush.bf16.msra.mxu0 %v1724
      %1740 = vmatmul.bf16.gmra.mxu0 %v971
      %v1741 = vpop.f32.mrf.mxu0
      %v1742 = vadd.f32 0.0, %v1741
      %v1743 = vpop.f32.mrf.mxu0
      %v1744 = vadd.f32 0.0, %v1743
      %1745 = vmatmul.bf16.gmra.mxu0 %v972
      %v1746 = vpop.f32.mrf.mxu0
      %v1747 = vadd.f32 0.0, %v1746
      %v1748 = vpop.f32.mrf.mxu0
      %v1749 = vadd.f32 0.0, %v1748
      %1750 = vmatmul.bf16.gmra.mxu0 %v973
      %v1751 = vpop.f32.mrf.mxu0
      %v1752 = vadd.f32 0.0, %v1751
      %v1753 = vpop.f32.mrf.mxu0
      %v1754 = vadd.f32 0.0, %v1753
      %1755 = vmatmul.bf16.gmra.mxu0 %v974
      %v1756 = vpop.f32.mrf.mxu0
      %v1757 = vadd.f32 0.0, %v1756
      %v1758 = vpop.f32.mrf.mxu0
      %v1759 = vadd.f32 0.0, %v1758
      %1760 = vmatmul.bf16.gmra.mxu0 %v975
      %v1761 = vpop.f32.mrf.mxu0
      %v1762 = vadd.f32 0.0, %v1761
      %v1763 = vpop.f32.mrf.mxu0
      %v1764 = vadd.f32 0.0, %v1763
      %1765 = vmatmul.bf16.gmra.mxu0 %v976
      %v1766 = vpop.f32.mrf.mxu0
      %v1767 = vadd.f32 0.0, %v1766
      %v1768 = vpop.f32.mrf.mxu0
      %v1769 = vadd.f32 0.0, %v1768
      %1770 = vmatmul.bf16.gmra.mxu0 %v977
      %v1771 = vpop.f32.mrf.mxu0
      %v1772 = vadd.f32 0.0, %v1771
      %v1773 = vpop.f32.mrf.mxu0
      %v1774 = vadd.f32 0.0, %v1773
      %1775 = vmatmul.bf16.gmra.mxu0 %v978
      %v1776 = vpop.f32.mrf.mxu0
      %v1777 = vadd.f32 0.0, %v1776
      %v1778 = vpop.f32.mrf.mxu0
      %v1779 = vadd.f32 0.0, %v1778
      %1780 = vdwg.mxu0
      %1781 = vmatpush.bf16.msra.mxu0 %v1723
      %1782 = vmatpush.bf16.msra.mxu0 %v1722
      %1783 = vmatpush.bf16.msra.mxu0 %v1721
      %1784 = vmatpush.bf16.msra.mxu0 %v1720
      %1785 = vmatpush.bf16.msra.mxu0 %v1719
      %1786 = vmatpush.bf16.msra.mxu0 %v1718
      %1787 = vmatpush.bf16.msra.mxu0 %v1717
      %1788 = vmatpush.bf16.msra.mxu0 %v1716
      %1789 = vmatmul.bf16.gmra.mxu0 %v1068
      %v1790 = vpop.f32.mrf.mxu0
      %v1791 = vadd.f32 %v1742, %v1790
      %v1792 = vpop.f32.mrf.mxu0
      %v1793 = vadd.f32 %v1744, %v1792
      %1794 = vmatmul.bf16.gmra.mxu0 %v1069
      %v1795 = vpop.f32.mrf.mxu0
      %v1796 = vadd.f32 %v1747, %v1795
      %v1797 = vpop.f32.mrf.mxu0
      %v1798 = vadd.f32 %v1749, %v1797
      %1799 = vmatmul.bf16.gmra.mxu0 %v1070
      %v1800 = vpop.f32.mrf.mxu0
      %v1801 = vadd.f32 %v1752, %v1800
      %v1802 = vpop.f32.mrf.mxu0
      %v1803 = vadd.f32 %v1754, %v1802
      %1804 = vmatmul.bf16.gmra.mxu0 %v1071
      %v1805 = vpop.f32.mrf.mxu0
      %v1806 = vadd.f32 %v1757, %v1805
      %v1807 = vpop.f32.mrf.mxu0
      %v1808 = vadd.f32 %v1759, %v1807
      %1809 = vmatmul.bf16.gmra.mxu0 %v1072
      %v1810 = vpop.f32.mrf.mxu0
      %v1811 = vadd.f32 %v1762, %v1810
      %v1812 = vpop.f32.mrf.mxu0
      %v1813 = vadd.f32 %v1764, %v1812
      %1814 = vmatmul.bf16.gmra.mxu0 %v1073
      %v1815 = vpop.f32.mrf.mxu0
      %v1816 = vadd.f32 %v1767, %v1815
      %v1817 = vpop.f32.mrf.mxu0
      %v1818 = vadd.f32 %v1769, %v1817
      %1819 = vmatmul.bf16.gmra.mxu0 %v1074
      %v1820 = vpop.f32.mrf.mxu0
      %v1821 = vadd.f32 %v1772, %v1820
      %v1822 = vpop.f32.mrf.mxu0
      %v1823 = vadd.f32 %v1774, %v1822
      %1824 = vmatmul.bf16.gmra.mxu0 %v1075
      %v1825 = vpop.f32.mrf.mxu0
      %v1826 = vadd.f32 %v1777, %v1825
      %v1827 = vpop.f32.mrf.mxu0
      %v1828 = vadd.f32 %v1779, %v1827
      %1829 = vdwg.mxu0
      %s1830 = scalar_lea.vmem %s582, 128
      %v1831 = vld [vmem:[%s1830] sm:$0xff]
      %v1832 = vld [vmem:[%s1830 + $0x8] sm:$0xff]
      %v1833 = vld [vmem:[%s1830 + $0x10] sm:$0xff]
      %v1834 = vld [vmem:[%s1830 + $0x18] sm:$0xff]
      %v1835 = vld [vmem:[%s1830 + $0x20] sm:$0xff]
      %v1836 = vld [vmem:[%s1830 + $0x28] sm:$0xff]
      %v1837 = vld [vmem:[%s1830 + $0x30] sm:$0xff]
      %v1838 = vld [vmem:[%s1830 + $0x38] sm:$0xff]
      %v1839 = vld [vmem:[%s1830 + $0x40] sm:$0xff]
      %v1840 = vld [vmem:[%s1830 + $0x48] sm:$0xff]
      %v1841 = vld [vmem:[%s1830 + $0x50] sm:$0xff]
      %v1842 = vld [vmem:[%s1830 + $0x58] sm:$0xff]
      %v1843 = vld [vmem:[%s1830 + $0x60] sm:$0xff]
      %v1844 = vld [vmem:[%s1830 + $0x68] sm:$0xff]
      %v1845 = vld [vmem:[%s1830 + $0x70] sm:$0xff]
      %v1846 = vld [vmem:[%s1830 + $0x78] sm:$0xff]
      %1847 = vmatpush.msra.mxu0 %v1846
      %1848 = vmatpush.msra.mxu0 %v1845
      %1849 = vmatpush.msra.mxu0 %v1844
      %1850 = vmatpush.msra.mxu0 %v1843
      %1851 = vmatpush.msra.mxu0 %v1842
      %1852 = vmatpush.msra.mxu0 %v1841
      %1853 = vmatpush.msra.mxu0 %v1840
      %1854 = vmatpush.msra.mxu0 %v1839
      %1855 = vmatpush.msra.mxu0 %v1838
      %1856 = vmatpush.msra.mxu0 %v1837
      %1857 = vmatpush.msra.mxu0 %v1836
      %1858 = vmatpush.msra.mxu0 %v1835
      %1859 = vmatpush.msra.mxu0 %v1834
      %1860 = vmatpush.msra.mxu0 %v1833
      %1861 = vmatpush.msra.mxu0 %v1832
      %1862 = vmatpush.msra.mxu0 %v1831
      %1863 = vmatmul.f32.gmra.mxu0 %v1537
      %v1864 = vpop.f32.mrf.mxu0
      %v1865 = vadd.f32 0.0, %v1864
      %1866 = vmatmul.f32.gmra.mxu0 %v1538
      %v1867 = vpop.f32.mrf.mxu0
      %v1868 = vadd.f32 0.0, %v1867
      %1869 = vmatmul.f32.gmra.mxu0 %v1539
      %v1870 = vpop.f32.mrf.mxu0
      %v1871 = vadd.f32 0.0, %v1870
      %1872 = vmatmul.f32.gmra.mxu0 %v1540
      %v1873 = vpop.f32.mrf.mxu0
      %v1874 = vadd.f32 0.0, %v1873
      %1875 = vmatmul.f32.gmra.mxu0 %v1541
      %v1876 = vpop.f32.mrf.mxu0
      %v1877 = vadd.f32 0.0, %v1876
      %1878 = vmatmul.f32.gmra.mxu0 %v1542
      %v1879 = vpop.f32.mrf.mxu0
      %v1880 = vadd.f32 0.0, %v1879
      %1881 = vmatmul.f32.gmra.mxu0 %v1543
      %v1882 = vpop.f32.mrf.mxu0
      %v1883 = vadd.f32 0.0, %v1882
      %1884 = vmatmul.f32.gmra.mxu0 %v1544
      %v1885 = vpop.f32.mrf.mxu0
      %v1886 = vadd.f32 0.0, %v1885
      %1887 = vmatmul.f32.gmra.mxu0 %v1545
      %v1888 = vpop.f32.mrf.mxu0
      %v1889 = vadd.f32 0.0, %v1888
      %1890 = vmatmul.f32.gmra.mxu0 %v1546
      %v1891 = vpop.f32.mrf.mxu0
      %v1892 = vadd.f32 0.0, %v1891
      %1893 = vmatmul.f32.gmra.mxu0 %v1547
      %v1894 = vpop.f32.mrf.mxu0
      %v1895 = vadd.f32 0.0, %v1894
      %1896 = vmatmul.f32.gmra.mxu0 %v1548
      %v1897 = vpop.f32.mrf.mxu0
      %v1898 = vadd.f32 0.0, %v1897
      %1899 = vmatmul.f32.gmra.mxu0 %v1549
      %v1900 = vpop.f32.mrf.mxu0
      %v1901 = vadd.f32 0.0, %v1900
      %1902 = vmatmul.f32.gmra.mxu0 %v1550
      %v1903 = vpop.f32.mrf.mxu0
      %v1904 = vadd.f32 0.0, %v1903
      %1905 = vmatmul.f32.gmra.mxu0 %v1551
      %v1906 = vpop.f32.mrf.mxu0
      %v1907 = vadd.f32 0.0, %v1906
      %1908 = vmatmul.f32.gmra.mxu0 %v1552
      %v1909 = vpop.f32.mrf.mxu0
      %v1910 = vadd.f32 0.0, %v1909
      %1911 = vdwg.mxu0
      %v1912 = vadd.f32 %v1791, %v1865
      %v1913 = vadd.f32 %v1793, %v1868
      %v1914 = vadd.f32 %v1796, %v1871
      %v1915 = vadd.f32 %v1798, %v1874
      %v1916 = vadd.f32 %v1801, %v1877
      %v1917 = vadd.f32 %v1803, %v1880
      %v1918 = vadd.f32 %v1806, %v1883
      %v1919 = vadd.f32 %v1808, %v1886
      %v1920 = vadd.f32 %v1811, %v1889
      %v1921 = vadd.f32 %v1813, %v1892
      %v1922 = vadd.f32 %v1816, %v1895
      %v1923 = vadd.f32 %v1818, %v1898
      %v1924 = vadd.f32 %v1821, %v1901
      %v1925 = vadd.f32 %v1823, %v1904
      %v1926 = vadd.f32 %v1826, %v1907
      %v1927 = vadd.f32 %v1828, %v1910
      %s1928 = scalar_lea.vmem %s586, 1
      %v1929 = vld [vmem:[%s1928] sm:$0x1]
      %v1931 = vperm.slane %v1929, 0
      %v1933 = vadd.f32 %v1912, %v1931
      %v1934 = vadd.f32 %v1913, %v1931
      %v1935 = vadd.f32 %v1914, %v1931
      %v1936 = vadd.f32 %v1915, %v1931
      %v1937 = vadd.f32 %v1916, %v1931
      %v1938 = vadd.f32 %v1917, %v1931
      %v1939 = vadd.f32 %v1918, %v1931
      %v1940 = vadd.f32 %v1919, %v1931
      %v1941 = vadd.f32 %v1920, %v1931
      %v1942 = vadd.f32 %v1921, %v1931
      %v1943 = vadd.f32 %v1922, %v1931
      %v1944 = vadd.f32 %v1923, %v1931
      %v1945 = vadd.f32 %v1924, %v1931
      %v1946 = vadd.f32 %v1925, %v1931
      %v1947 = vadd.f32 %v1926, %v1931
      %v1948 = vadd.f32 %v1927, %v1931
      %v1949 = vpack.c.bf16 %v1934, %v1933
      %v1950 = vpack.c.bf16 %v1936, %v1935
      %v1951 = vpack.c.bf16 %v1938, %v1937
      %v1952 = vpack.c.bf16 %v1940, %v1939
      %v1953 = vpack.c.bf16 %v1942, %v1941
      %v1954 = vpack.c.bf16 %v1944, %v1943
      %v1955 = vpack.c.bf16 %v1946, %v1945
      %v1956 = vpack.c.bf16 %v1948, %v1947
      %1957 = vmatpush.bf16.msra.mxu0 %v1956
      %1958 = vmatpush.bf16.msra.mxu0 %v1955
      %1959 = vmatpush.bf16.msra.mxu0 %v1954
      %1960 = vmatpush.bf16.msra.mxu0 %v1953
      %1961 = vmatpush.bf16.msra.mxu0 %v1952
      %1962 = vmatpush.bf16.msra.mxu0 %v1951
      %1963 = vmatpush.bf16.msra.mxu0 %v1950
      %1964 = vmatpush.bf16.msra.mxu0 %v1949
      %1965 = vmatmul.bf16.gmra.mxu0 %v1290
      %v1966 = vpop.f32.mrf.mxu0
      %v1967 = vadd.f32 0.0, %v1966
      %v1968 = vpop.f32.mrf.mxu0
      %v1969 = vadd.f32 0.0, %v1968
      %1970 = vmatmul.bf16.gmra.mxu0 %v1291
      %v1971 = vpop.f32.mrf.mxu0
      %v1972 = vadd.f32 0.0, %v1971
      %v1973 = vpop.f32.mrf.mxu0
      %v1974 = vadd.f32 0.0, %v1973
      %1975 = vmatmul.bf16.gmra.mxu0 %v1292
      %v1976 = vpop.f32.mrf.mxu0
      %v1977 = vadd.f32 0.0, %v1976
      %v1978 = vpop.f32.mrf.mxu0
      %v1979 = vadd.f32 0.0, %v1978
      %1980 = vmatmul.bf16.gmra.mxu0 %v1293
      %v1981 = vpop.f32.mrf.mxu0
      %v1982 = vadd.f32 0.0, %v1981
      %v1983 = vpop.f32.mrf.mxu0
      %v1984 = vadd.f32 0.0, %v1983
      %1985 = vmatmul.bf16.gmra.mxu0 %v1294
      %v1986 = vpop.f32.mrf.mxu0
      %v1987 = vadd.f32 0.0, %v1986
      %v1988 = vpop.f32.mrf.mxu0
      %v1989 = vadd.f32 0.0, %v1988
      %1990 = vmatmul.bf16.gmra.mxu0 %v1295
      %v1991 = vpop.f32.mrf.mxu0
      %v1992 = vadd.f32 0.0, %v1991
      %v1993 = vpop.f32.mrf.mxu0
      %v1994 = vadd.f32 0.0, %v1993
      %1995 = vmatmul.bf16.gmra.mxu0 %v1296
      %v1996 = vpop.f32.mrf.mxu0
      %v1997 = vadd.f32 0.0, %v1996
      %v1998 = vpop.f32.mrf.mxu0
      %v1999 = vadd.f32 0.0, %v1998
      %2000 = vmatmul.bf16.gmra.mxu0 %v1297
      %v2001 = vpop.f32.mrf.mxu0
      %v2002 = vadd.f32 0.0, %v2001
      %v2003 = vpop.f32.mrf.mxu0
      %v2004 = vadd.f32 0.0, %v2003
      %2005 = vdwg.mxu0
      %s2006 = scalar_lea.vmem %s591, 256
      %v2007 = vld [vmem:[%s2006] sm:$0xff]
      %v2008 = vld [vmem:[%s2006 + $0x8] sm:$0xff]
      %v2009 = vld [vmem:[%s2006 + $0x10] sm:$0xff]
      %v2010 = vld [vmem:[%s2006 + $0x18] sm:$0xff]
      %v2011 = vld [vmem:[%s2006 + $0x20] sm:$0xff]
      %v2012 = vld [vmem:[%s2006 + $0x28] sm:$0xff]
      %v2013 = vld [vmem:[%s2006 + $0x30] sm:$0xff]
      %v2014 = vld [vmem:[%s2006 + $0x38] sm:$0xff]
      %v2015 = vld [vmem:[%s2006 + $0x40] sm:$0xff]
      %v2016 = vld [vmem:[%s2006 + $0x48] sm:$0xff]
      %v2017 = vld [vmem:[%s2006 + $0x50] sm:$0xff]
      %v2018 = vld [vmem:[%s2006 + $0x58] sm:$0xff]
      %v2019 = vld [vmem:[%s2006 + $0x60] sm:$0xff]
      %v2020 = vld [vmem:[%s2006 + $0x68] sm:$0xff]
      %v2021 = vld [vmem:[%s2006 + $0x70] sm:$0xff]
      %v2022 = vld [vmem:[%s2006 + $0x78] sm:$0xff]
      %v2023 = vld [vmem:[%s2006 + $0x80] sm:$0xff]
      %v2024 = vld [vmem:[%s2006 + $0x88] sm:$0xff]
      %v2025 = vld [vmem:[%s2006 + $0x90] sm:$0xff]
      %v2026 = vld [vmem:[%s2006 + $0x98] sm:$0xff]
      %v2027 = vld [vmem:[%s2006 + $0xa0] sm:$0xff]
      %v2028 = vld [vmem:[%s2006 + $0xa8] sm:$0xff]
      %v2029 = vld [vmem:[%s2006 + $0xb0] sm:$0xff]
      %v2030 = vld [vmem:[%s2006 + $0xb8] sm:$0xff]
      %v2031 = vld [vmem:[%s2006 + $0xc0] sm:$0xff]
      %v2032 = vld [vmem:[%s2006 + $0xc8] sm:$0xff]
      %v2033 = vld [vmem:[%s2006 + $0xd0] sm:$0xff]
      %v2034 = vld [vmem:[%s2006 + $0xd8] sm:$0xff]
      %v2035 = vld [vmem:[%s2006 + $0xe0] sm:$0xff]
      %v2036 = vld [vmem:[%s2006 + $0xe8] sm:$0xff]
      %v2037 = vld [vmem:[%s2006 + $0xf0] sm:$0xff]
      %v2038 = vld [vmem:[%s2006 + $0xf8] sm:$0xff]
      %s2039 = scalar_lea.vmem %s595, 1
      %v2040 = vld [vmem:[%s2039] sm:$0x1]
      %v2042 = vperm.slane %v2040, 0
      %2044 = vmatpush.msra.mxu0 %v2022
      %2045 = vmatpush.msra.mxu0 %v2021
      %2046 = vmatpush.msra.mxu0 %v2020
      %2047 = vmatpush.msra.mxu0 %v2019
      %2048 = vmatpush.msra.mxu0 %v2018
      %2049 = vmatpush.msra.mxu0 %v2017
      %2050 = vmatpush.msra.mxu0 %v2016
      %2051 = vmatpush.msra.mxu0 %v2015
      %2052 = vmatpush.msra.mxu0 %v2014
      %2053 = vmatpush.msra.mxu0 %v2013
      %2054 = vmatpush.msra.mxu0 %v2012
      %2055 = vmatpush.msra.mxu0 %v2011
      %2056 = vmatpush.msra.mxu0 %v2010
      %2057 = vmatpush.msra.mxu0 %v2009
      %2058 = vmatpush.msra.mxu0 %v2008
      %2059 = vmatpush.msra.mxu0 %v2007
      %2060 = vmatmul.f32.gmra.mxu0 %v1967
      %v2061 = vpop.f32.mrf.mxu0
      %v2062 = vadd.f32 %v2042, %v2061
      %2063 = vmatmul.f32.gmra.mxu0 %v1969
      %v2064 = vpop.f32.mrf.mxu0
      %v2065 = vadd.f32 %v2042, %v2064
      %2066 = vmatmul.f32.gmra.mxu0 %v1972
      %v2067 = vpop.f32.mrf.mxu0
      %v2068 = vadd.f32 %v2042, %v2067
      %2069 = vmatmul.f32.gmra.mxu0 %v1974
      %v2070 = vpop.f32.mrf.mxu0
      %v2071 = vadd.f32 %v2042, %v2070
      %2072 = vmatmul.f32.gmra.mxu0 %v1977
      %v2073 = vpop.f32.mrf.mxu0
      %v2074 = vadd.f32 %v2042, %v2073
      %2075 = vmatmul.f32.gmra.mxu0 %v1979
      %v2076 = vpop.f32.mrf.mxu0
      %v2077 = vadd.f32 %v2042, %v2076
      %2078 = vmatmul.f32.gmra.mxu0 %v1982
      %v2079 = vpop.f32.mrf.mxu0
      %v2080 = vadd.f32 %v2042, %v2079
      %2081 = vmatmul.f32.gmra.mxu0 %v1984
      %v2082 = vpop.f32.mrf.mxu0
      %v2083 = vadd.f32 %v2042, %v2082
      %2084 = vmatmul.f32.gmra.mxu0 %v1987
      %v2085 = vpop.f32.mrf.mxu0
      %v2086 = vadd.f32 %v2042, %v2085
      %2087 = vmatmul.f32.gmra.mxu0 %v1989
      %v2088 = vpop.f32.mrf.mxu0
      %v2089 = vadd.f32 %v2042, %v2088
      %2090 = vmatmul.f32.gmra.mxu0 %v1992
      %v2091 = vpop.f32.mrf.mxu0
      %v2092 = vadd.f32 %v2042, %v2091
      %2093 = vmatmul.f32.gmra.mxu0 %v1994
      %v2094 = vpop.f32.mrf.mxu0
      %v2095 = vadd.f32 %v2042, %v2094
      %2096 = vmatmul.f32.gmra.mxu0 %v1997
      %v2097 = vpop.f32.mrf.mxu0
      %v2098 = vadd.f32 %v2042, %v2097
      %2099 = vmatmul.f32.gmra.mxu0 %v1999
      %v2100 = vpop.f32.mrf.mxu0
      %v2101 = vadd.f32 %v2042, %v2100
      %2102 = vmatmul.f32.gmra.mxu0 %v2002
      %v2103 = vpop.f32.mrf.mxu0
      %v2104 = vadd.f32 %v2042, %v2103
      %2105 = vmatmul.f32.gmra.mxu0 %v2004
      %v2106 = vpop.f32.mrf.mxu0
      %v2107 = vadd.f32 %v2042, %v2106
      %2108 = vdwg.mxu0
      %2109 = vmatpush.msra.mxu0 %v2038
      %2110 = vmatpush.msra.mxu0 %v2037
      %2111 = vmatpush.msra.mxu0 %v2036
      %2112 = vmatpush.msra.mxu0 %v2035
      %2113 = vmatpush.msra.mxu0 %v2034
      %2114 = vmatpush.msra.mxu0 %v2033
      %2115 = vmatpush.msra.mxu0 %v2032
      %2116 = vmatpush.msra.mxu0 %v2031
      %2117 = vmatpush.msra.mxu0 %v2030
      %2118 = vmatpush.msra.mxu0 %v2029
      %2119 = vmatpush.msra.mxu0 %v2028
      %2120 = vmatpush.msra.mxu0 %v2027
      %2121 = vmatpush.msra.mxu0 %v2026
      %2122 = vmatpush.msra.mxu0 %v2025
      %2123 = vmatpush.msra.mxu0 %v2024
      %2124 = vmatpush.msra.mxu0 %v2023
      %2125 = vmatmul.f32.gmra.mxu0 %v1521
      %v2126 = vpop.f32.mrf.mxu0
      %v2127 = vadd.f32 %v2062, %v2126
      %2128 = vmatmul.f32.gmra.mxu0 %v1522
      %v2129 = vpop.f32.mrf.mxu0
      %v2130 = vadd.f32 %v2065, %v2129
      %2131 = vmatmul.f32.gmra.mxu0 %v1523
      %v2132 = vpop.f32.mrf.mxu0
      %v2133 = vadd.f32 %v2068, %v2132
      %2134 = vmatmul.f32.gmra.mxu0 %v1524
      %v2135 = vpop.f32.mrf.mxu0
      %v2136 = vadd.f32 %v2071, %v2135
      %2137 = vmatmul.f32.gmra.mxu0 %v1525
      %v2138 = vpop.f32.mrf.mxu0
      %v2139 = vadd.f32 %v2074, %v2138
      %2140 = vmatmul.f32.gmra.mxu0 %v1526
      %v2141 = vpop.f32.mrf.mxu0
      %v2142 = vadd.f32 %v2077, %v2141
      %2143 = vmatmul.f32.gmra.mxu0 %v1527
      %v2144 = vpop.f32.mrf.mxu0
      %v2145 = vadd.f32 %v2080, %v2144
      %2146 = vmatmul.f32.gmra.mxu0 %v1528
      %v2147 = vpop.f32.mrf.mxu0
      %v2148 = vadd.f32 %v2083, %v2147
      %2149 = vmatmul.f32.gmra.mxu0 %v1529
      %v2150 = vpop.f32.mrf.mxu0
      %v2151 = vadd.f32 %v2086, %v2150
      %2152 = vmatmul.f32.gmra.mxu0 %v1530
      %v2153 = vpop.f32.mrf.mxu0
      %v2154 = vadd.f32 %v2089, %v2153
      %2155 = vmatmul.f32.gmra.mxu0 %v1531
      %v2156 = vpop.f32.mrf.mxu0
      %v2157 = vadd.f32 %v2092, %v2156
      %2158 = vmatmul.f32.gmra.mxu0 %v1532
      %v2159 = vpop.f32.mrf.mxu0
      %v2160 = vadd.f32 %v2095, %v2159
      %2161 = vmatmul.f32.gmra.mxu0 %v1533
      %v2162 = vpop.f32.mrf.mxu0
      %v2163 = vadd.f32 %v2098, %v2162
      %2164 = vmatmul.f32.gmra.mxu0 %v1534
      %v2165 = vpop.f32.mrf.mxu0
      %v2166 = vadd.f32 %v2101, %v2165
      %2167 = vmatmul.f32.gmra.mxu0 %v1535
      %v2168 = vpop.f32.mrf.mxu0
      %v2169 = vadd.f32 %v2104, %v2168
      %2170 = vmatmul.f32.gmra.mxu0 %v1536
      %v2171 = vpop.f32.mrf.mxu0
      %v2172 = vadd.f32 %v2107, %v2171
      %2173 = vdwg.mxu0
      %v2174 = vmax.f32 %v2127, 0.0
      %v2175 = vmax.f32 %v2130, 0.0
      %v2176 = vmax.f32 %v2133, 0.0
      %v2177 = vmax.f32 %v2136, 0.0
      %v2178 = vmax.f32 %v2139, 0.0
      %v2179 = vmax.f32 %v2142, 0.0
      %v2180 = vmax.f32 %v2145, 0.0
      %v2181 = vmax.f32 %v2148, 0.0
      %v2182 = vmax.f32 %v2151, 0.0
      %v2183 = vmax.f32 %v2154, 0.0
      %v2184 = vmax.f32 %v2157, 0.0
      %v2185 = vmax.f32 %v2160, 0.0
      %v2186 = vmax.f32 %v2163, 0.0
      %v2187 = vmax.f32 %v2166, 0.0
      %v2188 = vmax.f32 %v2169, 0.0
      %v2189 = vmax.f32 %v2172, 0.0
      %v2190 = vmax.f32 %v1933, 0.0
      %v2191 = vmax.f32 %v1934, 0.0
      %v2192 = vmax.f32 %v1935, 0.0
      %v2193 = vmax.f32 %v1936, 0.0
      %v2194 = vmax.f32 %v1937, 0.0
      %v2195 = vmax.f32 %v1938, 0.0
      %v2196 = vmax.f32 %v1939, 0.0
      %v2197 = vmax.f32 %v1940, 0.0
      %v2198 = vmax.f32 %v1941, 0.0
      %v2199 = vmax.f32 %v1942, 0.0
      %v2200 = vmax.f32 %v1943, 0.0
      %v2201 = vmax.f32 %v1944, 0.0
      %v2202 = vmax.f32 %v1945, 0.0
      %v2203 = vmax.f32 %v1946, 0.0
      %v2204 = vmax.f32 %v1947, 0.0
      %v2205 = vmax.f32 %v1948, 0.0
      %v2206 = vld [vmem:[%s598] sm:$0x1]
      %v2207 = vld [vmem:[%s601] sm:$0x1]
      %2208 = vadd.xlane.f32.xlu0 %v2174
      %v2209 = vpop.xlane.xlu0 %2208
      %2210 = vadd.xlane.f32.xlu0 %v2175
      %v2211 = vpop.xlane.xlu0 %2210
      %2212 = vadd.xlane.f32.xlu0 %v2176
      %v2213 = vpop.xlane.xlu0 %2212
      %2214 = vadd.xlane.f32.xlu0 %v2177
      %v2215 = vpop.xlane.xlu0 %2214
      %2216 = vadd.xlane.f32.xlu0 %v2178
      %v2217 = vpop.xlane.xlu0 %2216
      %2218 = vadd.xlane.f32.xlu0 %v2179
      %v2219 = vpop.xlane.xlu0 %2218
      %2220 = vadd.xlane.f32.xlu0 %v2180
      %v2221 = vpop.xlane.xlu0 %2220
      %2222 = vadd.xlane.f32.xlu0 %v2181
      %v2223 = vpop.xlane.xlu0 %2222
      %2224 = vadd.xlane.f32.xlu0 %v2182
      %v2225 = vpop.xlane.xlu0 %2224
      %2226 = vadd.xlane.f32.xlu0 %v2183
      %v2227 = vpop.xlane.xlu0 %2226
      %2228 = vadd.xlane.f32.xlu0 %v2184
      %v2229 = vpop.xlane.xlu0 %2228
      %2230 = vadd.xlane.f32.xlu0 %v2185
      %v2231 = vpop.xlane.xlu0 %2230
      %2232 = vadd.xlane.f32.xlu0 %v2186
      %v2233 = vpop.xlane.xlu0 %2232
      %2234 = vadd.xlane.f32.xlu0 %v2187
      %v2235 = vpop.xlane.xlu0 %2234
      %2236 = vadd.xlane.f32.xlu0 %v2188
      %v2237 = vpop.xlane.xlu0 %2236
      %2238 = vadd.xlane.f32.xlu0 %v2189
      %v2239 = vpop.xlane.xlu0 %2238
      %v2240 = vmul.f32 %v2209, 0.03125
      %v2241 = vmul.f32 %v2211, 0.03125
      %v2242 = vmul.f32 %v2213, 0.03125
      %v2243 = vmul.f32 %v2215, 0.03125
      %v2244 = vmul.f32 %v2217, 0.03125
      %v2245 = vmul.f32 %v2219, 0.03125
      %v2246 = vmul.f32 %v2221, 0.03125
      %v2247 = vmul.f32 %v2223, 0.03125
      %v2248 = vmul.f32 %v2225, 0.03125
      %v2249 = vmul.f32 %v2227, 0.03125
      %v2250 = vmul.f32 %v2229, 0.03125
      %v2251 = vmul.f32 %v2231, 0.03125
      %v2252 = vmul.f32 %v2233, 0.03125
      %v2253 = vmul.f32 %v2235, 0.03125
      %v2254 = vmul.f32 %v2237, 0.03125
      %v2255 = vmul.f32 %v2239, 0.03125
      %v2256 = vsub.f32 %v2174, %v2240
      %v2257 = vsub.f32 %v2175, %v2241
      %v2258 = vsub.f32 %v2176, %v2242
      %v2259 = vsub.f32 %v2177, %v2243
      %v2260 = vsub.f32 %v2178, %v2244
      %v2261 = vsub.f32 %v2179, %v2245
      %v2262 = vsub.f32 %v2180, %v2246
      %v2263 = vsub.f32 %v2181, %v2247
      %v2264 = vsub.f32 %v2182, %v2248
      %v2265 = vsub.f32 %v2183, %v2249
      %v2266 = vsub.f32 %v2184, %v2250
      %v2267 = vsub.f32 %v2185, %v2251
      %v2268 = vsub.f32 %v2186, %v2252
      %v2269 = vsub.f32 %v2187, %v2253
      %v2270 = vsub.f32 %v2188, %v2254
      %v2271 = vsub.f32 %v2189, %v2255
      %v2272 = vmul.f32 %v2256, %v760
      %v2273 = vmul.f32 %v2257, %v760
      %v2274 = vmul.f32 %v2258, %v760
      %v2275 = vmul.f32 %v2259, %v760
      %v2276 = vmul.f32 %v2260, %v760
      %v2277 = vmul.f32 %v2261, %v760
      %v2278 = vmul.f32 %v2262, %v760
      %v2279 = vmul.f32 %v2263, %v760
      %v2280 = vmul.f32 %v2264, %v760
      %v2281 = vmul.f32 %v2265, %v760
      %v2282 = vmul.f32 %v2266, %v760
      %v2283 = vmul.f32 %v2267, %v760
      %v2284 = vmul.f32 %v2268, %v760
      %v2285 = vmul.f32 %v2269, %v760
      %v2286 = vmul.f32 %v2270, %v760
      %v2287 = vmul.f32 %v2271, %v760
      %v2288 = vmul.f32 %v2272, %v2272
      %v2289 = vmul.f32 %v2273, %v2273
      %v2290 = vmul.f32 %v2274, %v2274
      %v2291 = vmul.f32 %v2275, %v2275
      %v2292 = vmul.f32 %v2276, %v2276
      %v2293 = vmul.f32 %v2277, %v2277
      %v2294 = vmul.f32 %v2278, %v2278
      %v2295 = vmul.f32 %v2279, %v2279
      %v2296 = vmul.f32 %v2280, %v2280
      %v2297 = vmul.f32 %v2281, %v2281
      %v2298 = vmul.f32 %v2282, %v2282
      %v2299 = vmul.f32 %v2283, %v2283
      %v2300 = vmul.f32 %v2284, %v2284
      %v2301 = vmul.f32 %v2285, %v2285
      %v2302 = vmul.f32 %v2286, %v2286
      %v2303 = vmul.f32 %v2287, %v2287
      %2304 = vadd.xlane.f32.xlu0 %v2288
      %v2305 = vpop.xlane.xlu0 %2304
      %2306 = vadd.xlane.f32.xlu0 %v2289
      %v2307 = vpop.xlane.xlu0 %2306
      %2308 = vadd.xlane.f32.xlu0 %v2290
      %v2309 = vpop.xlane.xlu0 %2308
      %2310 = vadd.xlane.f32.xlu0 %v2291
      %v2311 = vpop.xlane.xlu0 %2310
      %2312 = vadd.xlane.f32.xlu0 %v2292
      %v2313 = vpop.xlane.xlu0 %2312
      %2314 = vadd.xlane.f32.xlu0 %v2293
      %v2315 = vpop.xlane.xlu0 %2314
      %2316 = vadd.xlane.f32.xlu0 %v2294
      %v2317 = vpop.xlane.xlu0 %2316
      %2318 = vadd.xlane.f32.xlu0 %v2295
      %v2319 = vpop.xlane.xlu0 %2318
      %2320 = vadd.xlane.f32.xlu0 %v2296
      %v2321 = vpop.xlane.xlu0 %2320
      %2322 = vadd.xlane.f32.xlu0 %v2297
      %v2323 = vpop.xlane.xlu0 %2322
      %2324 = vadd.xlane.f32.xlu0 %v2298
      %v2325 = vpop.xlane.xlu0 %2324
      %2326 = vadd.xlane.f32.xlu0 %v2299
      %v2327 = vpop.xlane.xlu0 %2326
      %2328 = vadd.xlane.f32.xlu0 %v2300
      %v2329 = vpop.xlane.xlu0 %2328
      %2330 = vadd.xlane.f32.xlu0 %v2301
      %v2331 = vpop.xlane.xlu0 %2330
      %2332 = vadd.xlane.f32.xlu0 %v2302
      %v2333 = vpop.xlane.xlu0 %2332
      %2334 = vadd.xlane.f32.xlu0 %v2303
      %v2335 = vpop.xlane.xlu0 %2334
      %v2336 = vmul.f32 %v2305, 0.03125
      %v2337 = vmul.f32 %v2307, 0.03125
      %v2338 = vmul.f32 %v2309, 0.03125
      %v2339 = vmul.f32 %v2311, 0.03125
      %v2340 = vmul.f32 %v2313, 0.03125
      %v2341 = vmul.f32 %v2315, 0.03125
      %v2342 = vmul.f32 %v2317, 0.03125
      %v2343 = vmul.f32 %v2319, 0.03125
      %v2344 = vmul.f32 %v2321, 0.03125
      %v2345 = vmul.f32 %v2323, 0.03125
      %v2346 = vmul.f32 %v2325, 0.03125
      %v2347 = vmul.f32 %v2327, 0.03125
      %v2348 = vmul.f32 %v2329, 0.03125
      %v2349 = vmul.f32 %v2331, 0.03125
      %v2350 = vmul.f32 %v2333, 0.03125
      %v2351 = vmul.f32 %v2335, 0.03125
      %v2352 = vadd.f32 %v2336, 1e-05
      %v2353 = vadd.f32 %v2337, 1e-05
      %v2354 = vadd.f32 %v2338, 1e-05
      %v2355 = vadd.f32 %v2339, 1e-05
      %v2356 = vadd.f32 %v2340, 1e-05
      %v2357 = vadd.f32 %v2341, 1e-05
      %v2358 = vadd.f32 %v2342, 1e-05
      %v2359 = vadd.f32 %v2343, 1e-05
      %v2360 = vadd.f32 %v2344, 1e-05
      %v2361 = vadd.f32 %v2345, 1e-05
      %v2362 = vadd.f32 %v2346, 1e-05
      %v2363 = vadd.f32 %v2347, 1e-05
      %v2364 = vadd.f32 %v2348, 1e-05
      %v2365 = vadd.f32 %v2349, 1e-05
      %v2366 = vadd.f32 %v2350, 1e-05
      %v2367 = vadd.f32 %v2351, 1e-05
      %v2368 = vrsqrt.pop %v2352
      %v2369 = vmul.f32 %v2368, %v2352
      %v2370 = vmul.f32 %v2369, %v2368
      %v2371 = vmul.f32 0.5, %v2370
      %v2372 = vsub.f32 1.5, %v2371
      %v2373 = vmul.f32 %v2368, %v2372
      %vm2374 = vweird.f32 %v2352
      %vm2375 = vweird.f32 %v2368
      %vm2376 = vmor %vm2374, %vm2375
      %v2377 = vsel %vm2376, %v2368, %v2373
      %v2378 = vrsqrt.pop %v2353
      %v2379 = vmul.f32 %v2378, %v2353
      %v2380 = vmul.f32 %v2379, %v2378
      %v2381 = vmul.f32 0.5, %v2380
      %v2382 = vsub.f32 1.5, %v2381
      %v2383 = vmul.f32 %v2378, %v2382
      %vm2384 = vweird.f32 %v2353
      %vm2385 = vweird.f32 %v2378
      %vm2386 = vmor %vm2384, %vm2385
      %v2387 = vsel %vm2386, %v2378, %v2383
      %v2388 = vrsqrt.pop %v2354
      %v2389 = vmul.f32 %v2388, %v2354
      %v2390 = vmul.f32 %v2389, %v2388
      %v2391 = vmul.f32 0.5, %v2390
      %v2392 = vsub.f32 1.5, %v2391
      %v2393 = vmul.f32 %v2388, %v2392
      %vm2394 = vweird.f32 %v2354
      %vm2395 = vweird.f32 %v2388
      %vm2396 = vmor %vm2394, %vm2395
      %v2397 = vsel %vm2396, %v2388, %v2393
      %v2398 = vrsqrt.pop %v2355
      %v2399 = vmul.f32 %v2398, %v2355
      %v2400 = vmul.f32 %v2399, %v2398
      %v2401 = vmul.f32 0.5, %v2400
      %v2402 = vsub.f32 1.5, %v2401
      %v2403 = vmul.f32 %v2398, %v2402
      %vm2404 = vweird.f32 %v2355
      %vm2405 = vweird.f32 %v2398
      %vm2406 = vmor %vm2404, %vm2405
      %v2407 = vsel %vm2406, %v2398, %v2403
      %v2408 = vrsqrt.pop %v2356
      %v2409 = vmul.f32 %v2408, %v2356
      %v2410 = vmul.f32 %v2409, %v2408
      %v2411 = vmul.f32 0.5, %v2410
      %v2412 = vsub.f32 1.5, %v2411
      %v2413 = vmul.f32 %v2408, %v2412
      %vm2414 = vweird.f32 %v2356
      %vm2415 = vweird.f32 %v2408
      %vm2416 = vmor %vm2414, %vm2415
      %v2417 = vsel %vm2416, %v2408, %v2413
      %v2418 = vrsqrt.pop %v2357
      %v2419 = vmul.f32 %v2418, %v2357
      %v2420 = vmul.f32 %v2419, %v2418
      %v2421 = vmul.f32 0.5, %v2420
      %v2422 = vsub.f32 1.5, %v2421
      %v2423 = vmul.f32 %v2418, %v2422
      %vm2424 = vweird.f32 %v2357
      %vm2425 = vweird.f32 %v2418
      %vm2426 = vmor %vm2424, %vm2425
      %v2427 = vsel %vm2426, %v2418, %v2423
      %v2428 = vrsqrt.pop %v2358
      %v2429 = vmul.f32 %v2428, %v2358
      %v2430 = vmul.f32 %v2429, %v2428
      %v2431 = vmul.f32 0.5, %v2430
      %v2432 = vsub.f32 1.5, %v2431
      %v2433 = vmul.f32 %v2428, %v2432
      %vm2434 = vweird.f32 %v2358
      %vm2435 = vweird.f32 %v2428
      %vm2436 = vmor %vm2434, %vm2435
      %v2437 = vsel %vm2436, %v2428, %v2433
      %v2438 = vrsqrt.pop %v2359
      %v2439 = vmul.f32 %v2438, %v2359
      %v2440 = vmul.f32 %v2439, %v2438
      %v2441 = vmul.f32 0.5, %v2440
      %v2442 = vsub.f32 1.5, %v2441
      %v2443 = vmul.f32 %v2438, %v2442
      %vm2444 = vweird.f32 %v2359
      %vm2445 = vweird.f32 %v2438
      %vm2446 = vmor %vm2444, %vm2445
      %v2447 = vsel %vm2446, %v2438, %v2443
      %v2448 = vrsqrt.pop %v2360
      %v2449 = vmul.f32 %v2448, %v2360
      %v2450 = vmul.f32 %v2449, %v2448
      %v2451 = vmul.f32 0.5, %v2450
      %v2452 = vsub.f32 1.5, %v2451
      %v2453 = vmul.f32 %v2448, %v2452
      %vm2454 = vweird.f32 %v2360
      %vm2455 = vweird.f32 %v2448
      %vm2456 = vmor %vm2454, %vm2455
      %v2457 = vsel %vm2456, %v2448, %v2453
      %v2458 = vrsqrt.pop %v2361
      %v2459 = vmul.f32 %v2458, %v2361
      %v2460 = vmul.f32 %v2459, %v2458
      %v2461 = vmul.f32 0.5, %v2460
      %v2462 = vsub.f32 1.5, %v2461
      %v2463 = vmul.f32 %v2458, %v2462
      %vm2464 = vweird.f32 %v2361
      %vm2465 = vweird.f32 %v2458
      %vm2466 = vmor %vm2464, %vm2465
      %v2467 = vsel %vm2466, %v2458, %v2463
      %v2468 = vrsqrt.pop %v2362
      %v2469 = vmul.f32 %v2468, %v2362
      %v2470 = vmul.f32 %v2469, %v2468
      %v2471 = vmul.f32 0.5, %v2470
      %v2472 = vsub.f32 1.5, %v2471
      %v2473 = vmul.f32 %v2468, %v2472
      %vm2474 = vweird.f32 %v2362
      %vm2475 = vweird.f32 %v2468
      %vm2476 = vmor %vm2474, %vm2475
      %v2477 = vsel %vm2476, %v2468, %v2473
      %v2478 = vrsqrt.pop %v2363
      %v2479 = vmul.f32 %v2478, %v2363
      %v2480 = vmul.f32 %v2479, %v2478
      %v2481 = vmul.f32 0.5, %v2480
      %v2482 = vsub.f32 1.5, %v2481
      %v2483 = vmul.f32 %v2478, %v2482
      %vm2484 = vweird.f32 %v2363
      %vm2485 = vweird.f32 %v2478
      %vm2486 = vmor %vm2484, %vm2485
      %v2487 = vsel %vm2486, %v2478, %v2483
      %v2488 = vrsqrt.pop %v2364
      %v2489 = vmul.f32 %v2488, %v2364
      %v2490 = vmul.f32 %v2489, %v2488
      %v2491 = vmul.f32 0.5, %v2490
      %v2492 = vsub.f32 1.5, %v2491
      %v2493 = vmul.f32 %v2488, %v2492
      %vm2494 = vweird.f32 %v2364
      %vm2495 = vweird.f32 %v2488
      %vm2496 = vmor %vm2494, %vm2495
      %v2497 = vsel %vm2496, %v2488, %v2493
      %v2498 = vrsqrt.pop %v2365
      %v2499 = vmul.f32 %v2498, %v2365
      %v2500 = vmul.f32 %v2499, %v2498
      %v2501 = vmul.f32 0.5, %v2500
      %v2502 = vsub.f32 1.5, %v2501
      %v2503 = vmul.f32 %v2498, %v2502
      %vm2504 = vweird.f32 %v2365
      %vm2505 = vweird.f32 %v2498
      %vm2506 = vmor %vm2504, %vm2505
      %v2507 = vsel %vm2506, %v2498, %v2503
      %v2508 = vrsqrt.pop %v2366
      %v2509 = vmul.f32 %v2508, %v2366
      %v2510 = vmul.f32 %v2509, %v2508
      %v2511 = vmul.f32 0.5, %v2510
      %v2512 = vsub.f32 1.5, %v2511
      %v2513 = vmul.f32 %v2508, %v2512
      %vm2514 = vweird.f32 %v2366
      %vm2515 = vweird.f32 %v2508
      %vm2516 = vmor %vm2514, %vm2515
      %v2517 = vsel %vm2516, %v2508, %v2513
      %v2518 = vrsqrt.pop %v2367
      %v2519 = vmul.f32 %v2518, %v2367
      %v2520 = vmul.f32 %v2519, %v2518
      %v2521 = vmul.f32 0.5, %v2520
      %v2522 = vsub.f32 1.5, %v2521
      %v2523 = vmul.f32 %v2518, %v2522
      %vm2524 = vweird.f32 %v2367
      %vm2525 = vweird.f32 %v2518
      %vm2526 = vmor %vm2524, %vm2525
      %v2527 = vsel %vm2526, %v2518, %v2523
      %v2528 = vmul.f32 %v2272, %v2377
      %v2529 = vmul.f32 %v2273, %v2387
      %v2530 = vmul.f32 %v2274, %v2397
      %v2531 = vmul.f32 %v2275, %v2407
      %v2532 = vmul.f32 %v2276, %v2417
      %v2533 = vmul.f32 %v2277, %v2427
      %v2534 = vmul.f32 %v2278, %v2437
      %v2535 = vmul.f32 %v2279, %v2447
      %v2536 = vmul.f32 %v2280, %v2457
      %v2537 = vmul.f32 %v2281, %v2467
      %v2538 = vmul.f32 %v2282, %v2477
      %v2539 = vmul.f32 %v2283, %v2487
      %v2540 = vmul.f32 %v2284, %v2497
      %v2541 = vmul.f32 %v2285, %v2507
      %v2542 = vmul.f32 %v2286, %v2517
      %v2543 = vmul.f32 %v2287, %v2527
      %v2545 = vperm.slane %v2206, 0
      %v2547 = vmul.f32 %v2528, %v2545
      %v2548 = vmul.f32 %v2529, %v2545
      %v2549 = vmul.f32 %v2530, %v2545
      %v2550 = vmul.f32 %v2531, %v2545
      %v2551 = vmul.f32 %v2532, %v2545
      %v2552 = vmul.f32 %v2533, %v2545
      %v2553 = vmul.f32 %v2534, %v2545
      %v2554 = vmul.f32 %v2535, %v2545
      %v2555 = vmul.f32 %v2536, %v2545
      %v2556 = vmul.f32 %v2537, %v2545
      %v2557 = vmul.f32 %v2538, %v2545
      %v2558 = vmul.f32 %v2539, %v2545
      %v2559 = vmul.f32 %v2540, %v2545
      %v2560 = vmul.f32 %v2541, %v2545
      %v2561 = vmul.f32 %v2542, %v2545
      %v2562 = vmul.f32 %v2543, %v2545
      %v2564 = vperm.slane %v2207, 0
      %v2566 = vadd.f32 %v2547, %v2564
      %v2567 = vadd.f32 %v2548, %v2564
      %v2568 = vadd.f32 %v2549, %v2564
      %v2569 = vadd.f32 %v2550, %v2564
      %v2570 = vadd.f32 %v2551, %v2564
      %v2571 = vadd.f32 %v2552, %v2564
      %v2572 = vadd.f32 %v2553, %v2564
      %v2573 = vadd.f32 %v2554, %v2564
      %v2574 = vadd.f32 %v2555, %v2564
      %v2575 = vadd.f32 %v2556, %v2564
      %v2576 = vadd.f32 %v2557, %v2564
      %v2577 = vadd.f32 %v2558, %v2564
      %v2578 = vadd.f32 %v2559, %v2564
      %v2579 = vadd.f32 %v2560, %v2564
      %v2580 = vadd.f32 %v2561, %v2564
      %v2581 = vadd.f32 %v2562, %v2564
      %v2582 = vadd.f32 %v2566, %v676
      %v2583 = vadd.f32 %v2567, %v677
      %v2584 = vadd.f32 %v2568, %v678
      %v2585 = vadd.f32 %v2569, %v679
      %v2586 = vadd.f32 %v2570, %v680
      %v2587 = vadd.f32 %v2571, %v681
      %v2588 = vadd.f32 %v2572, %v682
      %v2589 = vadd.f32 %v2573, %v683
      %v2590 = vadd.f32 %v2574, %v684
      %v2591 = vadd.f32 %v2575, %v685
      %v2592 = vadd.f32 %v2576, %v686
      %v2593 = vadd.f32 %v2577, %v687
      %v2594 = vadd.f32 %v2578, %v688
      %v2595 = vadd.f32 %v2579, %v689
      %v2596 = vadd.f32 %v2580, %v690
      %v2597 = vadd.f32 %v2581, %v691
      %v2598 = vld [vmem:[%s604] sm:$0x1]
      %v2599 = vld [vmem:[%s607] sm:$0x1]
      %2600 = vadd.xlane.f32.xlu0 %v2190
      %v2601 = vpop.xlane.xlu0 %2600
      %2602 = vadd.xlane.f32.xlu0 %v2191
      %v2603 = vpop.xlane.xlu0 %2602
      %2604 = vadd.xlane.f32.xlu0 %v2192
      %v2605 = vpop.xlane.xlu0 %2604
      %2606 = vadd.xlane.f32.xlu0 %v2193
      %v2607 = vpop.xlane.xlu0 %2606
      %2608 = vadd.xlane.f32.xlu0 %v2194
      %v2609 = vpop.xlane.xlu0 %2608
      %2610 = vadd.xlane.f32.xlu0 %v2195
      %v2611 = vpop.xlane.xlu0 %2610
      %2612 = vadd.xlane.f32.xlu0 %v2196
      %v2613 = vpop.xlane.xlu0 %2612
      %2614 = vadd.xlane.f32.xlu0 %v2197
      %v2615 = vpop.xlane.xlu0 %2614
      %2616 = vadd.xlane.f32.xlu0 %v2198
      %v2617 = vpop.xlane.xlu0 %2616
      %2618 = vadd.xlane.f32.xlu0 %v2199
      %v2619 = vpop.xlane.xlu0 %2618
      %2620 = vadd.xlane.f32.xlu0 %v2200
      %v2621 = vpop.xlane.xlu0 %2620
      %2622 = vadd.xlane.f32.xlu0 %v2201
      %v2623 = vpop.xlane.xlu0 %2622
      %2624 = vadd.xlane.f32.xlu0 %v2202
      %v2625 = vpop.xlane.xlu0 %2624
      %2626 = vadd.xlane.f32.xlu0 %v2203
      %v2627 = vpop.xlane.xlu0 %2626
      %2628 = vadd.xlane.f32.xlu0 %v2204
      %v2629 = vpop.xlane.xlu0 %2628
      %2630 = vadd.xlane.f32.xlu0 %v2205
      %v2631 = vpop.xlane.xlu0 %2630
      %v2632 = vmul.f32 %v2601, 0.03125
      %v2633 = vmul.f32 %v2603, 0.03125
      %v2634 = vmul.f32 %v2605, 0.03125
      %v2635 = vmul.f32 %v2607, 0.03125
      %v2636 = vmul.f32 %v2609, 0.03125
      %v2637 = vmul.f32 %v2611, 0.03125
      %v2638 = vmul.f32 %v2613, 0.03125
      %v2639 = vmul.f32 %v2615, 0.03125
      %v2640 = vmul.f32 %v2617, 0.03125
      %v2641 = vmul.f32 %v2619, 0.03125
      %v2642 = vmul.f32 %v2621, 0.03125
      %v2643 = vmul.f32 %v2623, 0.03125
      %v2644 = vmul.f32 %v2625, 0.03125
      %v2645 = vmul.f32 %v2627, 0.03125
      %v2646 = vmul.f32 %v2629, 0.03125
      %v2647 = vmul.f32 %v2631, 0.03125
      %v2648 = vsub.f32 %v2190, %v2632
      %v2649 = vsub.f32 %v2191, %v2633
      %v2650 = vsub.f32 %v2192, %v2634
      %v2651 = vsub.f32 %v2193, %v2635
      %v2652 = vsub.f32 %v2194, %v2636
      %v2653 = vsub.f32 %v2195, %v2637
      %v2654 = vsub.f32 %v2196, %v2638
      %v2655 = vsub.f32 %v2197, %v2639
      %v2656 = vsub.f32 %v2198, %v2640
      %v2657 = vsub.f32 %v2199, %v2641
      %v2658 = vsub.f32 %v2200, %v2642
      %v2659 = vsub.f32 %v2201, %v2643
      %v2660 = vsub.f32 %v2202, %v2644
      %v2661 = vsub.f32 %v2203, %v2645
      %v2662 = vsub.f32 %v2204, %v2646
      %v2663 = vsub.f32 %v2205, %v2647
      %v2664 = vmul.f32 %v2648, %v760
      %v2665 = vmul.f32 %v2649, %v760
      %v2666 = vmul.f32 %v2650, %v760
      %v2667 = vmul.f32 %v2651, %v760
      %v2668 = vmul.f32 %v2652, %v760
      %v2669 = vmul.f32 %v2653, %v760
      %v2670 = vmul.f32 %v2654, %v760
      %v2671 = vmul.f32 %v2655, %v760
      %v2672 = vmul.f32 %v2656, %v760
      %v2673 = vmul.f32 %v2657, %v760
      %v2674 = vmul.f32 %v2658, %v760
      %v2675 = vmul.f32 %v2659, %v760
      %v2676 = vmul.f32 %v2660, %v760
      %v2677 = vmul.f32 %v2661, %v760
      %v2678 = vmul.f32 %v2662, %v760
      %v2679 = vmul.f32 %v2663, %v760
      %v2680 = vmul.f32 %v2664, %v2664
      %v2681 = vmul.f32 %v2665, %v2665
      %v2682 = vmul.f32 %v2666, %v2666
      %v2683 = vmul.f32 %v2667, %v2667
      %v2684 = vmul.f32 %v2668, %v2668
      %v2685 = vmul.f32 %v2669, %v2669
      %v2686 = vmul.f32 %v2670, %v2670
      %v2687 = vmul.f32 %v2671, %v2671
      %v2688 = vmul.f32 %v2672, %v2672
      %v2689 = vmul.f32 %v2673, %v2673
      %v2690 = vmul.f32 %v2674, %v2674
      %v2691 = vmul.f32 %v2675, %v2675
      %v2692 = vmul.f32 %v2676, %v2676
      %v2693 = vmul.f32 %v2677, %v2677
      %v2694 = vmul.f32 %v2678, %v2678
      %v2695 = vmul.f32 %v2679, %v2679
      %2696 = vadd.xlane.f32.xlu0 %v2680
      %v2697 = vpop.xlane.xlu0 %2696
      %2698 = vadd.xlane.f32.xlu0 %v2681
      %v2699 = vpop.xlane.xlu0 %2698
      %2700 = vadd.xlane.f32.xlu0 %v2682
      %v2701 = vpop.xlane.xlu0 %2700
      %2702 = vadd.xlane.f32.xlu0 %v2683
      %v2703 = vpop.xlane.xlu0 %2702
      %2704 = vadd.xlane.f32.xlu0 %v2684
      %v2705 = vpop.xlane.xlu0 %2704
      %2706 = vadd.xlane.f32.xlu0 %v2685
      %v2707 = vpop.xlane.xlu0 %2706
      %2708 = vadd.xlane.f32.xlu0 %v2686
      %v2709 = vpop.xlane.xlu0 %2708
      %2710 = vadd.xlane.f32.xlu0 %v2687
      %v2711 = vpop.xlane.xlu0 %2710
      %2712 = vadd.xlane.f32.xlu0 %v2688
      %v2713 = vpop.xlane.xlu0 %2712
      %2714 = vadd.xlane.f32.xlu0 %v2689
      %v2715 = vpop.xlane.xlu0 %2714
      %2716 = vadd.xlane.f32.xlu0 %v2690
      %v2717 = vpop.xlane.xlu0 %2716
      %2718 = vadd.xlane.f32.xlu0 %v2691
      %v2719 = vpop.xlane.xlu0 %2718
      %2720 = vadd.xlane.f32.xlu0 %v2692
      %v2721 = vpop.xlane.xlu0 %2720
      %2722 = vadd.xlane.f32.xlu0 %v2693
      %v2723 = vpop.xlane.xlu0 %2722
      %2724 = vadd.xlane.f32.xlu0 %v2694
      %v2725 = vpop.xlane.xlu0 %2724
      %2726 = vadd.xlane.f32.xlu0 %v2695
      %v2727 = vpop.xlane.xlu0 %2726
      %v2728 = vmul.f32 %v2697, 0.03125
      %v2729 = vmul.f32 %v2699, 0.03125
      %v2730 = vmul.f32 %v2701, 0.03125
      %v2731 = vmul.f32 %v2703, 0.03125
      %v2732 = vmul.f32 %v2705, 0.03125
      %v2733 = vmul.f32 %v2707, 0.03125
      %v2734 = vmul.f32 %v2709, 0.03125
      %v2735 = vmul.f32 %v2711, 0.03125
      %v2736 = vmul.f32 %v2713, 0.03125
      %v2737 = vmul.f32 %v2715, 0.03125
      %v2738 = vmul.f32 %v2717, 0.03125
      %v2739 = vmul.f32 %v2719, 0.03125
      %v2740 = vmul.f32 %v2721, 0.03125
      %v2741 = vmul.f32 %v2723, 0.03125
      %v2742 = vmul.f32 %v2725, 0.03125
      %v2743 = vmul.f32 %v2727, 0.03125
      %v2744 = vadd.f32 %v2728, 1e-05
      %v2745 = vadd.f32 %v2729, 1e-05
      %v2746 = vadd.f32 %v2730, 1e-05
      %v2747 = vadd.f32 %v2731, 1e-05
      %v2748 = vadd.f32 %v2732, 1e-05
      %v2749 = vadd.f32 %v2733, 1e-05
      %v2750 = vadd.f32 %v2734, 1e-05
      %v2751 = vadd.f32 %v2735, 1e-05
      %v2752 = vadd.f32 %v2736, 1e-05
      %v2753 = vadd.f32 %v2737, 1e-05
      %v2754 = vadd.f32 %v2738, 1e-05
      %v2755 = vadd.f32 %v2739, 1e-05
      %v2756 = vadd.f32 %v2740, 1e-05
      %v2757 = vadd.f32 %v2741, 1e-05
      %v2758 = vadd.f32 %v2742, 1e-05
      %v2759 = vadd.f32 %v2743, 1e-05
      %v2760 = vrsqrt.pop %v2744
      %v2761 = vmul.f32 %v2760, %v2744
      %v2762 = vmul.f32 %v2761, %v2760
      %v2763 = vmul.f32 0.5, %v2762
      %v2764 = vsub.f32 1.5, %v2763
      %v2765 = vmul.f32 %v2760, %v2764
      %vm2766 = vweird.f32 %v2744
      %vm2767 = vweird.f32 %v2760
      %vm2768 = vmor %vm2766, %vm2767
      %v2769 = vsel %vm2768, %v2760, %v2765
      %v2770 = vrsqrt.pop %v2745
      %v2771 = vmul.f32 %v2770, %v2745
      %v2772 = vmul.f32 %v2771, %v2770
      %v2773 = vmul.f32 0.5, %v2772
      %v2774 = vsub.f32 1.5, %v2773
      %v2775 = vmul.f32 %v2770, %v2774
      %vm2776 = vweird.f32 %v2745
      %vm2777 = vweird.f32 %v2770
      %vm2778 = vmor %vm2776, %vm2777
      %v2779 = vsel %vm2778, %v2770, %v2775
      %v2780 = vrsqrt.pop %v2746
      %v2781 = vmul.f32 %v2780, %v2746
      %v2782 = vmul.f32 %v2781, %v2780
      %v2783 = vmul.f32 0.5, %v2782
      %v2784 = vsub.f32 1.5, %v2783
      %v2785 = vmul.f32 %v2780, %v2784
      %vm2786 = vweird.f32 %v2746
      %vm2787 = vweird.f32 %v2780
      %vm2788 = vmor %vm2786, %vm2787
      %v2789 = vsel %vm2788, %v2780, %v2785
      %v2790 = vrsqrt.pop %v2747
      %v2791 = vmul.f32 %v2790, %v2747
      %v2792 = vmul.f32 %v2791, %v2790
      %v2793 = vmul.f32 0.5, %v2792
      %v2794 = vsub.f32 1.5, %v2793
      %v2795 = vmul.f32 %v2790, %v2794
      %vm2796 = vweird.f32 %v2747
      %vm2797 = vweird.f32 %v2790
      %vm2798 = vmor %vm2796, %vm2797
      %v2799 = vsel %vm2798, %v2790, %v2795
      %v2800 = vrsqrt.pop %v2748
      %v2801 = vmul.f32 %v2800, %v2748
      %v2802 = vmul.f32 %v2801, %v2800
      %v2803 = vmul.f32 0.5, %v2802
      %v2804 = vsub.f32 1.5, %v2803
      %v2805 = vmul.f32 %v2800, %v2804
      %vm2806 = vweird.f32 %v2748
      %vm2807 = vweird.f32 %v2800
      %vm2808 = vmor %vm2806, %vm2807
      %v2809 = vsel %vm2808, %v2800, %v2805
      %v2810 = vrsqrt.pop %v2749
      %v2811 = vmul.f32 %v2810, %v2749
      %v2812 = vmul.f32 %v2811, %v2810
      %v2813 = vmul.f32 0.5, %v2812
      %v2814 = vsub.f32 1.5, %v2813
      %v2815 = vmul.f32 %v2810, %v2814
      %vm2816 = vweird.f32 %v2749
      %vm2817 = vweird.f32 %v2810
      %vm2818 = vmor %vm2816, %vm2817
      %v2819 = vsel %vm2818, %v2810, %v2815
      %v2820 = vrsqrt.pop %v2750
      %v2821 = vmul.f32 %v2820, %v2750
      %v2822 = vmul.f32 %v2821, %v2820
      %v2823 = vmul.f32 0.5, %v2822
      %v2824 = vsub.f32 1.5, %v2823
      %v2825 = vmul.f32 %v2820, %v2824
      %vm2826 = vweird.f32 %v2750
      %vm2827 = vweird.f32 %v2820
      %vm2828 = vmor %vm2826, %vm2827
      %v2829 = vsel %vm2828, %v2820, %v2825
      %v2830 = vrsqrt.pop %v2751
      %v2831 = vmul.f32 %v2830, %v2751
      %v2832 = vmul.f32 %v2831, %v2830
      %v2833 = vmul.f32 0.5, %v2832
      %v2834 = vsub.f32 1.5, %v2833
      %v2835 = vmul.f32 %v2830, %v2834
      %vm2836 = vweird.f32 %v2751
      %vm2837 = vweird.f32 %v2830
      %vm2838 = vmor %vm2836, %vm2837
      %v2839 = vsel %vm2838, %v2830, %v2835
      %v2840 = vrsqrt.pop %v2752
      %v2841 = vmul.f32 %v2840, %v2752
      %v2842 = vmul.f32 %v2841, %v2840
      %v2843 = vmul.f32 0.5, %v2842
      %v2844 = vsub.f32 1.5, %v2843
      %v2845 = vmul.f32 %v2840, %v2844
      %vm2846 = vweird.f32 %v2752
      %vm2847 = vweird.f32 %v2840
      %vm2848 = vmor %vm2846, %vm2847
      %v2849 = vsel %vm2848, %v2840, %v2845
      %v2850 = vrsqrt.pop %v2753
      %v2851 = vmul.f32 %v2850, %v2753
      %v2852 = vmul.f32 %v2851, %v2850
      %v2853 = vmul.f32 0.5, %v2852
      %v2854 = vsub.f32 1.5, %v2853
      %v2855 = vmul.f32 %v2850, %v2854
      %vm2856 = vweird.f32 %v2753
      %vm2857 = vweird.f32 %v2850
      %vm2858 = vmor %vm2856, %vm2857
      %v2859 = vsel %vm2858, %v2850, %v2855
      %v2860 = vrsqrt.pop %v2754
      %v2861 = vmul.f32 %v2860, %v2754
      %v2862 = vmul.f32 %v2861, %v2860
      %v2863 = vmul.f32 0.5, %v2862
      %v2864 = vsub.f32 1.5, %v2863
      %v2865 = vmul.f32 %v2860, %v2864
      %vm2866 = vweird.f32 %v2754
      %vm2867 = vweird.f32 %v2860
      %vm2868 = vmor %vm2866, %vm2867
      %v2869 = vsel %vm2868, %v2860, %v2865
      %v2870 = vrsqrt.pop %v2755
      %v2871 = vmul.f32 %v2870, %v2755
      %v2872 = vmul.f32 %v2871, %v2870
      %v2873 = vmul.f32 0.5, %v2872
      %v2874 = vsub.f32 1.5, %v2873
      %v2875 = vmul.f32 %v2870, %v2874
      %vm2876 = vweird.f32 %v2755
      %vm2877 = vweird.f32 %v2870
      %vm2878 = vmor %vm2876, %vm2877
      %v2879 = vsel %vm2878, %v2870, %v2875
      %v2880 = vrsqrt.pop %v2756
      %v2881 = vmul.f32 %v2880, %v2756
      %v2882 = vmul.f32 %v2881, %v2880
      %v2883 = vmul.f32 0.5, %v2882
      %v2884 = vsub.f32 1.5, %v2883
      %v2885 = vmul.f32 %v2880, %v2884
      %vm2886 = vweird.f32 %v2756
      %vm2887 = vweird.f32 %v2880
      %vm2888 = vmor %vm2886, %vm2887
      %v2889 = vsel %vm2888, %v2880, %v2885
      %v2890 = vrsqrt.pop %v2757
      %v2891 = vmul.f32 %v2890, %v2757
      %v2892 = vmul.f32 %v2891, %v2890
      %v2893 = vmul.f32 0.5, %v2892
      %v2894 = vsub.f32 1.5, %v2893
      %v2895 = vmul.f32 %v2890, %v2894
      %vm2896 = vweird.f32 %v2757
      %vm2897 = vweird.f32 %v2890
      %vm2898 = vmor %vm2896, %vm2897
      %v2899 = vsel %vm2898, %v2890, %v2895
      %v2900 = vrsqrt.pop %v2758
      %v2901 = vmul.f32 %v2900, %v2758
      %v2902 = vmul.f32 %v2901, %v2900
      %v2903 = vmul.f32 0.5, %v2902
      %v2904 = vsub.f32 1.5, %v2903
      %v2905 = vmul.f32 %v2900, %v2904
      %vm2906 = vweird.f32 %v2758
      %vm2907 = vweird.f32 %v2900
      %vm2908 = vmor %vm2906, %vm2907
      %v2909 = vsel %vm2908, %v2900, %v2905
      %v2910 = vrsqrt.pop %v2759
      %v2911 = vmul.f32 %v2910, %v2759
      %v2912 = vmul.f32 %v2911, %v2910
      %v2913 = vmul.f32 0.5, %v2912
      %v2914 = vsub.f32 1.5, %v2913
      %v2915 = vmul.f32 %v2910, %v2914
      %vm2916 = vweird.f32 %v2759
      %vm2917 = vweird.f32 %v2910
      %vm2918 = vmor %vm2916, %vm2917
      %v2919 = vsel %vm2918, %v2910, %v2915
      %v2920 = vmul.f32 %v2664, %v2769
      %v2921 = vmul.f32 %v2665, %v2779
      %v2922 = vmul.f32 %v2666, %v2789
      %v2923 = vmul.f32 %v2667, %v2799
      %v2924 = vmul.f32 %v2668, %v2809
      %v2925 = vmul.f32 %v2669, %v2819
      %v2926 = vmul.f32 %v2670, %v2829
      %v2927 = vmul.f32 %v2671, %v2839
      %v2928 = vmul.f32 %v2672, %v2849
      %v2929 = vmul.f32 %v2673, %v2859
      %v2930 = vmul.f32 %v2674, %v2869
      %v2931 = vmul.f32 %v2675, %v2879
      %v2932 = vmul.f32 %v2676, %v2889
      %v2933 = vmul.f32 %v2677, %v2899
      %v2934 = vmul.f32 %v2678, %v2909
      %v2935 = vmul.f32 %v2679, %v2919
      %v2937 = vperm.slane %v2598, 0
      %v2939 = vmul.f32 %v2920, %v2937
      %v2940 = vmul.f32 %v2921, %v2937
      %v2941 = vmul.f32 %v2922, %v2937
      %v2942 = vmul.f32 %v2923, %v2937
      %v2943 = vmul.f32 %v2924, %v2937
      %v2944 = vmul.f32 %v2925, %v2937
      %v2945 = vmul.f32 %v2926, %v2937
      %v2946 = vmul.f32 %v2927, %v2937
      %v2947 = vmul.f32 %v2928, %v2937
      %v2948 = vmul.f32 %v2929, %v2937
      %v2949 = vmul.f32 %v2930, %v2937
      %v2950 = vmul.f32 %v2931, %v2937
      %v2951 = vmul.f32 %v2932, %v2937
      %v2952 = vmul.f32 %v2933, %v2937
      %v2953 = vmul.f32 %v2934, %v2937
      %v2954 = vmul.f32 %v2935, %v2937
      %v2956 = vperm.slane %v2599, 0
      %v2958 = vadd.f32 %v2939, %v2956
      %v2959 = vadd.f32 %v2940, %v2956
      %v2960 = vadd.f32 %v2941, %v2956
      %v2961 = vadd.f32 %v2942, %v2956
      %v2962 = vadd.f32 %v2943, %v2956
      %v2963 = vadd.f32 %v2944, %v2956
      %v2964 = vadd.f32 %v2945, %v2956
      %v2965 = vadd.f32 %v2946, %v2956
      %v2966 = vadd.f32 %v2947, %v2956
      %v2967 = vadd.f32 %v2948, %v2956
      %v2968 = vadd.f32 %v2949, %v2956
      %v2969 = vadd.f32 %v2950, %v2956
      %v2970 = vadd.f32 %v2951, %v2956
      %v2971 = vadd.f32 %v2952, %v2956
      %v2972 = vadd.f32 %v2953, %v2956
      %v2973 = vadd.f32 %v2954, %v2956
      %v2974 = vadd.f32 %v2958, %v692
      %v2975 = vadd.f32 %v2959, %v693
      %v2976 = vadd.f32 %v2960, %v694
      %v2977 = vadd.f32 %v2961, %v695
      %v2978 = vadd.f32 %v2962, %v696
      %v2979 = vadd.f32 %v2963, %v697
      %v2980 = vadd.f32 %v2964, %v698
      %v2981 = vadd.f32 %v2965, %v699
      %v2982 = vadd.f32 %v2966, %v700
      %v2983 = vadd.f32 %v2967, %v701
      %v2984 = vadd.f32 %v2968, %v702
      %v2985 = vadd.f32 %v2969, %v703
      %v2986 = vadd.f32 %v2970, %v704
      %v2987 = vadd.f32 %v2971, %v705
      %v2988 = vadd.f32 %v2972, %v706
      %v2989 = vadd.f32 %v2973, %v707
      %2990 = vst [vmem:[%s14] sm:$0xff] %v2582
      %2991 = vst [vmem:[%s14 + $0x8] sm:$0xff] %v2583
      %2992 = vst [vmem:[%s14 + $0x10] sm:$0xff] %v2584
      %2993 = vst [vmem:[%s14 + $0x18] sm:$0xff] %v2585
      %2994 = vst [vmem:[%s14 + $0x20] sm:$0xff] %v2586
      %2995 = vst [vmem:[%s14 + $0x28] sm:$0xff] %v2587
      %2996 = vst [vmem:[%s14 + $0x30] sm:$0xff] %v2588
      %2997 = vst [vmem:[%s14 + $0x38] sm:$0xff] %v2589
      %2998 = vst [vmem:[%s14 + $0x40] sm:$0xff] %v2590
      %2999 = vst [vmem:[%s14 + $0x48] sm:$0xff] %v2591
      %3000 = vst [vmem:[%s14 + $0x50] sm:$0xff] %v2592
      %3001 = vst [vmem:[%s14 + $0x58] sm:$0xff] %v2593
      %3002 = vst [vmem:[%s14 + $0x60] sm:$0xff] %v2594
      %3003 = vst [vmem:[%s14 + $0x68] sm:$0xff] %v2595
      %3004 = vst [vmem:[%s14 + $0x70] sm:$0xff] %v2596
      %3005 = vst [vmem:[%s14 + $0x78] sm:$0xff] %v2597
      %3006 = vst [vmem:[%s15] sm:$0xff] %v2974
      %3007 = vst [vmem:[%s15 + $0x8] sm:$0xff] %v2975
      %3008 = vst [vmem:[%s15 + $0x10] sm:$0xff] %v2976
      %3009 = vst [vmem:[%s15 + $0x18] sm:$0xff] %v2977
      %3010 = vst [vmem:[%s15 + $0x20] sm:$0xff] %v2978
      %3011 = vst [vmem:[%s15 + $0x28] sm:$0xff] %v2979
      %3012 = vst [vmem:[%s15 + $0x30] sm:$0xff] %v2980
      %3013 = vst [vmem:[%s15 + $0x38] sm:$0xff] %v2981
      %3014 = vst [vmem:[%s15 + $0x40] sm:$0xff] %v2982
      %3015 = vst [vmem:[%s15 + $0x48] sm:$0xff] %v2983
      %3016 = vst [vmem:[%s15 + $0x50] sm:$0xff] %v2984
      %3017 = vst [vmem:[%s15 + $0x58] sm:$0xff] %v2985
      %3018 = vst [vmem:[%s15 + $0x60] sm:$0xff] %v2986
      %3019 = vst [vmem:[%s15 + $0x68] sm:$0xff] %v2987
      %3020 = vst [vmem:[%s15 + $0x70] sm:$0xff] %v2988
      %3021 = vst [vmem:[%s15 + $0x78] sm:$0xff] %v2989
      // Predicated region
      $region81: #{processor_forward.1} parent=75 // pred_check
        %p3022 = pneg %p379
      $region82: #{processor_forward.1} parent=75 // pred_check_branch
        %3024 = sbr.rel (%p3022) target = $region84
      $region83: #{processor_forward.1} parent=75 // pred_region
        _
      $region84: #{processor_forward.1} parent=75 // pred_fallthru
        _
      // Predicated region
      $region85: #{processor_forward.1} parent=75 // pred_check
        %p3025 = pneg %p400
      $region86: #{processor_forward.1} parent=75 // pred_check_branch
        %3027 = sbr.rel (%p3025) target = $region88
      $region87: #{processor_forward.1} parent=75 // pred_region
        _
      $region88: #{processor_forward.1} parent=75 // pred_fallthru
        _
      // Predicated region
      $region89: #{processor_forward.1} parent=75 // pred_check
        %p3028 = pneg %p379
      $region90: #{processor_forward.1} parent=75 // pred_check_branch
        %3030 = sbr.rel (%p3028) target = $region92
      $region91: #{processor_forward.1} parent=75 // pred_region
        _
      $region92: #{processor_forward.1} parent=75 // pred_fallthru
        _
      // Predicated region
      $region93: #{processor_forward.1} parent=75 // pred_check
        %p3031 = pneg %p400
      $region94: #{processor_forward.1} parent=75 // pred_check_branch
        %3033 = sbr.rel (%p3031) target = $region96
      $region95: #{processor_forward.1} parent=75 // pred_region
        _
      $region96: #{processor_forward.1} parent=75 // pred_fallthru
        _
    $region76: #{processor_forward.1} parent=5 // pred_fallthru
      _
    %p3034 = scmp.le.s32.totalorder 2, %s22
    // Predicated region
    $region97: #{processor_forward.1} parent=5 // pred_check
      %p3035 = pneg %p3034
    $region98: #{processor_forward.1} parent=5 // pred_check_branch
      %3037 = sbr.rel (%p3035) target = $region100
    $region99: #{processor_forward.1} parent=5 // pred_region
      %s3038 = ssub.s32 %s22, 2
    $region100: #{processor_forward.1} parent=5 // pred_fallthru
      _
  $region6: #{processor_forward.1} parent=0 // loop_footer
    %s26 = sadd.s32 1, %s22
  $region7: #{processor_forward.1} parent=0 // loop_footer_branch
    %21 = sbr.rel target = $region3
  $region8: #{processor_forward.1} parent=0 // loop_exit
    _

</llo_original>
